<compile_context>
chip_gen: v7x
topology: tpu7x:2x2x1
jax: 0.10.0
libtpu: 0.0.40
codegen_flags: <defaults>
</compile_context>

<pallas_src>
import functools

import jax
import jax.numpy as jnp
import numpy as np
from jax.experimental import pallas as pl
from jax.experimental.pallas import tpu as pltpu


def _round_up(x, m):
    return ((x + m - 1) // m) * m


# --------------------------------------------------------------------------- #
# Kernel
# --------------------------------------------------------------------------- #
def _iterative_classifier_kernel(
    sf_ref, of_ref, ppf_ref, pvf_ref,
    w_o1_ref, w_o2_ref, w_vis_ref, w_fv_ref, w_fp_ref, w_p_ref,
    b_ref, po2s_ref, sp2o_ref, so2p_ref,
    out_ref, *, O, P,
):
    f32 = jnp.float32
    TB = sf_ref.shape[0]
    O_pad = w_o2_ref.shape[1]      # lane-padded object width  (multiple of 128)
    P_pad = w_p_ref.shape[1]       # lane-padded predicate width (multiple of 128)
    kdt = po2s_ref.dtype           # knowledge dtype (f32 for validation, bf16 opt.)

    def dot(a, b):
        return jnp.dot(a, b, preferred_element_type=f32)

    b_obj1 = b_ref[0:1, :]
    b_vis = b_ref[1:2, :]
    b_feat = b_ref[2:3, :]

    # --- fused object predictor over stacked [sf; of]: one weight push/layer --
    obj_in = jnp.concatenate([sf_ref[...], of_ref[...]], axis=0)        # (2TB, F)
    h = jnp.maximum(dot(obj_in, w_o1_ref[...]) + b_obj1, 0.0)
    obj_scores = dot(h, w_o2_ref[...])                                  # (2TB, O_pad)
    s_score = obj_scores[0:TB, :]                                       # (TB, O_pad)
    o_score = obj_scores[TB:2 * TB, :]                                  # (TB, O_pad)

    # --- predicate path (split-weight concat matmul) --------------------------
    pvf_emb = jnp.maximum(dot(pvf_ref[...], w_vis_ref[...]) + b_vis, 0.0)
    pf_emb = jnp.maximum(
        dot(pvf_emb, w_fv_ref[...]) + dot(ppf_ref[...], w_fp_ref[...]) + b_feat,
        0.0)
    p_score = dot(pf_emb, w_p_ref[...])                                 # (TB, P_pad)

    # --- masked softmax over the first O (real) columns of the padded scores --
    col = jax.lax.broadcasted_iota(jnp.int32, (TB, O_pad), 1)
    valid_o = col < O

    def masked_softmax(x):
        m = jnp.max(jnp.where(valid_o, x, -1e30), axis=-1, keepdims=True)
        e = jnp.where(valid_o, jnp.exp(x - m), 0.0)
        return e / jnp.sum(e, axis=-1, keepdims=True)

    s_vec = masked_softmax(s_score)                  # zeros in padded columns
    o_vec = masked_softmax(o_score)
    p_vec = 1.0 / (1.0 + jnp.exp(-p_score))          # padded cols = 0.5, harmless:
                                                     # matching K rows are zero.
    o_w = o_vec[:, :O][:, :, None]                   # (TB, O, 1)
    p_w = p_vec[:, :P][:, :, None]                   # (TB, P, 1)

    # --- conditional knowledge biases -----------------------------------------
    # bias[b, t] = sum_{i,j} x[b,i] y[b,j] K[i*J + j, t]
    # = (x @ K_reshaped) viewed as (TB, J, T_pad), weighted by y and sublane-
    # reduced.  exp(factor) is folded into K wrapper-side; K rows/cols are
    # zero-padded to the padded contraction/output widths.
    # TODO(synk): for production O~151 on v7x, chunk n_* over lane-aligned
    # column blocks to cap the (TB, J, T_pad) live intermediate in 64 MiB VMEM.
    n_po = dot(p_vec.astype(kdt), po2s_ref[...])                        # (TB, O*O_pad)
    po_bias = jnp.sum(n_po.reshape(TB, O, O_pad) * o_w, axis=1)         # (TB, O_pad)

    n_sp = dot(s_vec.astype(kdt), sp2o_ref[...])                        # (TB, P*O_pad)
    sp_bias = jnp.sum(n_sp.reshape(TB, P, O_pad) * p_w, axis=1)         # (TB, O_pad)

    n_so = dot(s_vec.astype(kdt), so2p_ref[...])                        # (TB, O*P_pad)
    so_bias = jnp.sum(n_so.reshape(TB, O, P_pad) * o_w, axis=1)         # (TB, P_pad)

    # --- packed, lane-aligned output (every segment 128-offset, 128-wide) -----
    out_ref[:, 0:O_pad] = s_score + po_bias
    out_ref[:, O_pad:2 * O_pad] = o_score + sp_bias
    out_ref[:, 2 * O_pad:2 * O_pad + P_pad] = p_score + so_bias
    # TODO(synk): use_gt_label=True branch (scatter of gt indices to one-hot)
    # and training-mode stochastic Dropout are not represented in this
    # eval-mode kernel.


# --------------------------------------------------------------------------- #
# One-time parameter preparation (run when parameters are loaded, NOT per call)
# --------------------------------------------------------------------------- #
def prepare_params(params, knowledge_dtype=jnp.float32):
    O = params["w_obj2"].shape[1]
    P = params["w_pred"].shape[1]
    O_pad = _round_up(O, 128)
    P_pad = _round_up(P, 128)

    def pad_cols(w, width):
        w = w.astype(jnp.float32)
        return jnp.pad(w, ((0, 0), (0, width - w.shape[1])))

    def prep_knowledge(k, factor, rows_out, J, T, T_pad):
        # (rows_in, T) -> scale -> (rows_in/J, J, T) -> zero-pad rows & last dim
        # -> (rows_out, J*T_pad).
        k = (k.astype(jnp.float32) * jnp.exp(factor)).reshape(-1, J, T)
        k = jnp.pad(k, ((0, rows_out - k.shape[0]), (0, 0), (0, T_pad - T)))
        return k.reshape(rows_out, J * T_pad).astype(knowledge_dtype)

    return {
        "O": O, "P": P, "O_pad": O_pad, "P_pad": P_pad,
        "w_obj1": params["w_obj1"].astype(jnp.float32),
        "w_obj2": pad_cols(params["w_obj2"], O_pad),
        "w_vis": params["w_vis"].astype(jnp.float32),
        "w_feat_vis": params["w_feat_vis"].astype(jnp.float32),
        "w_feat_pos": params["w_feat_pos"].astype(jnp.float32),
        "w_pred": pad_cols(params["w_pred"], P_pad),
        "b_all": jnp.concatenate(
            [params["b_obj1"], params["b_vis"], params["b_feat"]], axis=0
        ).astype(jnp.float32),
        # po2s (P*O, O): row p*O+o -> K1[p, o*O_pad + s], contraction over p.
        "po2s_k": prep_knowledge(params["po2s"], params["po2s_factor"],
                                 P_pad, O, O, O_pad),
        # sp2o (O*P, O): row s*P+p -> K2[s, p*O_pad + o'], contraction over s.
        "sp2o_k": prep_knowledge(params["sp2o"], params["sp2o_factor"],
                                 O_pad, P, O, O_pad),
        # so2p (O*O, P): row s*O+o -> K3[s, o*P_pad + q], contraction over s.
        "so2p_k": prep_knowledge(params["so2p"], params["so2p_factor"],
                                 O_pad, O, P, P_pad),
    }


# --------------------------------------------------------------------------- #
# Forward wrapper
# --------------------------------------------------------------------------- #
def iterative_classifier_forward(inp_sf, inp_of, inp_ppf, inp_pvf, prepared, *,
                                 batch_tile=128, vmem_limit_bytes=None):
    O, P = prepared["O"], prepared["P"]
    O_pad, P_pad = prepared["O_pad"], prepared["P_pad"]
    W = 2 * O_pad + P_pad

    B = inp_sf.shape[0]
    B8 = _round_up(max(B, 1), 8)
    TB = min(_round_up(batch_tile, 8), B8)
    B_pad = _round_up(B8, TB)

    def pad_rows(x):
        x = x.astype(jnp.float32)
        return jnp.pad(x, ((0, B_pad - B), (0, 0)))

    sf, of, ppf, pvf = map(pad_rows, (inp_sf, inp_of, inp_ppf, inp_pvf))

    def act_spec(feat):
        return pl.BlockSpec((TB, feat), lambda i: (i, 0))

    def const_spec(arr):
        # Whole array resident in VMEM, constant across the batch grid.
        return pl.BlockSpec(arr.shape, lambda i: (0, 0))

    inputs = (
        sf, of, ppf, pvf,
        prepared["w_obj1"], prepared["w_obj2"], prepared["w_vis"],
        prepared["w_feat_vis"], prepared["w_feat_pos"], prepared["w_pred"],
        prepared["b_all"], prepared["po2s_k"], prepared["sp2o_k"], prepared["so2p_k"],
    )
    in_specs = (
        [act_spec(sf.shape[1]), act_spec(of.shape[1]),
         act_spec(ppf.shape[1]), act_spec(pvf.shape[1])]
        + [const_spec(a) for a in inputs[4:]]
    )
    out_spec = pl.BlockSpec((TB, W), lambda i: (i, 0))

    cp_kwargs = dict(dimension_semantics=("parallel",))
    if vmem_limit_bytes is not None:
        cp_kwargs["vmem_limit_bytes"] = int(vmem_limit_bytes)

    kernel = functools.partial(_iterative_classifier_kernel, O=O, P=P)
    out = pl.pallas_call(
        kernel,
        out_shape=jax.ShapeDtypeStruct((B_pad, W), jnp.float32),
        grid=(B_pad // TB,),
        in_specs=in_specs,
        out_specs=out_spec,
        compiler_params=pltpu.CompilerParams(**cp_kwargs),
    )(*inputs)

    return (out[:B, 0:O],
            out[:B, O_pad:O_pad + O],
            out[:B, 2 * O_pad:2 * O_pad + P])


# --------------------------------------------------------------------------- #
# Pure-JAX reference mirroring the PyTorch forward (eval mode)
# --------------------------------------------------------------------------- #
def reference_forward(inp_sf, inp_of, inp_ppf, inp_pvf, params):
    def object_predictor(x):
        h = jax.nn.relu(x @ params["w_obj1"] + params["b_obj1"])
        return h @ params["w_obj2"]

    s_score = object_predictor(inp_sf)
    o_score = object_predictor(inp_of)
    pvf_emb = jax.nn.relu(inp_pvf @ params["w_vis"] + params["b_vis"])
    cat = jnp.concatenate([pvf_emb, inp_ppf], axis=1)
    w_feat = jnp.concatenate([params["w_feat_vis"], params["w_feat_pos"]], axis=0)
    pf_emb = jax.nn.relu(cat @ w_feat + params["b_feat"])
    p_score = pf_emb @ params["w_pred"]

    s_vec = jax.nn.softmax(s_score, axis=1)
    o_vec = jax.nn.softmax(o_score, axis=1)
    p_vec = jax.nn.sigmoid(p_score)

    B = inp_sf.shape[0]
    po_vec = p_vec[:, :, None] * o_vec[:, None, :]
    po_bias = po_vec.reshape(B, -1) @ params["po2s"] * jnp.exp(params["po2s_factor"])
    sp_vec = s_vec[:, :, None] * p_vec[:, None, :]
    sp_bias = sp_vec.reshape(B, -1) @ params["sp2o"] * jnp.exp(params["sp2o_factor"])
    so_vec = s_vec[:, :, None] * o_vec[:, None, :]
    so_bias = so_vec.reshape(B, -1) @ params["so2p"] * jnp.exp(params["so2p_factor"])
    return s_score + po_bias, o_score + sp_bias, p_score + so_bias


# --------------------------------------------------------------------------- #
# Validation
# --------------------------------------------------------------------------- #
if __name__ == "__main__":
    def run_config(seed, B, OBJ_FEAT, PVF_FEAT, PPF_FEAT, HID, O, P):
        key = jax.random.PRNGKey(seed)
        ks = jax.random.split(key, 16)

        def rnd(k, shape, scale=0.1):
            return (scale * jax.random.normal(k, shape)).astype(jnp.float32)

        params = {
            # object_predictor
            "w_obj1": rnd(ks[0], (OBJ_FEAT, HID)),
            "b_obj1": rnd(ks[1], (1, HID)),
            "w_obj2": rnd(ks[2], (HID, O)),
            # predicate_vis_feat_emb
            "w_vis": rnd(ks[3], (PVF_FEAT, HID)),
            "b_vis": rnd(ks[4], (1, HID)),
            # predicate_feat_emb (rows [0:HID] act on pvf_emb, the rest on inp_ppf)
            "w_feat_vis": rnd(ks[5], (HID, HID)),
            "w_feat_pos": rnd(ks[6], (PPF_FEAT, HID)),
            "b_feat": rnd(ks[7], (1, HID)),
            # predicate_predictor
            "w_pred": rnd(ks[8], (HID, P)),
            # knowledge matrices (synthetic, non-zero so the bias path is exercised)
            "po2s": rnd(ks[9], (P * O, O), scale=0.05),
            "sp2o": rnd(ks[10], (O * P, O), scale=0.05),
            "so2p": rnd(ks[11], (O * O, P), scale=0.05),
            # factors (zeros in __init__; small values here to exercise the exp fold)
            "po2s_factor": jnp.float32(0.1),
            "sp2o_factor": jnp.float32(-0.2),
            "so2p_factor": jnp.float32(0.05),
        }

        dkeys = jax.random.split(jax.random.PRNGKey(seed + 1), 4)
        inp_sf = rnd(dkeys[0], (B, OBJ_FEAT), scale=1.0)
        inp_of = rnd(dkeys[1], (B, OBJ_FEAT), scale=1.0)
        inp_ppf = rnd(dkeys[2], (B, PPF_FEAT), scale=1.0)
        inp_pvf = rnd(dkeys[3], (B, PVF_FEAT), scale=1.0)

        prepared = prepare_params(params)                       # one-time, param-only
        outs = iterative_classifier_forward(
            inp_sf, inp_of, inp_ppf, inp_pvf, prepared,
            batch_tile=128, vmem_limit_bytes=32 * 1024 * 1024)
        jax.block_until_ready(outs)

        refs = reference_forward(inp_sf, inp_of, inp_ppf, inp_pvf, params)
        for got, want in zip(outs, refs):
            np.testing.assert_allclose(np.asarray(got), np.asarray(want),
                                       rtol=1e-5, atol=1e-5)

    # Config 1: the original small validation shape (O == P == 8).
    run_config(0, B=8, OBJ_FEAT=32, PVF_FEAT=32, PPF_FEAT=8, HID=32, O=8, P=8)
    # Config 2: O != P and B not a multiple of 8 — catches knowledge-matrix
    # index-convention mix-ups and exercises the batch zero-padding path.
    run_config(2, B=6, OBJ_FEAT=24, PVF_FEAT=16, PPF_FEAT=8, HID=32, O=8, P=5)

    print("KERNEL_OK")
</pallas_src>

<mosaic_0001>
module attributes {stable_mosaic.version = 11 : i64} {
  func.func @_iterative_classifier_kernel(%arg0: i32, %arg1: memref<8x32xf32, #tpu.memory_space<vmem>>, %arg2: memref<8x32xf32, #tpu.memory_space<vmem>>, %arg3: memref<8x8xf32, #tpu.memory_space<vmem>>, %arg4: memref<8x32xf32, #tpu.memory_space<vmem>>, %arg5: memref<32x32xf32, #tpu.memory_space<vmem>>, %arg6: memref<32x128xf32, #tpu.memory_space<vmem>>, %arg7: memref<32x32xf32, #tpu.memory_space<vmem>>, %arg8: memref<32x32xf32, #tpu.memory_space<vmem>>, %arg9: memref<8x32xf32, #tpu.memory_space<vmem>>, %arg10: memref<32x128xf32, #tpu.memory_space<vmem>>, %arg11: memref<3x32xf32, #tpu.memory_space<vmem>>, %arg12: memref<128x1024xf32, #tpu.memory_space<vmem>>, %arg13: memref<128x1024xf32, #tpu.memory_space<vmem>>, %arg14: memref<128x1024xf32, #tpu.memory_space<vmem>>, %arg15: memref<8x384xf32, #tpu.memory_space<vmem>>) attributes {dimension_semantics = [#tpu.dimension_semantics<parallel>], iteration_bounds = array<i64: 1>, scalar_prefetch = 0 : i64, scratch_operands = 0 : i64, tpu.core_type = #tpu.core_type<tc>, window_params = [{transform_indices = @transform_0, window_bounds = array<i64: 8, 32>}, {transform_indices = @transform_1, window_bounds = array<i64: 8, 32>}, {transform_indices = @transform_2, window_bounds = array<i64: 8, 8>}, {transform_indices = @transform_3, window_bounds = array<i64: 8, 32>}, {pipeline_mode = #tpu.pipeline_mode<synchronous>, transform_indices = @transform_4, window_bounds = array<i64: 32, 32>}, {pipeline_mode = #tpu.pipeline_mode<synchronous>, transform_indices = @transform_5, window_bounds = array<i64: 32, 128>}, {pipeline_mode = #tpu.pipeline_mode<synchronous>, transform_indices = @transform_6, window_bounds = array<i64: 32, 32>}, {pipeline_mode = #tpu.pipeline_mode<synchronous>, transform_indices = @transform_7, window_bounds = array<i64: 32, 32>}, {pipeline_mode = #tpu.pipeline_mode<synchronous>, transform_indices = @transform_8, window_bounds = array<i64: 8, 32>}, {pipeline_mode = #tpu.pipeline_mode<synchronous>, transform_indices = @transform_9, window_bounds = array<i64: 32, 128>}, {pipeline_mode = #tpu.pipeline_mode<synchronous>, transform_indices = @transform_10, window_bounds = array<i64: 3, 32>}, {pipeline_mode = #tpu.pipeline_mode<synchronous>, transform_indices = @transform_11, window_bounds = array<i64: 128, 1024>}, {pipeline_mode = #tpu.pipeline_mode<synchronous>, transform_indices = @transform_12, window_bounds = array<i64: 128, 1024>}, {pipeline_mode = #tpu.pipeline_mode<synchronous>, transform_indices = @transform_13, window_bounds = array<i64: 128, 1024>}, {transform_indices = @transform_14, window_bounds = array<i64: 8, 384>}]} {
    %c0 = arith.constant 0 : index
    %c0_0 = arith.constant 0 : index
    %0 = vector.load %arg11[%c0, %c0_0] : memref<3x32xf32, #tpu.memory_space<vmem>>, vector<1x32xf32>
    %c1 = arith.constant 1 : index
    %c0_1 = arith.constant 0 : index
    %1 = vector.load %arg11[%c1, %c0_1] : memref<3x32xf32, #tpu.memory_space<vmem>>, vector<1x32xf32>
    %c2 = arith.constant 2 : index
    %c0_2 = arith.constant 0 : index
    %2 = vector.load %arg11[%c2, %c0_2] : memref<3x32xf32, #tpu.memory_space<vmem>>, vector<1x32xf32>
    %c0_3 = arith.constant 0 : index
    %c0_4 = arith.constant 0 : index
    %3 = vector.load %arg1[%c0_3, %c0_4] : memref<8x32xf32, #tpu.memory_space<vmem>>, vector<8x32xf32>
    %c0_5 = arith.constant 0 : index
    %c0_6 = arith.constant 0 : index
    %4 = vector.load %arg2[%c0_5, %c0_6] : memref<8x32xf32, #tpu.memory_space<vmem>>, vector<8x32xf32>
    %5 = tpu.concatenate %3, %4 in 0 : vector<8x32xf32>, vector<8x32xf32> -> vector<16x32xf32>
    %c0_7 = arith.constant 0 : index
    %c0_8 = arith.constant 0 : index
    %6 = vector.load %arg5[%c0_7, %c0_8] : memref<32x32xf32, #tpu.memory_space<vmem>>, vector<32x32xf32>
    %cst = arith.constant dense<0.000000e+00> : vector<16x32xf32>
    %7 = tpu.matmul %5, %6, %cst {dimension_numbers = #tpu.dot_dimension_numbers<[1], [0], [0], [1], [0, 0, 1, 1], [], []>} : vector<16x32xf32>, vector<32x32xf32>, vector<16x32xf32> -> vector<16x32xf32>
    %8 = vector.broadcast %0 : vector<1x32xf32> to vector<16x32xf32>
    %9 = arith.addf %7, %8 : vector<16x32xf32>
    %cst_9 = arith.constant 0.000000e+00 : f32
    %10 = vector.broadcast %cst_9 : f32 to vector<16x32xf32>
    %11 = arith.maximumf %9, %10 : vector<16x32xf32>
    %c0_10 = arith.constant 0 : index
    %c0_11 = arith.constant 0 : index
    %12 = vector.load %arg6[%c0_10, %c0_11] : memref<32x128xf32, #tpu.memory_space<vmem>>, vector<32x128xf32>
    %cst_12 = arith.constant dense<0.000000e+00> : vector<16x128xf32>
    %13 = tpu.matmul %11, %12, %cst_12 {dimension_numbers = #tpu.dot_dimension_numbers<[1], [0], [0], [1], [0, 0, 1, 1], [], []>} : vector<16x32xf32>, vector<32x128xf32>, vector<16x128xf32> -> vector<16x128xf32>
    %14 = vector.extract_strided_slice %13 {offsets = [0, 0], sizes = [8, 128], strides = [1, 1]} : vector<16x128xf32> to vector<8x128xf32>
    %15 = vector.extract_strided_slice %13 {offsets = [8, 0], sizes = [8, 128], strides = [1, 1]} : vector<16x128xf32> to vector<8x128xf32>
    %c0_13 = arith.constant 0 : index
    %c0_14 = arith.constant 0 : index
    %16 = vector.load %arg4[%c0_13, %c0_14] : memref<8x32xf32, #tpu.memory_space<vmem>>, vector<8x32xf32>
    %c0_15 = arith.constant 0 : index
    %c0_16 = arith.constant 0 : index
    %17 = vector.load %arg7[%c0_15, %c0_16] : memref<32x32xf32, #tpu.memory_space<vmem>>, vector<32x32xf32>
    %cst_17 = arith.constant dense<0.000000e+00> : vector<8x32xf32>
    %18 = tpu.matmul %16, %17, %cst_17 {dimension_numbers = #tpu.dot_dimension_numbers<[1], [0], [0], [1], [0, 0, 1, 1], [], []>} : vector<8x32xf32>, vector<32x32xf32>, vector<8x32xf32> -> vector<8x32xf32>
    %19 = vector.broadcast %1 : vector<1x32xf32> to vector<8x32xf32>
    %20 = arith.addf %18, %19 : vector<8x32xf32>
    %cst_18 = arith.constant 0.000000e+00 : f32
    %21 = vector.broadcast %cst_18 : f32 to vector<8x32xf32>
    %22 = arith.maximumf %20, %21 : vector<8x32xf32>
    %c0_19 = arith.constant 0 : index
    %c0_20 = arith.constant 0 : index
    %23 = vector.load %arg8[%c0_19, %c0_20] : memref<32x32xf32, #tpu.memory_space<vmem>>, vector<32x32xf32>
    %cst_21 = arith.constant dense<0.000000e+00> : vector<8x32xf32>
    %24 = tpu.matmul %22, %23, %cst_21 {dimension_numbers = #tpu.dot_dimension_numbers<[1], [0], [0], [1], [0, 0, 1, 1], [], []>} : vector<8x32xf32>, vector<32x32xf32>, vector<8x32xf32> -> vector<8x32xf32>
    %c0_22 = arith.constant 0 : index
    %c0_23 = arith.constant 0 : index
    %25 = vector.load %arg3[%c0_22, %c0_23] : memref<8x8xf32, #tpu.memory_space<vmem>>, vector<8x8xf32>
    %c0_24 = arith.constant 0 : index
    %c0_25 = arith.constant 0 : index
    %26 = vector.load %arg9[%c0_24, %c0_25] : memref<8x32xf32, #tpu.memory_space<vmem>>, vector<8x32xf32>
    %cst_26 = arith.constant dense<0.000000e+00> : vector<8x32xf32>
    %27 = tpu.matmul %25, %26, %cst_26 {dimension_numbers = #tpu.dot_dimension_numbers<[1], [0], [0], [1], [0, 0, 1, 1], [], []>} : vector<8x8xf32>, vector<8x32xf32>, vector<8x32xf32> -> vector<8x32xf32>
    %28 = arith.addf %24, %27 : vector<8x32xf32>
    %29 = vector.broadcast %2 : vector<1x32xf32> to vector<8x32xf32>
    %30 = arith.addf %28, %29 : vector<8x32xf32>
    %cst_27 = arith.constant 0.000000e+00 : f32
    %31 = vector.broadcast %cst_27 : f32 to vector<8x32xf32>
    %32 = arith.maximumf %30, %31 : vector<8x32xf32>
    %c0_28 = arith.constant 0 : index
    %c0_29 = arith.constant 0 : index
    %33 = vector.load %arg10[%c0_28, %c0_29] : memref<32x128xf32, #tpu.memory_space<vmem>>, vector<32x128xf32>
    %cst_30 = arith.constant dense<0.000000e+00> : vector<8x128xf32>
    %34 = tpu.matmul %32, %33, %cst_30 {dimension_numbers = #tpu.dot_dimension_numbers<[1], [0], [0], [1], [0, 0, 1, 1], [], []>} : vector<8x32xf32>, vector<32x128xf32>, vector<8x128xf32> -> vector<8x128xf32>
    %35 = tpu.iota {dimensions = array<i32: 1>} : vector<8x128xi32>
    %c8_i32 = arith.constant 8 : i32
    %36 = vector.broadcast %c8_i32 : i32 to vector<8x128xi32>
    %37 = arith.cmpi slt, %35, %36 : vector<8x128xi32>
    %cst_31 = arith.constant -1.000000e+30 : f32
    %38 = vector.broadcast %cst_31 : f32 to vector<8x128xf32>
    %39 = arith.select %37, %14, %38 : vector<8x128xi1>, vector<8x128xf32>
    %cst_32 = arith.constant dense<0xFF800000> : vector<8xf32>
    %40 = vector.multi_reduction <maximumf>, %39, %cst_32 [1] : vector<8x128xf32> to vector<8xf32>
    %41 = vector.shape_cast %40 : vector<8xf32> to vector<8x1xf32>
    %42 = vector.broadcast %41 : vector<8x1xf32> to vector<8x128xf32>
    %43 = arith.subf %14, %42 : vector<8x128xf32>
    %44 = math.exp %43 : vector<8x128xf32>
    %cst_33 = arith.constant 0.000000e+00 : f32
    %45 = vector.broadcast %cst_33 : f32 to vector<8x128xf32>
    %46 = arith.select %37, %44, %45 : vector<8x128xi1>, vector<8x128xf32>
    %cst_34 = arith.constant dense<0.000000e+00> : vector<8xf32>
    %47 = vector.multi_reduction <add>, %46, %cst_34 [1] : vector<8x128xf32> to vector<8xf32>
    %48 = vector.shape_cast %47 : vector<8xf32> to vector<8x1xf32>
    %49 = vector.broadcast %48 : vector<8x1xf32> to vector<8x128xf32>
    %50 = arith.divf %46, %49 : vector<8x128xf32>
    %cst_35 = arith.constant -1.000000e+30 : f32
    %51 = vector.broadcast %cst_35 : f32 to vector<8x128xf32>
    %52 = arith.select %37, %15, %51 : vector<8x128xi1>, vector<8x128xf32>
    %cst_36 = arith.constant dense<0xFF800000> : vector<8xf32>
    %53 = vector.multi_reduction <maximumf>, %52, %cst_36 [1] : vector<8x128xf32> to vector<8xf32>
    %54 = vector.shape_cast %53 : vector<8xf32> to vector<8x1xf32>
    %55 = vector.broadcast %54 : vector<8x1xf32> to vector<8x128xf32>
    %56 = arith.subf %15, %55 : vector<8x128xf32>
    %57 = math.exp %56 : vector<8x128xf32>
    %cst_37 = arith.constant 0.000000e+00 : f32
    %58 = vector.broadcast %cst_37 : f32 to vector<8x128xf32>
    %59 = arith.select %37, %57, %58 : vector<8x128xi1>, vector<8x128xf32>
    %cst_38 = arith.constant dense<0.000000e+00> : vector<8xf32>
    %60 = vector.multi_reduction <add>, %59, %cst_38 [1] : vector<8x128xf32> to vector<8xf32>
    %61 = vector.shape_cast %60 : vector<8xf32> to vector<8x1xf32>
    %62 = vector.broadcast %61 : vector<8x1xf32> to vector<8x128xf32>
    %63 = arith.divf %59, %62 : vector<8x128xf32>
    %cst_39 = arith.constant 0.000000e+00 : f32
    %64 = vector.broadcast %cst_39 : f32 to vector<8x128xf32>
    %65 = arith.subf %64, %34 : vector<8x128xf32>
    %66 = math.exp %65 : vector<8x128xf32>
    %cst_40 = arith.constant 1.000000e+00 : f32
    %67 = vector.broadcast %cst_40 : f32 to vector<8x128xf32>
    %68 = arith.addf %67, %66 : vector<8x128xf32>
    %cst_41 = arith.constant 1.000000e+00 : f32
    %69 = vector.broadcast %cst_41 : f32 to vector<8x128xf32>
    %70 = arith.divf %69, %68 : vector<8x128xf32>
    %71 = vector.extract_strided_slice %63 {offsets = [0, 0], sizes = [8, 8], strides = [1, 1]} : vector<8x128xf32> to vector<8x8xf32>
    %72 = vector.shape_cast %71 : vector<8x8xf32> to vector<8x8x1xf32>
    %73 = vector.extract_strided_slice %70 {offsets = [0, 0], sizes = [8, 8], strides = [1, 1]} : vector<8x128xf32> to vector<8x8xf32>
    %74 = vector.shape_cast %73 : vector<8x8xf32> to vector<8x8x1xf32>
    %c0_42 = arith.constant 0 : index
    %c0_43 = arith.constant 0 : index
    %75 = vector.load %arg12[%c0_42, %c0_43] : memref<128x1024xf32, #tpu.memory_space<vmem>>, vector<128x1024xf32>
    %cst_44 = arith.constant dense<0.000000e+00> : vector<8x1024xf32>
    %76 = tpu.matmul %70, %75, %cst_44 {dimension_numbers = #tpu.dot_dimension_numbers<[1], [0], [0], [1], [0, 0, 1, 1], [], []>} : vector<8x128xf32>, vector<128x1024xf32>, vector<8x1024xf32> -> vector<8x1024xf32>
    %77 = vector.shape_cast %76 : vector<8x1024xf32> to vector<8x8x128xf32>
    %78 = vector.broadcast %72 : vector<8x8x1xf32> to vector<8x8x128xf32>
    %79 = arith.mulf %77, %78 : vector<8x8x128xf32>
    %cst_45 = arith.constant dense<0.000000e+00> : vector<8x128xf32>
    %80 = vector.multi_reduction <add>, %79, %cst_45 [1] : vector<8x8x128xf32> to vector<8x128xf32>
    %c0_46 = arith.constant 0 : index
    %c0_47 = arith.constant 0 : index
    %81 = vector.load %arg13[%c0_46, %c0_47] : memref<128x1024xf32, #tpu.memory_space<vmem>>, vector<128x1024xf32>
    %cst_48 = arith.constant dense<0.000000e+00> : vector<8x1024xf32>
    %82 = tpu.matmul %50, %81, %cst_48 {dimension_numbers = #tpu.dot_dimension_numbers<[1], [0], [0], [1], [0, 0, 1, 1], [], []>} : vector<8x128xf32>, vector<128x1024xf32>, vector<8x1024xf32> -> vector<8x1024xf32>
    %83 = vector.shape_cast %82 : vector<8x1024xf32> to vector<8x8x128xf32>
    %84 = vector.broadcast %74 : vector<8x8x1xf32> to vector<8x8x128xf32>
    %85 = arith.mulf %83, %84 : vector<8x8x128xf32>
    %cst_49 = arith.constant dense<0.000000e+00> : vector<8x128xf32>
    %86 = vector.multi_reduction <add>, %85, %cst_49 [1] : vector<8x8x128xf32> to vector<8x128xf32>
    %c0_50 = arith.constant 0 : index
    %c0_51 = arith.constant 0 : index
    %87 = vector.load %arg14[%c0_50, %c0_51] : memref<128x1024xf32, #tpu.memory_space<vmem>>, vector<128x1024xf32>
    %cst_52 = arith.constant dense<0.000000e+00> : vector<8x1024xf32>
    %88 = tpu.matmul %50, %87, %cst_52 {dimension_numbers = #tpu.dot_dimension_numbers<[1], [0], [0], [1], [0, 0, 1, 1], [], []>} : vector<8x128xf32>, vector<128x1024xf32>, vector<8x1024xf32> -> vector<8x1024xf32>
    %89 = vector.shape_cast %88 : vector<8x1024xf32> to vector<8x8x128xf32>
    %90 = vector.broadcast %72 : vector<8x8x1xf32> to vector<8x8x128xf32>
    %91 = arith.mulf %89, %90 : vector<8x8x128xf32>
    %cst_53 = arith.constant dense<0.000000e+00> : vector<8x128xf32>
    %92 = vector.multi_reduction <add>, %91, %cst_53 [1] : vector<8x8x128xf32> to vector<8x128xf32>
    %93 = arith.addf %14, %80 : vector<8x128xf32>
    %c0_54 = arith.constant 0 : index
    %c0_55 = arith.constant 0 : index
    %94 = vector.load %arg15[%c0_54, %c0_55] : memref<8x384xf32, #tpu.memory_space<vmem>>, vector<8x128xf32>
    tpu.vector_store %arg15[%c0_54, %c0_55], %93 {strides = array<i32>} : memref<8x384xf32, #tpu.memory_space<vmem>>, vector<8x128xf32>,
    %95 = arith.addf %15, %86 : vector<8x128xf32>
    %c0_56 = arith.constant 0 : index
    %c128 = arith.constant 128 : index
    %96 = vector.load %arg15[%c0_56, %c128] : memref<8x384xf32, #tpu.memory_space<vmem>>, vector<8x128xf32>
    tpu.vector_store %arg15[%c0_56, %c128], %95 {strides = array<i32>} : memref<8x384xf32, #tpu.memory_space<vmem>>, vector<8x128xf32>,
    %97 = arith.addf %34, %92 : vector<8x128xf32>
    %c0_57 = arith.constant 0 : index
    %c256 = arith.constant 256 : index
    %98 = vector.load %arg15[%c0_57, %c256] : memref<8x384xf32, #tpu.memory_space<vmem>>, vector<8x128xf32>
    tpu.vector_store %arg15[%c0_57, %c256], %97 {strides = array<i32>} : memref<8x384xf32, #tpu.memory_space<vmem>>, vector<8x128xf32>,
    return
  }
  func.func @transform_0(%arg0: i32) -> (i32, i32) {
    %c0_i32 = arith.constant 0 : i32
    %c0_i32_0 = arith.constant 0 : i32
    return %arg0, %c0_i32 : i32, i32
  }
  func.func @transform_1(%arg0: i32) -> (i32, i32) {
    %c0_i32 = arith.constant 0 : i32
    %c0_i32_0 = arith.constant 0 : i32
    return %arg0, %c0_i32 : i32, i32
  }
  func.func @transform_2(%arg0: i32) -> (i32, i32) {
    %c0_i32 = arith.constant 0 : i32
    %c0_i32_0 = arith.constant 0 : i32
    return %arg0, %c0_i32 : i32, i32
  }
  func.func @transform_3(%arg0: i32) -> (i32, i32) {
    %c0_i32 = arith.constant 0 : i32
    %c0_i32_0 = arith.constant 0 : i32
    return %arg0, %c0_i32 : i32, i32
  }
  func.func @transform_4(%arg0: i32) -> (i32, i32) {
    %c0_i32 = arith.constant 0 : i32
    %c0_i32_0 = arith.constant 0 : i32
    %c0_i32_1 = arith.constant 0 : i32
    return %c0_i32, %c0_i32_0 : i32, i32
  }
  func.func @transform_5(%arg0: i32) -> (i32, i32) {
    %c0_i32 = arith.constant 0 : i32
    %c0_i32_0 = arith.constant 0 : i32
    %c0_i32_1 = arith.constant 0 : i32
    return %c0_i32, %c0_i32_0 : i32, i32
  }
  func.func @transform_6(%arg0: i32) -> (i32, i32) {
    %c0_i32 = arith.constant 0 : i32
    %c0_i32_0 = arith.constant 0 : i32
    %c0_i32_1 = arith.constant 0 : i32
    return %c0_i32, %c0_i32_0 : i32, i32
  }
  func.func @transform_7(%arg0: i32) -> (i32, i32) {
    %c0_i32 = arith.constant 0 : i32
    %c0_i32_0 = arith.constant 0 : i32
    %c0_i32_1 = arith.constant 0 : i32
    return %c0_i32, %c0_i32_0 : i32, i32
  }
  func.func @transform_8(%arg0: i32) -> (i32, i32) {
    %c0_i32 = arith.constant 0 : i32
    %c0_i32_0 = arith.constant 0 : i32
    %c0_i32_1 = arith.constant 0 : i32
    return %c0_i32, %c0_i32_0 : i32, i32
  }
  func.func @transform_9(%arg0: i32) -> (i32, i32) {
    %c0_i32 = arith.constant 0 : i32
    %c0_i32_0 = arith.constant 0 : i32
    %c0_i32_1 = arith.constant 0 : i32
    return %c0_i32, %c0_i32_0 : i32, i32
  }
  func.func @transform_10(%arg0: i32) -> (i32, i32) {
    %c0_i32 = arith.constant 0 : i32
    %c0_i32_0 = arith.constant 0 : i32
    %c0_i32_1 = arith.constant 0 : i32
    return %c0_i32, %c0_i32_0 : i32, i32
  }
  func.func @transform_11(%arg0: i32) -> (i32, i32) {
    %c0_i32 = arith.constant 0 : i32
    %c0_i32_0 = arith.constant 0 : i32
    %c0_i32_1 = arith.constant 0 : i32
    return %c0_i32, %c0_i32_0 : i32, i32
  }
  func.func @transform_12(%arg0: i32) -> (i32, i32) {
    %c0_i32 = arith.constant 0 : i32
    %c0_i32_0 = arith.constant 0 : i32
    %c0_i32_1 = arith.constant 0 : i32
    return %c0_i32, %c0_i32_0 : i32, i32
  }
  func.func @transform_13(%arg0: i32) -> (i32, i32) {
    %c0_i32 = arith.constant 0 : i32
    %c0_i32_0 = arith.constant 0 : i32
    %c0_i32_1 = arith.constant 0 : i32
    return %c0_i32, %c0_i32_0 : i32, i32
  }
  func.func @transform_14(%arg0: i32) -> (i32, i32) {
    %c0_i32 = arith.constant 0 : i32
    %c0_i32_0 = arith.constant 0 : i32
    return %arg0, %c0_i32 : i32, i32
  }
}

</mosaic_0001>

<llo_original>
// kernel: tpu_custom_call.1
$region0: #{tpu_custom_call.1}
  #allocation0 [shape = 'u32[]', space=smem, size = 0x4, offset = 0x4, fixed_abs, tag = 'smem constant byte address 0x4 - core index']
  #allocation1 [shape = 'u32[144,128]{1,0:T(1,128)}', space=vmem, size = 0x12000, scoped, tag = 'internal scratch']
  %s0 = inlined_call_operand.hbm [shape: f32[8,32], index: 0, kind: input, shape index: {}]
  %s1 = inlined_call_operand.hbm [shape: f32[8,32], index: 1, kind: input, shape index: {}]
  %s2 = inlined_call_operand.hbm [shape: f32[8,8], index: 2, kind: input, shape index: {}]
  %s3 = inlined_call_operand.hbm [shape: f32[8,32], index: 3, kind: input, shape index: {}]
  %s4 = inlined_call_operand.hbm [shape: f32[32,32], index: 4, kind: input, shape index: {}]
  %s5 = inlined_call_operand.hbm [shape: f32[32,128], index: 5, kind: input, shape index: {}]
  %s6 = inlined_call_operand.hbm [shape: f32[32,32], index: 6, kind: input, shape index: {}]
  %s7 = inlined_call_operand.hbm [shape: f32[32,32], index: 7, kind: input, shape index: {}]
  %s8 = inlined_call_operand.hbm [shape: f32[8,32], index: 8, kind: input, shape index: {}]
  %s9 = inlined_call_operand.vmem [shape: f32[32,128], index: 9, kind: input, shape index: {}]
  %s10 = inlined_call_operand.vmem [shape: f32[3,32], index: 10, kind: input, shape index: {}]
  %s11 = inlined_call_operand.hbm [shape: f32[128,1024], index: 11, kind: input, shape index: {}]
  %s12 = inlined_call_operand.hbm [shape: f32[128,1024], index: 12, kind: input, shape index: {}]
  %s13 = inlined_call_operand.hbm [shape: f32[128,1024], index: 13, kind: input, shape index: {}]
  %s14 = inlined_call_operand.hbm [shape: f32[8,384], index: 14, kind: output, shape index: {}]
  %s15 = sld [smem:[#allocation0]]
  $region114: #{tpu_custom_call.1} parent=0
    _
  %s17 = ssub.s32 1, %s15
  %s18 = scalar_select 0, %s17, %s15
  $region1: #{tpu_custom_call.1} parent=0
    #allocation2 [shape = 'u8[4096]{0}', space=vmem, size = 0x1000, scoped, tag = 'input window, operand 0, single buffered']
    #allocation3 [shape = 's32[1]{0}', space=sflag, size = 0x4, scoped, tag = 'scoped memory for tpu_custom_call.1']
    #allocation4 [shape = 's32[1]{0}', space=sflag, size = 0x4, scoped, tag = 'scoped memory for tpu_custom_call.1']
    #allocation5 [shape = 'u8[4096]{0}', space=vmem, size = 0x1000, scoped, tag = 'input window, operand 1, single buffered']
    #allocation6 [shape = 's32[1]{0}', space=sflag, size = 0x4, scoped, tag = 'scoped memory for tpu_custom_call.1']
    #allocation7 [shape = 'u8[4096]{0}', space=vmem, size = 0x1000, scoped, tag = 'input window, operand 2, single buffered']
    #allocation8 [shape = 'u8[4096]{0}', space=vmem, size = 0x1000, scoped, tag = 'input window, operand 3, single buffered']
    #allocation9 [shape = 's32[1]{0}', space=sflag, size = 0x4, scoped, tag = 'scoped memory for tpu_custom_call.1']
    #allocation10 [shape = 'u8[16384]{0}', space=vmem, size = 0x4000, scoped, tag = 'input window, operand 4, single buffered']
    #allocation11 [shape = 'u8[16384]{0}', space=vmem, size = 0x4000, scoped, tag = 'input window, operand 5, single buffered']
    #allocation12 [shape = 's32[1]{0}', space=sflag, size = 0x4, scoped, tag = 'scoped memory for tpu_custom_call.1']
    #allocation13 [shape = 'u8[16384]{0}', space=vmem, size = 0x4000, scoped, tag = 'input window, operand 6, single buffered']
    #allocation14 [shape = 'u8[16384]{0}', space=vmem, size = 0x4000, scoped, tag = 'input window, operand 7, single buffered']
    #allocation15 [shape = 's32[1]{0}', space=sflag, size = 0x4, scoped, tag = 'scoped memory for tpu_custom_call.1']
    #allocation16 [shape = 'u8[4096]{0}', space=vmem, size = 0x1000, scoped, tag = 'input window, operand 8, single buffered']
    #allocation17 [shape = 'u8[524288]{0}', space=vmem, size = 0x80000, scoped, tag = 'input window, operand 11, single buffered']
    #allocation18 [shape = 's32[1]{0}', space=sflag, size = 0x4, scoped, tag = 'scoped memory for tpu_custom_call.1']
    #allocation19 [shape = 'u8[524288]{0}', space=vmem, size = 0x80000, scoped, tag = 'input window, operand 12, single buffered']
    #allocation20 [shape = 'u8[524288]{0}', space=vmem, size = 0x80000, scoped, tag = 'input window, operand 13, single buffered']
    #allocation21 [shape = 's32[1]{0}', space=sflag, size = 0x4, scoped, tag = 'scoped memory for tpu_custom_call.1']
    #allocation22 [shape = 'u8[12288]{0}', space=vmem, size = 0x3000, scoped, tag = 'output window, operand 0, single buffered']
    %19 = vsyncpa [#allocation3], 0
    %20 = vsyncpa [#allocation6], 0
    %21 = vsyncpa [#allocation9], 0
    %22 = vsyncpa [#allocation12], 0
    %23 = vsyncpa [#allocation15], 0
    %24 = vsyncpa [#allocation18], 0
    %25 = vsyncpa [#allocation21], 0
    %26 = vsyncpa [#allocation4], 0
    // Predicated region
    $region2: #{tpu_custom_call.1} parent=1 // pred_check
      _
    $region3: #{tpu_custom_call.1} parent=1 // pred_check_branch
      %28 = sbr.rel (0) target = $region5
    $region4: #{tpu_custom_call.1} parent=1 // pred_region
      %s30 = ssub.s32 128, 128
      %31 = vsyncadd [#allocation3], %s30
      %s33 = sshll.u32 [#allocation2], 4
      %s34 = int_to_ptr.vmem [resolvable:$true] %s33
      %36 = dma.hbm_to_vmem [thread:$0]  %s0, 128, %s34, [#allocation3]
    $region5: #{tpu_custom_call.1} parent=1 // pred_fallthru
      _
    // Predicated region
    $region6: #{tpu_custom_call.1} parent=1 // pred_check
      _
    $region7: #{tpu_custom_call.1} parent=1 // pred_check_branch
      %38 = sbr.rel (0) target = $region9
    $region8: #{tpu_custom_call.1} parent=1 // pred_region
      %s40 = ssub.s32 128, 128
      %41 = vsyncadd [#allocation6], %s40
      %s43 = sshll.u32 [#allocation5], 4
      %s44 = int_to_ptr.vmem [resolvable:$true] %s43
      %46 = dma.hbm_to_vmem [thread:$0]  %s1, 128, %s44, [#allocation6]
    $region9: #{tpu_custom_call.1} parent=1 // pred_fallthru
      _
    // Predicated region
    $region10: #{tpu_custom_call.1} parent=1 // pred_check
      _
    $region11: #{tpu_custom_call.1} parent=1 // pred_check_branch
      %48 = sbr.rel (0) target = $region13
    $region12: #{tpu_custom_call.1} parent=1 // pred_region
      %s50 = ssub.s32 128, 128
      %51 = vsyncadd [#allocation6], %s50
      %s53 = sshll.u32 [#allocation7], 4
      %s54 = int_to_ptr.vmem [resolvable:$true] %s53
      %56 = dma.hbm_to_vmem [thread:$0]  %s2, 128, %s54, [#allocation6]
    $region13: #{tpu_custom_call.1} parent=1 // pred_fallthru
      _
    // Predicated region
    $region14: #{tpu_custom_call.1} parent=1 // pred_check
      _
    $region15: #{tpu_custom_call.1} parent=1 // pred_check_branch
      %58 = sbr.rel (0) target = $region17
    $region16: #{tpu_custom_call.1} parent=1 // pred_region
      %s60 = ssub.s32 128, 128
      %61 = vsyncadd [#allocation9], %s60
      %s63 = sshll.u32 [#allocation8], 4
      %s64 = int_to_ptr.vmem [resolvable:$true] %s63
      %66 = dma.hbm_to_vmem [thread:$0]  %s3, 128, %s64, [#allocation9]
    $region17: #{tpu_custom_call.1} parent=1 // pred_fallthru
      _
    // Predicated region
    $region18: #{tpu_custom_call.1} parent=1 // pred_check
      _
    $region19: #{tpu_custom_call.1} parent=1 // pred_check_branch
      %68 = sbr.rel (0) target = $region21
    $region20: #{tpu_custom_call.1} parent=1 // pred_region
      %s70 = ssub.s32 512, 512
      %71 = vsyncadd [#allocation9], %s70
      %s72 = sshll.u32 [#allocation10], 4
      %s73 = int_to_ptr.vmem [resolvable:$true] %s72
      %78 = dma.hbm_to_vmem [thread:$0]  %s4, 512, %s73, [#allocation9], 128, 128, 8
    $region21: #{tpu_custom_call.1} parent=1 // pred_fallthru
      _
    // Predicated region
    $region22: #{tpu_custom_call.1} parent=1 // pred_check
      _
    $region23: #{tpu_custom_call.1} parent=1 // pred_check_branch
      %80 = sbr.rel (0) target = $region25
    $region24: #{tpu_custom_call.1} parent=1 // pred_region
      %s82 = ssub.s32 512, 512
      %83 = vsyncadd [#allocation12], %s82
      %s84 = sshll.u32 [#allocation11], 4
      %s85 = int_to_ptr.vmem [resolvable:$true] %s84
      %90 = dma.hbm_to_vmem [thread:$0]  %s5, 512, %s85, [#allocation12], 128, 128, 8
    $region25: #{tpu_custom_call.1} parent=1 // pred_fallthru
      _
    // Predicated region
    $region26: #{tpu_custom_call.1} parent=1 // pred_check
      _
    $region27: #{tpu_custom_call.1} parent=1 // pred_check_branch
      %92 = sbr.rel (0) target = $region29
    $region28: #{tpu_custom_call.1} parent=1 // pred_region
      %s94 = ssub.s32 512, 512
      %95 = vsyncadd [#allocation12], %s94
      %s96 = sshll.u32 [#allocation13], 4
      %s97 = int_to_ptr.vmem [resolvable:$true] %s96
      %102 = dma.hbm_to_vmem [thread:$0]  %s6, 512, %s97, [#allocation12], 128, 128, 8
    $region29: #{tpu_custom_call.1} parent=1 // pred_fallthru
      _
    // Predicated region
    $region30: #{tpu_custom_call.1} parent=1 // pred_check
      _
    $region31: #{tpu_custom_call.1} parent=1 // pred_check_branch
      %104 = sbr.rel (0) target = $region33
    $region32: #{tpu_custom_call.1} parent=1 // pred_region
      %s106 = ssub.s32 512, 512
      %107 = vsyncadd [#allocation15], %s106
      %s108 = sshll.u32 [#allocation14], 4
      %s109 = int_to_ptr.vmem [resolvable:$true] %s108
      %114 = dma.hbm_to_vmem [thread:$0]  %s7, 512, %s109, [#allocation15], 128, 128, 8
    $region33: #{tpu_custom_call.1} parent=1 // pred_fallthru
      _
    // Predicated region
    $region34: #{tpu_custom_call.1} parent=1 // pred_check
      _
    $region35: #{tpu_custom_call.1} parent=1 // pred_check_branch
      %116 = sbr.rel (0) target = $region37
    $region36: #{tpu_custom_call.1} parent=1 // pred_region
      %s118 = ssub.s32 128, 128
      %119 = vsyncadd [#allocation15], %s118
      %s121 = sshll.u32 [#allocation16], 4
      %s122 = int_to_ptr.vmem [resolvable:$true] %s121
      %124 = dma.hbm_to_vmem [thread:$0]  %s8, 128, %s122, [#allocation15]
    $region37: #{tpu_custom_call.1} parent=1 // pred_fallthru
      _
    // Predicated region
    $region38: #{tpu_custom_call.1} parent=1 // pred_check
      _
    $region39: #{tpu_custom_call.1} parent=1 // pred_check_branch
      %126 = sbr.rel (0) target = $region41
    $region40: #{tpu_custom_call.1} parent=1 // pred_region
      _
    $region41: #{tpu_custom_call.1} parent=1 // pred_fallthru
      _
    // Predicated region
    $region42: #{tpu_custom_call.1} parent=1 // pred_check
      _
    $region43: #{tpu_custom_call.1} parent=1 // pred_check_branch
      %128 = sbr.rel (0) target = $region45
    $region44: #{tpu_custom_call.1} parent=1 // pred_region
      _
    $region45: #{tpu_custom_call.1} parent=1 // pred_fallthru
      _
    // Predicated region
    $region46: #{tpu_custom_call.1} parent=1 // pred_check
      _
    $region47: #{tpu_custom_call.1} parent=1 // pred_check_branch
      %130 = sbr.rel (0) target = $region49
    $region48: #{tpu_custom_call.1} parent=1 // pred_region
      %s132 = ssub.s32 16384, 16384
      %133 = vsyncadd [#allocation18], %s132
      %s134 = sshll.u32 [#allocation17], 4
      %s135 = int_to_ptr.vmem [resolvable:$true] %s134
      %140 = dma.hbm_to_vmem [thread:$0]  %s11, 16384, %s135, [#allocation18], 1024, 1024, 64
    $region49: #{tpu_custom_call.1} parent=1 // pred_fallthru
      _
    // Predicated region
    $region50: #{tpu_custom_call.1} parent=1 // pred_check
      _
    $region51: #{tpu_custom_call.1} parent=1 // pred_check_branch
      %142 = sbr.rel (0) target = $region53
    $region52: #{tpu_custom_call.1} parent=1 // pred_region
      %s144 = ssub.s32 16384, 16384
      %145 = vsyncadd [#allocation18], %s144
      %s146 = sshll.u32 [#allocation19], 4
      %s147 = int_to_ptr.vmem [resolvable:$true] %s146
      %152 = dma.hbm_to_vmem [thread:$0]  %s12, 16384, %s147, [#allocation18], 1024, 1024, 64
    $region53: #{tpu_custom_call.1} parent=1 // pred_fallthru
      _
    // Predicated region
    $region54: #{tpu_custom_call.1} parent=1 // pred_check
      _
    $region55: #{tpu_custom_call.1} parent=1 // pred_check_branch
      %154 = sbr.rel (0) target = $region57
    $region56: #{tpu_custom_call.1} parent=1 // pred_region
      %s156 = ssub.s32 16384, 16384
      %157 = vsyncadd [#allocation21], %s156
      %s158 = sshll.u32 [#allocation20], 4
      %s159 = int_to_ptr.vmem [resolvable:$true] %s158
      %164 = dma.hbm_to_vmem [thread:$0]  %s13, 16384, %s159, [#allocation21], 1024, 1024, 64
    $region57: #{tpu_custom_call.1} parent=1 // pred_fallthru
      _
    // Predicated region
    $region58: #{tpu_custom_call.1} parent=1 // pred_check
      _
    $region59: #{tpu_custom_call.1} parent=1 // pred_check_branch
      %166 = sbr.rel (0) target = $region61
    $region60: #{tpu_custom_call.1} parent=1 // pred_region
      %167 = dma.done [#allocation3], 128
    $region61: #{tpu_custom_call.1} parent=1 // pred_fallthru
      _
    // Predicated region
    $region62: #{tpu_custom_call.1} parent=1 // pred_check
      _
    $region63: #{tpu_custom_call.1} parent=1 // pred_check_branch
      %169 = sbr.rel (0) target = $region65
    $region64: #{tpu_custom_call.1} parent=1 // pred_region
      %170 = dma.done [#allocation6], 128
    $region65: #{tpu_custom_call.1} parent=1 // pred_fallthru
      _
    // Predicated region
    $region66: #{tpu_custom_call.1} parent=1 // pred_check
      _
    $region67: #{tpu_custom_call.1} parent=1 // pred_check_branch
      %172 = sbr.rel (0) target = $region69
    $region68: #{tpu_custom_call.1} parent=1 // pred_region
      %173 = dma.done [#allocation6], 128
    $region69: #{tpu_custom_call.1} parent=1 // pred_fallthru
      _
    // Predicated region
    $region70: #{tpu_custom_call.1} parent=1 // pred_check
      _
    $region71: #{tpu_custom_call.1} parent=1 // pred_check_branch
      %175 = sbr.rel (0) target = $region73
    $region72: #{tpu_custom_call.1} parent=1 // pred_region
      %176 = dma.done [#allocation9], 128
    $region73: #{tpu_custom_call.1} parent=1 // pred_fallthru
      _
    // Predicated region
    $region74: #{tpu_custom_call.1} parent=1 // pred_check
      _
    $region75: #{tpu_custom_call.1} parent=1 // pred_check_branch
      %178 = sbr.rel (0) target = $region77
    $region76: #{tpu_custom_call.1} parent=1 // pred_region
      %179 = dma.done [#allocation9], 512
    $region77: #{tpu_custom_call.1} parent=1 // pred_fallthru
      _
    // Predicated region
    $region78: #{tpu_custom_call.1} parent=1 // pred_check
      _
    $region79: #{tpu_custom_call.1} parent=1 // pred_check_branch
      %181 = sbr.rel (0) target = $region81
    $region80: #{tpu_custom_call.1} parent=1 // pred_region
      %182 = dma.done [#allocation12], 512
    $region81: #{tpu_custom_call.1} parent=1 // pred_fallthru
      _
    // Predicated region
    $region82: #{tpu_custom_call.1} parent=1 // pred_check
      _
    $region83: #{tpu_custom_call.1} parent=1 // pred_check_branch
      %184 = sbr.rel (0) target = $region85
    $region84: #{tpu_custom_call.1} parent=1 // pred_region
      %185 = dma.done [#allocation12], 512
    $region85: #{tpu_custom_call.1} parent=1 // pred_fallthru
      _
    // Predicated region
    $region86: #{tpu_custom_call.1} parent=1 // pred_check
      _
    $region87: #{tpu_custom_call.1} parent=1 // pred_check_branch
      %187 = sbr.rel (0) target = $region89
    $region88: #{tpu_custom_call.1} parent=1 // pred_region
      %188 = dma.done [#allocation15], 512
    $region89: #{tpu_custom_call.1} parent=1 // pred_fallthru
      _
    // Predicated region
    $region90: #{tpu_custom_call.1} parent=1 // pred_check
      _
    $region91: #{tpu_custom_call.1} parent=1 // pred_check_branch
      %190 = sbr.rel (0) target = $region93
    $region92: #{tpu_custom_call.1} parent=1 // pred_region
      %191 = dma.done [#allocation15], 128
    $region93: #{tpu_custom_call.1} parent=1 // pred_fallthru
      _
    // Predicated region
    $region94: #{tpu_custom_call.1} parent=1 // pred_check
      _
    $region95: #{tpu_custom_call.1} parent=1 // pred_check_branch
      %193 = sbr.rel (0) target = $region97
    $region96: #{tpu_custom_call.1} parent=1 // pred_region
      %194 = dma.done [#allocation18], 16384
    $region97: #{tpu_custom_call.1} parent=1 // pred_fallthru
      _
    // Predicated region
    $region98: #{tpu_custom_call.1} parent=1 // pred_check
      _
    $region99: #{tpu_custom_call.1} parent=1 // pred_check_branch
      %196 = sbr.rel (0) target = $region101
    $region100: #{tpu_custom_call.1} parent=1 // pred_region
      %197 = dma.done [#allocation18], 16384
    $region101: #{tpu_custom_call.1} parent=1 // pred_fallthru
      _
    // Predicated region
    $region102: #{tpu_custom_call.1} parent=1 // pred_check
      _
    $region103: #{tpu_custom_call.1} parent=1 // pred_check_branch
      %199 = sbr.rel (0) target = $region105
    $region104: #{tpu_custom_call.1} parent=1 // pred_region
      %200 = dma.done [#allocation21], 16384
    $region105: #{tpu_custom_call.1} parent=1 // pred_fallthru
      _
    %v201 = vld [vmem:[%s10] sm:$0x1]
    %v202 = vld [vmem:[%s10 + $0x1] sm:$0x1]
    %v203 = vld [vmem:[%s10 + $0x2] sm:$0x1]
    %v204 = vld [vmem:[#allocation2] sm:$0xff]
    %v205 = vld [vmem:[#allocation5] sm:$0xff]
    %v206 = vld [vmem:[#allocation10] sm:$0xff]
    %v207 = vld [vmem:[#allocation10 + $0x8] sm:$0xff]
    %v208 = vld [vmem:[#allocation10 + $0x10] sm:$0xff]
    %v209 = vld [vmem:[#allocation10 + $0x18] sm:$0xff]
    %v210 = vlaneseq
    %v211 = vshrl.u32 %v210, 7
    %v212 = vsub.s32 0, %v211
    %v213 = vrot.slane %v201, %v212
    %vm214 = vcmask 261120
    %v216 = vsel %vm214, %v204, 0
    %v219 = vsel %vm214, %v205, 0
    %221 = vmatprep.subr.mxu0 0.0
    %222 = vmatpush1.msra.mxu0 %v206
    %223 = vmatprep.subr.mxu0 0.0
    %224 = vmatpush1.msra.mxu0 %v207
    %225 = vmatprep.subr.mxu0 0.0
    %226 = vmatpush1.msra.mxu0 %v208
    %227 = vmatprep.subr.mxu0 0.0
    %228 = vmatpush1.msra.mxu0 %v209
    %229 = vmatprep.subr.mxu0 0.0
    %230 = vmatpush1.msra.mxu0 0.0
    %231 = vmatprep.subr.mxu0 0.0
    %232 = vmatpush1.msra.mxu0 0.0
    %233 = vmatprep.subr.mxu0 0.0
    %234 = vmatpush1.msra.mxu0 0.0
    %235 = vmatprep.subr.mxu0 0.0
    %236 = vmatpush1.msra.mxu0 0.0
    %237 = vmatprep.subr.mxu0 0.0
    %238 = vmatpush1.msra.mxu0 0.0
    %239 = vmatprep.subr.mxu0 0.0
    %240 = vmatpush1.msra.mxu0 0.0
    %241 = vmatprep.subr.mxu0 0.0
    %242 = vmatpush1.msra.mxu0 0.0
    %243 = vmatprep.subr.mxu0 0.0
    %244 = vmatpush1.msra.mxu0 0.0
    %245 = vmatprep.subr.mxu0 0.0
    %246 = vmatpush1.msra.mxu0 0.0
    %247 = vmatprep.subr.mxu0 0.0
    %248 = vmatpush1.msra.mxu0 0.0
    %249 = vmatprep.subr.mxu0 0.0
    %250 = vmatpush1.msra.mxu0 0.0
    %251 = vmatprep.subr.mxu0 0.0
    %252 = vmatpush1.msra.mxu0 0.0
    %253 = vmatprep.subr.mxu0 0.0
    %254 = vmatpush1.msra.mxu0 0.0
    %255 = vmatprep.subr.mxu0 0.0
    %256 = vmatpush1.msra.mxu0 0.0
    %257 = vmatprep.subr.mxu0 0.0
    %258 = vmatpush1.msra.mxu0 0.0
    %259 = vmatprep.subr.mxu0 0.0
    %260 = vmatpush1.msra.mxu0 0.0
    %261 = vmatprep.subr.mxu0 0.0
    %262 = vmatpush1.msra.mxu0 0.0
    %263 = vmatprep.subr.mxu0 0.0
    %264 = vmatpush1.msra.mxu0 0.0
    %265 = vmatprep.subr.mxu0 0.0
    %266 = vmatpush1.msra.mxu0 0.0
    %267 = vmatprep.subr.mxu0 0.0
    %268 = vmatpush1.msra.mxu0 0.0
    %269 = vmatprep.subr.mxu0 0.0
    %270 = vmatpush1.msra.mxu0 0.0
    %271 = vmatprep.subr.mxu0 0.0
    %272 = vmatpush1.msra.mxu0 0.0
    %273 = vmatprep.subr.mxu0 0.0
    %274 = vmatpush1.msra.mxu0 0.0
    %275 = vmatprep.subr.mxu0 0.0
    %276 = vmatpush1.msra.mxu0 0.0
    %277 = vmatprep.subr.mxu0 0.0
    %278 = vmatpush1.msra.mxu0 0.0
    %279 = vmatprep.subr.mxu0 0.0
    %280 = vmatpush1.msra.mxu0 0.0
    %281 = vmatprep.subr.mxu0 0.0
    %282 = vmatpush1.msra.mxu0 0.0
    %283 = vmatprep.subr.mxu0 0.0
    %284 = vmatpush1.msra.mxu0 0.0
    %285 = vmatprep.mubr.f32.mxu0 0.0
    %286 = vmatmul.mubr.f32.gmra.mrb[0].mxu0 %v216
    %v287 = vpop.f32.mrb[0].mxu0
    %v288 = vadd.f32 %v213, %v287
    %v289 = vpop.f32.mrb[0].mxu0
    %290 = vmatprep.mubr.f32.mxu0 0.0
    %291 = vmatmul.mubr.f32.gmra.mrb[0].mxu0 %v219
    %v292 = vpop.f32.mrb[0].mxu0
    %v293 = vadd.f32 %v213, %v292
    %v294 = vpop.f32.mrb[0].mxu0
    %295 = vdwg.mxu0
    %v296 = vmax.f32 %v288, 0.0
    %v297 = vmax.f32 %v293, 0.0
    %v298 = vld [vmem:[#allocation11] sm:$0xff]
    %v299 = vld [vmem:[#allocation11 + $0x8] sm:$0xff]
    %v300 = vld [vmem:[#allocation11 + $0x10] sm:$0xff]
    %v301 = vld [vmem:[#allocation11 + $0x18] sm:$0xff]
    %v303 = vsel %vm214, %v296, 0
    %v306 = vsel %vm214, %v297, 0
    %308 = vmatprep.subr.mxu0 0.0
    %309 = vmatpush1.msra.mxu0 %v298
    %310 = vmatprep.subr.mxu0 0.0
    %311 = vmatpush1.msra.mxu0 %v299
    %312 = vmatprep.subr.mxu0 0.0
    %313 = vmatpush1.msra.mxu0 %v300
    %314 = vmatprep.subr.mxu0 0.0
    %315 = vmatpush1.msra.mxu0 %v301
    %316 = vmatprep.subr.mxu0 0.0
    %317 = vmatpush1.msra.mxu0 0.0
    %318 = vmatprep.subr.mxu0 0.0
    %319 = vmatpush1.msra.mxu0 0.0
    %320 = vmatprep.subr.mxu0 0.0
    %321 = vmatpush1.msra.mxu0 0.0
    %322 = vmatprep.subr.mxu0 0.0
    %323 = vmatpush1.msra.mxu0 0.0
    %324 = vmatprep.subr.mxu0 0.0
    %325 = vmatpush1.msra.mxu0 0.0
    %326 = vmatprep.subr.mxu0 0.0
    %327 = vmatpush1.msra.mxu0 0.0
    %328 = vmatprep.subr.mxu0 0.0
    %329 = vmatpush1.msra.mxu0 0.0
    %330 = vmatprep.subr.mxu0 0.0
    %331 = vmatpush1.msra.mxu0 0.0
    %332 = vmatprep.subr.mxu0 0.0
    %333 = vmatpush1.msra.mxu0 0.0
    %334 = vmatprep.subr.mxu0 0.0
    %335 = vmatpush1.msra.mxu0 0.0
    %336 = vmatprep.subr.mxu0 0.0
    %337 = vmatpush1.msra.mxu0 0.0
    %338 = vmatprep.subr.mxu0 0.0
    %339 = vmatpush1.msra.mxu0 0.0
    %340 = vmatprep.subr.mxu0 0.0
    %341 = vmatpush1.msra.mxu0 0.0
    %342 = vmatprep.subr.mxu0 0.0
    %343 = vmatpush1.msra.mxu0 0.0
    %344 = vmatprep.subr.mxu0 0.0
    %345 = vmatpush1.msra.mxu0 0.0
    %346 = vmatprep.subr.mxu0 0.0
    %347 = vmatpush1.msra.mxu0 0.0
    %348 = vmatprep.subr.mxu0 0.0
    %349 = vmatpush1.msra.mxu0 0.0
    %350 = vmatprep.subr.mxu0 0.0
    %351 = vmatpush1.msra.mxu0 0.0
    %352 = vmatprep.subr.mxu0 0.0
    %353 = vmatpush1.msra.mxu0 0.0
    %354 = vmatprep.subr.mxu0 0.0
    %355 = vmatpush1.msra.mxu0 0.0
    %356 = vmatprep.subr.mxu0 0.0
    %357 = vmatpush1.msra.mxu0 0.0
    %358 = vmatprep.subr.mxu0 0.0
    %359 = vmatpush1.msra.mxu0 0.0
    %360 = vmatprep.subr.mxu0 0.0
    %361 = vmatpush1.msra.mxu0 0.0
    %362 = vmatprep.subr.mxu0 0.0
    %363 = vmatpush1.msra.mxu0 0.0
    %364 = vmatprep.subr.mxu0 0.0
    %365 = vmatpush1.msra.mxu0 0.0
    %366 = vmatprep.subr.mxu0 0.0
    %367 = vmatpush1.msra.mxu0 0.0
    %368 = vmatprep.subr.mxu0 0.0
    %369 = vmatpush1.msra.mxu0 0.0
    %370 = vmatprep.subr.mxu0 0.0
    %371 = vmatpush1.msra.mxu0 0.0
    %372 = vmatprep.mubr.f32.mxu0 0.0
    %373 = vmatmul.mubr.f32.gmra.mrb[0].mxu0 %v303
    %v374 = vpop.f32.mrb[0].mxu0
    %v375 = vadd.f32 0.0, %v374
    %v376 = vpop.f32.mrb[0].mxu0
    %377 = vmatprep.mubr.f32.mxu0 0.0
    %378 = vmatmul.mubr.f32.gmra.mrb[0].mxu0 %v306
    %v379 = vpop.f32.mrb[0].mxu0
    %v380 = vadd.f32 0.0, %v379
    %v381 = vpop.f32.mrb[0].mxu0
    %382 = vdwg.mxu0
    %v383 = vld [vmem:[#allocation8] sm:$0xff]
    %v384 = vld [vmem:[#allocation13] sm:$0xff]
    %v385 = vld [vmem:[#allocation13 + $0x8] sm:$0xff]
    %v386 = vld [vmem:[#allocation13 + $0x10] sm:$0xff]
    %v387 = vld [vmem:[#allocation13 + $0x18] sm:$0xff]
    %v388 = vlaneseq
    %v389 = vshrl.u32 %v388, 7
    %v390 = vsub.s32 0, %v389
    %v391 = vrot.slane %v202, %v390
    %v393 = vsel %vm214, %v383, 0
    %395 = vmatprep.subr.mxu0 0.0
    %396 = vmatpush1.msra.mxu0 %v384
    %397 = vmatprep.subr.mxu0 0.0
    %398 = vmatpush1.msra.mxu0 %v385
    %399 = vmatprep.subr.mxu0 0.0
    %400 = vmatpush1.msra.mxu0 %v386
    %401 = vmatprep.subr.mxu0 0.0
    %402 = vmatpush1.msra.mxu0 %v387
    %403 = vmatprep.subr.mxu0 0.0
    %404 = vmatpush1.msra.mxu0 0.0
    %405 = vmatprep.subr.mxu0 0.0
    %406 = vmatpush1.msra.mxu0 0.0
    %407 = vmatprep.subr.mxu0 0.0
    %408 = vmatpush1.msra.mxu0 0.0
    %409 = vmatprep.subr.mxu0 0.0
    %410 = vmatpush1.msra.mxu0 0.0
    %411 = vmatprep.subr.mxu0 0.0
    %412 = vmatpush1.msra.mxu0 0.0
    %413 = vmatprep.subr.mxu0 0.0
    %414 = vmatpush1.msra.mxu0 0.0
    %415 = vmatprep.subr.mxu0 0.0
    %416 = vmatpush1.msra.mxu0 0.0
    %417 = vmatprep.subr.mxu0 0.0
    %418 = vmatpush1.msra.mxu0 0.0
    %419 = vmatprep.subr.mxu0 0.0
    %420 = vmatpush1.msra.mxu0 0.0
    %421 = vmatprep.subr.mxu0 0.0
    %422 = vmatpush1.msra.mxu0 0.0
    %423 = vmatprep.subr.mxu0 0.0
    %424 = vmatpush1.msra.mxu0 0.0
    %425 = vmatprep.subr.mxu0 0.0
    %426 = vmatpush1.msra.mxu0 0.0
    %427 = vmatprep.subr.mxu0 0.0
    %428 = vmatpush1.msra.mxu0 0.0
    %429 = vmatprep.subr.mxu0 0.0
    %430 = vmatpush1.msra.mxu0 0.0
    %431 = vmatprep.subr.mxu0 0.0
    %432 = vmatpush1.msra.mxu0 0.0
    %433 = vmatprep.subr.mxu0 0.0
    %434 = vmatpush1.msra.mxu0 0.0
    %435 = vmatprep.subr.mxu0 0.0
    %436 = vmatpush1.msra.mxu0 0.0
    %437 = vmatprep.subr.mxu0 0.0
    %438 = vmatpush1.msra.mxu0 0.0
    %439 = vmatprep.subr.mxu0 0.0
    %440 = vmatpush1.msra.mxu0 0.0
    %441 = vmatprep.subr.mxu0 0.0
    %442 = vmatpush1.msra.mxu0 0.0
    %443 = vmatprep.subr.mxu0 0.0
    %444 = vmatpush1.msra.mxu0 0.0
    %445 = vmatprep.subr.mxu0 0.0
    %446 = vmatpush1.msra.mxu0 0.0
    %447 = vmatprep.subr.mxu0 0.0
    %448 = vmatpush1.msra.mxu0 0.0
    %449 = vmatprep.subr.mxu0 0.0
    %450 = vmatpush1.msra.mxu0 0.0
    %451 = vmatprep.subr.mxu0 0.0
    %452 = vmatpush1.msra.mxu0 0.0
    %453 = vmatprep.subr.mxu0 0.0
    %454 = vmatpush1.msra.mxu0 0.0
    %455 = vmatprep.subr.mxu0 0.0
    %456 = vmatpush1.msra.mxu0 0.0
    %457 = vmatprep.subr.mxu0 0.0
    %458 = vmatpush1.msra.mxu0 0.0
    %459 = vmatprep.mubr.f32.mxu0 0.0
    %460 = vmatmul.mubr.f32.gmra.mrb[0].mxu0 %v393
    %v461 = vpop.f32.mrb[0].mxu0
    %v462 = vadd.f32 %v391, %v461
    %v463 = vpop.f32.mrb[0].mxu0
    %464 = vdwg.mxu0
    %v465 = vmax.f32 %v462, 0.0
    %v466 = vld [vmem:[#allocation14] sm:$0xff]
    %v467 = vld [vmem:[#allocation14 + $0x8] sm:$0xff]
    %v468 = vld [vmem:[#allocation14 + $0x10] sm:$0xff]
    %v469 = vld [vmem:[#allocation14 + $0x18] sm:$0xff]
    %v470 = vld [vmem:[#allocation7] sm:$0xff]
    %v471 = vld [vmem:[#allocation16] sm:$0xff]
    %vm472 = vcmask 64512
    %v474 = vsel %vm472, %v470, 0
    %476 = vmatprep.subr.mxu0 0.0
    %477 = vmatpush1.msra.mxu0 %v471
    %478 = vmatprep.subr.mxu0 0.0
    %479 = vmatpush1.msra.mxu0 0.0
    %480 = vmatprep.subr.mxu0 0.0
    %481 = vmatpush1.msra.mxu0 0.0
    %482 = vmatprep.subr.mxu0 0.0
    %483 = vmatpush1.msra.mxu0 0.0
    %484 = vmatprep.subr.mxu0 0.0
    %485 = vmatpush1.msra.mxu0 0.0
    %486 = vmatprep.subr.mxu0 0.0
    %487 = vmatpush1.msra.mxu0 0.0
    %488 = vmatprep.subr.mxu0 0.0
    %489 = vmatpush1.msra.mxu0 0.0
    %490 = vmatprep.subr.mxu0 0.0
    %491 = vmatpush1.msra.mxu0 0.0
    %492 = vmatprep.subr.mxu0 0.0
    %493 = vmatpush1.msra.mxu0 0.0
    %494 = vmatprep.subr.mxu0 0.0
    %495 = vmatpush1.msra.mxu0 0.0
    %496 = vmatprep.subr.mxu0 0.0
    %497 = vmatpush1.msra.mxu0 0.0
    %498 = vmatprep.subr.mxu0 0.0
    %499 = vmatpush1.msra.mxu0 0.0
    %500 = vmatprep.subr.mxu0 0.0
    %501 = vmatpush1.msra.mxu0 0.0
    %502 = vmatprep.subr.mxu0 0.0
    %503 = vmatpush1.msra.mxu0 0.0
    %504 = vmatprep.subr.mxu0 0.0
    %505 = vmatpush1.msra.mxu0 0.0
    %506 = vmatprep.subr.mxu0 0.0
    %507 = vmatpush1.msra.mxu0 0.0
    %508 = vmatprep.subr.mxu0 0.0
    %509 = vmatpush1.msra.mxu0 0.0
    %510 = vmatprep.subr.mxu0 0.0
    %511 = vmatpush1.msra.mxu0 0.0
    %512 = vmatprep.subr.mxu0 0.0
    %513 = vmatpush1.msra.mxu0 0.0
    %514 = vmatprep.subr.mxu0 0.0
    %515 = vmatpush1.msra.mxu0 0.0
    %516 = vmatprep.subr.mxu0 0.0
    %517 = vmatpush1.msra.mxu0 0.0
    %518 = vmatprep.subr.mxu0 0.0
    %519 = vmatpush1.msra.mxu0 0.0
    %520 = vmatprep.subr.mxu0 0.0
    %521 = vmatpush1.msra.mxu0 0.0
    %522 = vmatprep.subr.mxu0 0.0
    %523 = vmatpush1.msra.mxu0 0.0
    %524 = vmatprep.subr.mxu0 0.0
    %525 = vmatpush1.msra.mxu0 0.0
    %526 = vmatprep.subr.mxu0 0.0
    %527 = vmatpush1.msra.mxu0 0.0
    %528 = vmatprep.subr.mxu0 0.0
    %529 = vmatpush1.msra.mxu0 0.0
    %530 = vmatprep.subr.mxu0 0.0
    %531 = vmatpush1.msra.mxu0 0.0
    %532 = vmatprep.subr.mxu0 0.0
    %533 = vmatpush1.msra.mxu0 0.0
    %534 = vmatprep.subr.mxu0 0.0
    %535 = vmatpush1.msra.mxu0 0.0
    %536 = vmatprep.subr.mxu0 0.0
    %537 = vmatpush1.msra.mxu0 0.0
    %538 = vmatprep.subr.mxu0 0.0
    %539 = vmatpush1.msra.mxu0 0.0
    %540 = vmatprep.mubr.f32.mxu0 0.0
    %541 = vmatmul.mubr.f32.gmra.mrb[0].mxu0 %v474
    %v542 = vpop.f32.mrb[0].mxu0
    %v543 = vadd.f32 0.0, %v542
    %v544 = vpop.f32.mrb[0].mxu0
    %545 = vdwg.mxu0
    %v547 = vsel %vm214, %v465, 0
    %549 = vmatprep.subr.mxu0 0.0
    %550 = vmatpush1.msra.mxu0 %v466
    %551 = vmatprep.subr.mxu0 0.0
    %552 = vmatpush1.msra.mxu0 %v467
    %553 = vmatprep.subr.mxu0 0.0
    %554 = vmatpush1.msra.mxu0 %v468
    %555 = vmatprep.subr.mxu0 0.0
    %556 = vmatpush1.msra.mxu0 %v469
    %557 = vmatprep.subr.mxu0 0.0
    %558 = vmatpush1.msra.mxu0 0.0
    %559 = vmatprep.subr.mxu0 0.0
    %560 = vmatpush1.msra.mxu0 0.0
    %561 = vmatprep.subr.mxu0 0.0
    %562 = vmatpush1.msra.mxu0 0.0
    %563 = vmatprep.subr.mxu0 0.0
    %564 = vmatpush1.msra.mxu0 0.0
    %565 = vmatprep.subr.mxu0 0.0
    %566 = vmatpush1.msra.mxu0 0.0
    %567 = vmatprep.subr.mxu0 0.0
    %568 = vmatpush1.msra.mxu0 0.0
    %569 = vmatprep.subr.mxu0 0.0
    %570 = vmatpush1.msra.mxu0 0.0
    %571 = vmatprep.subr.mxu0 0.0
    %572 = vmatpush1.msra.mxu0 0.0
    %573 = vmatprep.subr.mxu0 0.0
    %574 = vmatpush1.msra.mxu0 0.0
    %575 = vmatprep.subr.mxu0 0.0
    %576 = vmatpush1.msra.mxu0 0.0
    %577 = vmatprep.subr.mxu0 0.0
    %578 = vmatpush1.msra.mxu0 0.0
    %579 = vmatprep.subr.mxu0 0.0
    %580 = vmatpush1.msra.mxu0 0.0
    %581 = vmatprep.subr.mxu0 0.0
    %582 = vmatpush1.msra.mxu0 0.0
    %583 = vmatprep.subr.mxu0 0.0
    %584 = vmatpush1.msra.mxu0 0.0
    %585 = vmatprep.subr.mxu0 0.0
    %586 = vmatpush1.msra.mxu0 0.0
    %587 = vmatprep.subr.mxu0 0.0
    %588 = vmatpush1.msra.mxu0 0.0
    %589 = vmatprep.subr.mxu0 0.0
    %590 = vmatpush1.msra.mxu0 0.0
    %591 = vmatprep.subr.mxu0 0.0
    %592 = vmatpush1.msra.mxu0 0.0
    %593 = vmatprep.subr.mxu0 0.0
    %594 = vmatpush1.msra.mxu0 0.0
    %595 = vmatprep.subr.mxu0 0.0
    %596 = vmatpush1.msra.mxu0 0.0
    %597 = vmatprep.subr.mxu0 0.0
    %598 = vmatpush1.msra.mxu0 0.0
    %599 = vmatprep.subr.mxu0 0.0
    %600 = vmatpush1.msra.mxu0 0.0
    %601 = vmatprep.subr.mxu0 0.0
    %602 = vmatpush1.msra.mxu0 0.0
    %603 = vmatprep.subr.mxu0 0.0
    %604 = vmatpush1.msra.mxu0 0.0
    %605 = vmatprep.subr.mxu0 0.0
    %606 = vmatpush1.msra.mxu0 0.0
    %607 = vmatprep.subr.mxu0 0.0
    %608 = vmatpush1.msra.mxu0 0.0
    %609 = vmatprep.subr.mxu0 0.0
    %610 = vmatpush1.msra.mxu0 0.0
    %611 = vmatprep.subr.mxu0 0.0
    %612 = vmatpush1.msra.mxu0 0.0
    %613 = vmatprep.mubr.f32.mxu0 0.0
    %614 = vmatmul.mubr.f32.gmra.mrb[0].mxu0 %v547
    %v615 = vpop.f32.mrb[0].mxu0
    %v616 = vadd.f32 %v543, %v615
    %v617 = vpop.f32.mrb[0].mxu0
    %618 = vdwg.mxu0
    %v619 = vlaneseq
    %v620 = vshrl.u32 %v619, 7
    %v621 = vsub.s32 0, %v620
    %v622 = vrot.slane %v203, %v621
    %v623 = vadd.f32 %v616, %v622
    %v624 = vmax.f32 %v623, 0.0
    %v625 = vld [vmem:[%s9] sm:$0xff]
    %v626 = vld [vmem:[%s9 + $0x8] sm:$0xff]
    %v627 = vld [vmem:[%s9 + $0x10] sm:$0xff]
    %v628 = vld [vmem:[%s9 + $0x18] sm:$0xff]
    %v630 = vsel %vm214, %v624, 0
    %632 = vmatprep.subr.mxu0 0.0
    %633 = vmatpush1.msra.mxu0 %v625
    %634 = vmatprep.subr.mxu0 0.0
    %635 = vmatpush1.msra.mxu0 %v626
    %636 = vmatprep.subr.mxu0 0.0
    %637 = vmatpush1.msra.mxu0 %v627
    %638 = vmatprep.subr.mxu0 0.0
    %639 = vmatpush1.msra.mxu0 %v628
    %640 = vmatprep.subr.mxu0 0.0
    %641 = vmatpush1.msra.mxu0 0.0
    %642 = vmatprep.subr.mxu0 0.0
    %643 = vmatpush1.msra.mxu0 0.0
    %644 = vmatprep.subr.mxu0 0.0
    %645 = vmatpush1.msra.mxu0 0.0
    %646 = vmatprep.subr.mxu0 0.0
    %647 = vmatpush1.msra.mxu0 0.0
    %648 = vmatprep.subr.mxu0 0.0
    %649 = vmatpush1.msra.mxu0 0.0
    %650 = vmatprep.subr.mxu0 0.0
    %651 = vmatpush1.msra.mxu0 0.0
    %652 = vmatprep.subr.mxu0 0.0
    %653 = vmatpush1.msra.mxu0 0.0
    %654 = vmatprep.subr.mxu0 0.0
    %655 = vmatpush1.msra.mxu0 0.0
    %656 = vmatprep.subr.mxu0 0.0
    %657 = vmatpush1.msra.mxu0 0.0
    %658 = vmatprep.subr.mxu0 0.0
    %659 = vmatpush1.msra.mxu0 0.0
    %660 = vmatprep.subr.mxu0 0.0
    %661 = vmatpush1.msra.mxu0 0.0
    %662 = vmatprep.subr.mxu0 0.0
    %663 = vmatpush1.msra.mxu0 0.0
    %664 = vmatprep.subr.mxu0 0.0
    %665 = vmatpush1.msra.mxu0 0.0
    %666 = vmatprep.subr.mxu0 0.0
    %667 = vmatpush1.msra.mxu0 0.0
    %668 = vmatprep.subr.mxu0 0.0
    %669 = vmatpush1.msra.mxu0 0.0
    %670 = vmatprep.subr.mxu0 0.0
    %671 = vmatpush1.msra.mxu0 0.0
    %672 = vmatprep.subr.mxu0 0.0
    %673 = vmatpush1.msra.mxu0 0.0
    %674 = vmatprep.subr.mxu0 0.0
    %675 = vmatpush1.msra.mxu0 0.0
    %676 = vmatprep.subr.mxu0 0.0
    %677 = vmatpush1.msra.mxu0 0.0
    %678 = vmatprep.subr.mxu0 0.0
    %679 = vmatpush1.msra.mxu0 0.0
    %680 = vmatprep.subr.mxu0 0.0
    %681 = vmatpush1.msra.mxu0 0.0
    %682 = vmatprep.subr.mxu0 0.0
    %683 = vmatpush1.msra.mxu0 0.0
    %684 = vmatprep.subr.mxu0 0.0
    %685 = vmatpush1.msra.mxu0 0.0
    %686 = vmatprep.subr.mxu0 0.0
    %687 = vmatpush1.msra.mxu0 0.0
    %688 = vmatprep.subr.mxu0 0.0
    %689 = vmatpush1.msra.mxu0 0.0
    %690 = vmatprep.subr.mxu0 0.0
    %691 = vmatpush1.msra.mxu0 0.0
    %692 = vmatprep.subr.mxu0 0.0
    %693 = vmatpush1.msra.mxu0 0.0
    %694 = vmatprep.subr.mxu0 0.0
    %695 = vmatpush1.msra.mxu0 0.0
    %696 = vmatprep.mubr.f32.mxu0 0.0
    %697 = vmatmul.mubr.f32.gmra.mrb[0].mxu0 %v630
    %v698 = vpop.f32.mrb[0].mxu0
    %v699 = vadd.f32 0.0, %v698
    %v700 = vpop.f32.mrb[0].mxu0
    %701 = vdwg.mxu0
    %v702 = vlaneseq
    %v703 = vand.u32 %v702, 127
    %vm704 = vcmp.lt.s32.totalorder %v703, 8
    %v705 = vsel %vm704, %v375, -1e+30
    %706 = vmax.xlane.f32.xlu0 %v705
    %v707 = vpop.xlane.xlu0 %706
    %v708 = vsub.f32 %v375, %v707
    %v709 = vmul.f32 %v708, 1.442695
    %v710 = vpow.pop %v709
    %v711 = vsel %vm704, %v710, 0.0
    %712 = vadd.xlane.f32.xlu0 %v711
    %v713 = vpop.xlane.xlu0 %712
    %v714 = vrcp.pop %v713
    %v715 = vmul.f32 %v711, %v714
    %v716 = vsel %vm704, %v380, -1e+30
    %717 = vmax.xlane.f32.xlu0 %v716
    %v718 = vpop.xlane.xlu0 %717
    %v719 = vsub.f32 %v380, %v718
    %v720 = vmul.f32 %v719, 1.442695
    %v721 = vpow.pop %v720
    %v722 = vsel %vm704, %v721, 0.0
    %723 = vadd.xlane.f32.xlu0 %v722
    %v724 = vpop.xlane.xlu0 %723
    %v725 = vrcp.pop %v724
    %v726 = vmul.f32 %v722, %v725
    %v727 = vsub.f32 0.0, %v699
    %v728 = vmul.f32 %v727, 1.442695
    %v729 = vpow.pop %v728
    %v730 = vadd.f32 %v729, 1.0
    %v731 = vrcp.pop %v730
    %v732 = vmul.f32 1.0, %v731
    %v733 = vlaneseq
    %v734 = vshrl.u32 %v733, 7
    %v735 = vsub.s32 0, %v734
    %v736 = vrot.slane %v726, %v735
    %738 = vbcast.lane.b32.xlu0 %v736, 256
    %v739 = vpop.permute.xlu0 %738
    %v740 = vlaneseq
    %v741 = vshrl.u32 %v740, 7
    %v742 = vsub.s32 1, %v741
    %v743 = vrot.slane %v726, %v742
    %745 = vbcast.lane.b32.xlu0 %v743, 256
    %v746 = vpop.permute.xlu0 %745
    %v747 = vlaneseq
    %v748 = vshrl.u32 %v747, 7
    %v749 = vsub.s32 2, %v748
    %v750 = vrot.slane %v726, %v749
    %752 = vbcast.lane.b32.xlu0 %v750, 256
    %v753 = vpop.permute.xlu0 %752
    %v754 = vlaneseq
    %v755 = vshrl.u32 %v754, 7
    %v756 = vsub.s32 3, %v755
    %v757 = vrot.slane %v726, %v756
    %759 = vbcast.lane.b32.xlu0 %v757, 256
    %v760 = vpop.permute.xlu0 %759
    %v761 = vlaneseq
    %v762 = vshrl.u32 %v761, 7
    %v763 = vsub.s32 4, %v762
    %v764 = vrot.slane %v726, %v763
    %766 = vbcast.lane.b32.xlu0 %v764, 256
    %v767 = vpop.permute.xlu0 %766
    %v768 = vlaneseq
    %v769 = vshrl.u32 %v768, 7
    %v770 = vsub.s32 5, %v769
    %v771 = vrot.slane %v726, %v770
    %773 = vbcast.lane.b32.xlu0 %v771, 256
    %v774 = vpop.permute.xlu0 %773
    %v775 = vlaneseq
    %v776 = vshrl.u32 %v775, 7
    %v777 = vsub.s32 6, %v776
    %v778 = vrot.slane %v726, %v777
    %780 = vbcast.lane.b32.xlu0 %v778, 256
    %v781 = vpop.permute.xlu0 %780
    %v782 = vlaneseq
    %v783 = vshrl.u32 %v782, 7
    %v784 = vsub.s32 7, %v783
    %v785 = vrot.slane %v726, %v784
    %787 = vbcast.lane.b32.xlu0 %v785, 256
    %v788 = vpop.permute.xlu0 %787
    %v789 = vlaneseq
    %v790 = vshrl.u32 %v789, 7
    %v791 = vsub.s32 0, %v790
    %v792 = vrot.slane %v732, %v791
    %794 = vbcast.lane.b32.xlu0 %v792, 256
    %v795 = vpop.permute.xlu0 %794
    %v796 = vlaneseq
    %v797 = vshrl.u32 %v796, 7
    %v798 = vsub.s32 1, %v797
    %v799 = vrot.slane %v732, %v798
    %801 = vbcast.lane.b32.xlu0 %v799, 256
    %v802 = vpop.permute.xlu0 %801
    %v803 = vlaneseq
    %v804 = vshrl.u32 %v803, 7
    %v805 = vsub.s32 2, %v804
    %v806 = vrot.slane %v732, %v805
    %808 = vbcast.lane.b32.xlu0 %v806, 256
    %v809 = vpop.permute.xlu0 %808
    %v810 = vlaneseq
    %v811 = vshrl.u32 %v810, 7
    %v812 = vsub.s32 3, %v811
    %v813 = vrot.slane %v732, %v812
    %815 = vbcast.lane.b32.xlu0 %v813, 256
    %v816 = vpop.permute.xlu0 %815
    %v817 = vlaneseq
    %v818 = vshrl.u32 %v817, 7
    %v819 = vsub.s32 4, %v818
    %v820 = vrot.slane %v732, %v819
    %822 = vbcast.lane.b32.xlu0 %v820, 256
    %v823 = vpop.permute.xlu0 %822
    %v824 = vlaneseq
    %v825 = vshrl.u32 %v824, 7
    %v826 = vsub.s32 5, %v825
    %v827 = vrot.slane %v732, %v826
    %829 = vbcast.lane.b32.xlu0 %v827, 256
    %v830 = vpop.permute.xlu0 %829
    %v831 = vlaneseq
    %v832 = vshrl.u32 %v831, 7
    %v833 = vsub.s32 6, %v832
    %v834 = vrot.slane %v732, %v833
    %836 = vbcast.lane.b32.xlu0 %v834, 256
    %v837 = vpop.permute.xlu0 %836
    %v838 = vlaneseq
    %v839 = vshrl.u32 %v838, 7
    %v840 = vsub.s32 7, %v839
    %v841 = vrot.slane %v732, %v840
    %843 = vbcast.lane.b32.xlu0 %v841, 256
    %v844 = vpop.permute.xlu0 %843
    %v845 = vld [vmem:[#allocation17] sm:$0xff]
    %v846 = vld [vmem:[#allocation17 + $0x8] sm:$0xff]
    %v847 = vld [vmem:[#allocation17 + $0x10] sm:$0xff]
    %v848 = vld [vmem:[#allocation17 + $0x18] sm:$0xff]
    %v849 = vld [vmem:[#allocation17 + $0x20] sm:$0xff]
    %v850 = vld [vmem:[#allocation17 + $0x28] sm:$0xff]
    %v851 = vld [vmem:[#allocation17 + $0x30] sm:$0xff]
    %v852 = vld [vmem:[#allocation17 + $0x38] sm:$0xff]
    %v853 = vld [vmem:[#allocation17 + $0x40] sm:$0xff]
    %v854 = vld [vmem:[#allocation17 + $0x48] sm:$0xff]
    %v855 = vld [vmem:[#allocation17 + $0x50] sm:$0xff]
    %v856 = vld [vmem:[#allocation17 + $0x58] sm:$0xff]
    %v857 = vld [vmem:[#allocation17 + $0x60] sm:$0xff]
    %v858 = vld [vmem:[#allocation17 + $0x68] sm:$0xff]
    %v859 = vld [vmem:[#allocation17 + $0x70] sm:$0xff]
    %v860 = vld [vmem:[#allocation17 + $0x78] sm:$0xff]
    %v861 = vld [vmem:[#allocation17 + $0x80] sm:$0xff]
    %v862 = vld [vmem:[#allocation17 + $0x88] sm:$0xff]
    %v863 = vld [vmem:[#allocation17 + $0x90] sm:$0xff]
    %v864 = vld [vmem:[#allocation17 + $0x98] sm:$0xff]
    %v865 = vld [vmem:[#allocation17 + $0xa0] sm:$0xff]
    %v866 = vld [vmem:[#allocation17 + $0xa8] sm:$0xff]
    %v867 = vld [vmem:[#allocation17 + $0xb0] sm:$0xff]
    %v868 = vld [vmem:[#allocation17 + $0xb8] sm:$0xff]
    %v869 = vld [vmem:[#allocation17 + $0xc0] sm:$0xff]
    %v870 = vld [vmem:[#allocation17 + $0xc8] sm:$0xff]
    %v871 = vld [vmem:[#allocation17 + $0xd0] sm:$0xff]
    %v872 = vld [vmem:[#allocation17 + $0xd8] sm:$0xff]
    %v873 = vld [vmem:[#allocation17 + $0xe0] sm:$0xff]
    %v874 = vld [vmem:[#allocation17 + $0xe8] sm:$0xff]
    %v875 = vld [vmem:[#allocation17 + $0xf0] sm:$0xff]
    %v876 = vld [vmem:[#allocation17 + $0xf8] sm:$0xff]
    %v877 = vld [vmem:[#allocation17 + $0x100] sm:$0xff]
    %v878 = vld [vmem:[#allocation17 + $0x108] sm:$0xff]
    %v879 = vld [vmem:[#allocation17 + $0x110] sm:$0xff]
    %v880 = vld [vmem:[#allocation17 + $0x118] sm:$0xff]
    %v881 = vld [vmem:[#allocation17 + $0x120] sm:$0xff]
    %v882 = vld [vmem:[#allocation17 + $0x128] sm:$0xff]
    %v883 = vld [vmem:[#allocation17 + $0x130] sm:$0xff]
    %v884 = vld [vmem:[#allocation17 + $0x138] sm:$0xff]
    %v885 = vld [vmem:[#allocation17 + $0x140] sm:$0xff]
    %v886 = vld [vmem:[#allocation17 + $0x148] sm:$0xff]
    %v887 = vld [vmem:[#allocation17 + $0x150] sm:$0xff]
    %v888 = vld [vmem:[#allocation17 + $0x158] sm:$0xff]
    %v889 = vld [vmem:[#allocation17 + $0x160] sm:$0xff]
    %v890 = vld [vmem:[#allocation17 + $0x168] sm:$0xff]
    %v891 = vld [vmem:[#allocation17 + $0x170] sm:$0xff]
    %v892 = vld [vmem:[#allocation17 + $0x178] sm:$0xff]
    %v893 = vld [vmem:[#allocation17 + $0x180] sm:$0xff]
    %v894 = vld [vmem:[#allocation17 + $0x188] sm:$0xff]
    %v895 = vld [vmem:[#allocation17 + $0x190] sm:$0xff]
    %v896 = vld [vmem:[#allocation17 + $0x198] sm:$0xff]
    %v897 = vld [vmem:[#allocation17 + $0x1a0] sm:$0xff]
    %v898 = vld [vmem:[#allocation17 + $0x1a8] sm:$0xff]
    %v899 = vld [vmem:[#allocation17 + $0x1b0] sm:$0xff]
    %v900 = vld [vmem:[#allocation17 + $0x1b8] sm:$0xff]
    %v901 = vld [vmem:[#allocation17 + $0x1c0] sm:$0xff]
    %v902 = vld [vmem:[#allocation17 + $0x1c8] sm:$0xff]
    %v903 = vld [vmem:[#allocation17 + $0x1d0] sm:$0xff]
    %v904 = vld [vmem:[#allocation17 + $0x1d8] sm:$0xff]
    %v905 = vld [vmem:[#allocation17 + $0x1e0] sm:$0xff]
    %v906 = vld [vmem:[#allocation17 + $0x1e8] sm:$0xff]
    %v907 = vld [vmem:[#allocation17 + $0x1f0] sm:$0xff]
    %v908 = vld [vmem:[#allocation17 + $0x1f8] sm:$0xff]
    %v909 = vld [vmem:[#allocation17 + $0x200] sm:$0xff]
    %v910 = vld [vmem:[#allocation17 + $0x208] sm:$0xff]
    %v911 = vld [vmem:[#allocation17 + $0x210] sm:$0xff]
    %v912 = vld [vmem:[#allocation17 + $0x218] sm:$0xff]
    %v913 = vld [vmem:[#allocation17 + $0x220] sm:$0xff]
    %v914 = vld [vmem:[#allocation17 + $0x228] sm:$0xff]
    %v915 = vld [vmem:[#allocation17 + $0x230] sm:$0xff]
    %v916 = vld [vmem:[#allocation17 + $0x238] sm:$0xff]
    %v917 = vld [vmem:[#allocation17 + $0x240] sm:$0xff]
    %v918 = vld [vmem:[#allocation17 + $0x248] sm:$0xff]
    %v919 = vld [vmem:[#allocation17 + $0x250] sm:$0xff]
    %v920 = vld [vmem:[#allocation17 + $0x258] sm:$0xff]
    %v921 = vld [vmem:[#allocation17 + $0x260] sm:$0xff]
    %v922 = vld [vmem:[#allocation17 + $0x268] sm:$0xff]
    %v923 = vld [vmem:[#allocation17 + $0x270] sm:$0xff]
    %v924 = vld [vmem:[#allocation17 + $0x278] sm:$0xff]
    %v925 = vld [vmem:[#allocation17 + $0x280] sm:$0xff]
    %v926 = vld [vmem:[#allocation17 + $0x288] sm:$0xff]
    %v927 = vld [vmem:[#allocation17 + $0x290] sm:$0xff]
    %v928 = vld [vmem:[#allocation17 + $0x298] sm:$0xff]
    %v929 = vld [vmem:[#allocation17 + $0x2a0] sm:$0xff]
    %v930 = vld [vmem:[#allocation17 + $0x2a8] sm:$0xff]
    %v931 = vld [vmem:[#allocation17 + $0x2b0] sm:$0xff]
    %v932 = vld [vmem:[#allocation17 + $0x2b8] sm:$0xff]
    %v933 = vld [vmem:[#allocation17 + $0x2c0] sm:$0xff]
    %v934 = vld [vmem:[#allocation17 + $0x2c8] sm:$0xff]
    %v935 = vld [vmem:[#allocation17 + $0x2d0] sm:$0xff]
    %v936 = vld [vmem:[#allocation17 + $0x2d8] sm:$0xff]
    %v937 = vld [vmem:[#allocation17 + $0x2e0] sm:$0xff]
    %v938 = vld [vmem:[#allocation17 + $0x2e8] sm:$0xff]
    %v939 = vld [vmem:[#allocation17 + $0x2f0] sm:$0xff]
    %v940 = vld [vmem:[#allocation17 + $0x2f8] sm:$0xff]
    %v941 = vld [vmem:[#allocation17 + $0x300] sm:$0xff]
    %v942 = vld [vmem:[#allocation17 + $0x308] sm:$0xff]
    %v943 = vld [vmem:[#allocation17 + $0x310] sm:$0xff]
    %v944 = vld [vmem:[#allocation17 + $0x318] sm:$0xff]
    %v945 = vld [vmem:[#allocation17 + $0x320] sm:$0xff]
    %v946 = vld [vmem:[#allocation17 + $0x328] sm:$0xff]
    %v947 = vld [vmem:[#allocation17 + $0x330] sm:$0xff]
    %v948 = vld [vmem:[#allocation17 + $0x338] sm:$0xff]
    %v949 = vld [vmem:[#allocation17 + $0x340] sm:$0xff]
    %v950 = vld [vmem:[#allocation17 + $0x348] sm:$0xff]
    %v951 = vld [vmem:[#allocation17 + $0x350] sm:$0xff]
    %v952 = vld [vmem:[#allocation17 + $0x358] sm:$0xff]
    %v953 = vld [vmem:[#allocation17 + $0x360] sm:$0xff]
    %v954 = vld [vmem:[#allocation17 + $0x368] sm:$0xff]
    %v955 = vld [vmem:[#allocation17 + $0x370] sm:$0xff]
    %v956 = vld [vmem:[#allocation17 + $0x378] sm:$0xff]
    %v957 = vld [vmem:[#allocation17 + $0x380] sm:$0xff]
    %v958 = vld [vmem:[#allocation17 + $0x388] sm:$0xff]
    %v959 = vld [vmem:[#allocation17 + $0x390] sm:$0xff]
    %v960 = vld [vmem:[#allocation17 + $0x398] sm:$0xff]
    %v961 = vld [vmem:[#allocation17 + $0x3a0] sm:$0xff]
    %v962 = vld [vmem:[#allocation17 + $0x3a8] sm:$0xff]
    %v963 = vld [vmem:[#allocation17 + $0x3b0] sm:$0xff]
    %v964 = vld [vmem:[#allocation17 + $0x3b8] sm:$0xff]
    %v965 = vld [vmem:[#allocation17 + $0x3c0] sm:$0xff]
    %v966 = vld [vmem:[#allocation17 + $0x3c8] sm:$0xff]
    %v967 = vld [vmem:[#allocation17 + $0x3d0] sm:$0xff]
    %v968 = vld [vmem:[#allocation17 + $0x3d8] sm:$0xff]
    %v969 = vld [vmem:[#allocation17 + $0x3e0] sm:$0xff]
    %v970 = vld [vmem:[#allocation17 + $0x3e8] sm:$0xff]
    %v971 = vld [vmem:[#allocation17 + $0x3f0] sm:$0xff]
    %v972 = vld [vmem:[#allocation17 + $0x3f8] sm:$0xff]
    %973 = vmatprep.subr.mxu0 %v846
    %974 = vmatpush1.msra.mxu0 %v845
    %975 = vmatprep.subr.mxu0 %v854
    %976 = vmatpush1.msra.mxu0 %v853
    %977 = vmatprep.subr.mxu0 %v862
    %978 = vmatpush1.msra.mxu0 %v861
    %979 = vmatprep.subr.mxu0 %v870
    %980 = vmatpush1.msra.mxu0 %v869
    %981 = vmatprep.subr.mxu0 %v878
    %982 = vmatpush1.msra.mxu0 %v877
    %983 = vmatprep.subr.mxu0 %v886
    %984 = vmatpush1.msra.mxu0 %v885
    %985 = vmatprep.subr.mxu0 %v894
    %986 = vmatpush1.msra.mxu0 %v893
    %987 = vmatprep.subr.mxu0 %v902
    %988 = vmatpush1.msra.mxu0 %v901
    %989 = vmatprep.subr.mxu0 %v910
    %990 = vmatpush1.msra.mxu0 %v909
    %991 = vmatprep.subr.mxu0 %v918
    %992 = vmatpush1.msra.mxu0 %v917
    %993 = vmatprep.subr.mxu0 %v926
    %994 = vmatpush1.msra.mxu0 %v925
    %995 = vmatprep.subr.mxu0 %v934
    %996 = vmatpush1.msra.mxu0 %v933
    %997 = vmatprep.subr.mxu0 %v942
    %998 = vmatpush1.msra.mxu0 %v941
    %999 = vmatprep.subr.mxu0 %v950
    %1000 = vmatpush1.msra.mxu0 %v949
    %1001 = vmatprep.subr.mxu0 %v958
    %1002 = vmatpush1.msra.mxu0 %v957
    %1003 = vmatprep.subr.mxu0 %v966
    %1004 = vmatpush1.msra.mxu0 %v965
    %1005 = vmatprep.subr.mxu0 0.0
    %1006 = vmatpush1.msra.mxu0 0.0
    %1007 = vmatprep.subr.mxu0 0.0
    %1008 = vmatpush1.msra.mxu0 0.0
    %1009 = vmatprep.subr.mxu0 0.0
    %1010 = vmatpush1.msra.mxu0 0.0
    %1011 = vmatprep.subr.mxu0 0.0
    %1012 = vmatpush1.msra.mxu0 0.0
    %1013 = vmatprep.subr.mxu0 0.0
    %1014 = vmatpush1.msra.mxu0 0.0
    %1015 = vmatprep.subr.mxu0 0.0
    %1016 = vmatpush1.msra.mxu0 0.0
    %1017 = vmatprep.subr.mxu0 0.0
    %1018 = vmatpush1.msra.mxu0 0.0
    %1019 = vmatprep.subr.mxu0 0.0
    %1020 = vmatpush1.msra.mxu0 0.0
    %1021 = vmatprep.subr.mxu0 0.0
    %1022 = vmatpush1.msra.mxu0 0.0
    %1023 = vmatprep.subr.mxu0 0.0
    %1024 = vmatpush1.msra.mxu0 0.0
    %1025 = vmatprep.subr.mxu0 0.0
    %1026 = vmatpush1.msra.mxu0 0.0
    %1027 = vmatprep.subr.mxu0 0.0
    %1028 = vmatpush1.msra.mxu0 0.0
    %1029 = vmatprep.subr.mxu0 0.0
    %1030 = vmatpush1.msra.mxu0 0.0
    %1031 = vmatprep.subr.mxu0 0.0
    %1032 = vmatpush1.msra.mxu0 0.0
    %1033 = vmatprep.subr.mxu0 0.0
    %1034 = vmatpush1.msra.mxu0 0.0
    %1035 = vmatprep.subr.mxu0 0.0
    %1036 = vmatpush1.msra.mxu0 0.0
    %1037 = vmatprep.mubr.f32.mxu0 0.0
    %1038 = vmatmul.mubr.f32.gmra.mrb[0].mxu0 %v732
    %v1039 = vpop.f32.mrb[0].mxu0
    %v1040 = vadd.f32 0.0, %v1039
    %v1041 = vpop.f32.mrb[0].mxu0
    %v1042 = vadd.f32 0.0, %v1041
    %1043 = vdwg.mxu0
    %1044 = vmatprep.subr.mxu0 %v848
    %1045 = vmatpush1.msra.mxu0 %v847
    %1046 = vmatprep.subr.mxu0 %v856
    %1047 = vmatpush1.msra.mxu0 %v855
    %1048 = vmatprep.subr.mxu0 %v864
    %1049 = vmatpush1.msra.mxu0 %v863
    %1050 = vmatprep.subr.mxu0 %v872
    %1051 = vmatpush1.msra.mxu0 %v871
    %1052 = vmatprep.subr.mxu0 %v880
    %1053 = vmatpush1.msra.mxu0 %v879
    %1054 = vmatprep.subr.mxu0 %v888
    %1055 = vmatpush1.msra.mxu0 %v887
    %1056 = vmatprep.subr.mxu0 %v896
    %1057 = vmatpush1.msra.mxu0 %v895
    %1058 = vmatprep.subr.mxu0 %v904
    %1059 = vmatpush1.msra.mxu0 %v903
    %1060 = vmatprep.subr.mxu0 %v912
    %1061 = vmatpush1.msra.mxu0 %v911
    %1062 = vmatprep.subr.mxu0 %v920
    %1063 = vmatpush1.msra.mxu0 %v919
    %1064 = vmatprep.subr.mxu0 %v928
    %1065 = vmatpush1.msra.mxu0 %v927
    %1066 = vmatprep.subr.mxu0 %v936
    %1067 = vmatpush1.msra.mxu0 %v935
    %1068 = vmatprep.subr.mxu0 %v944
    %1069 = vmatpush1.msra.mxu0 %v943
    %1070 = vmatprep.subr.mxu0 %v952
    %1071 = vmatpush1.msra.mxu0 %v951
    %1072 = vmatprep.subr.mxu0 %v960
    %1073 = vmatpush1.msra.mxu0 %v959
    %1074 = vmatprep.subr.mxu0 %v968
    %1075 = vmatpush1.msra.mxu0 %v967
    %1076 = vmatprep.subr.mxu0 0.0
    %1077 = vmatpush1.msra.mxu0 0.0
    %1078 = vmatprep.subr.mxu0 0.0
    %1079 = vmatpush1.msra.mxu0 0.0
    %1080 = vmatprep.subr.mxu0 0.0
    %1081 = vmatpush1.msra.mxu0 0.0
    %1082 = vmatprep.subr.mxu0 0.0
    %1083 = vmatpush1.msra.mxu0 0.0
    %1084 = vmatprep.subr.mxu0 0.0
    %1085 = vmatpush1.msra.mxu0 0.0
    %1086 = vmatprep.subr.mxu0 0.0
    %1087 = vmatpush1.msra.mxu0 0.0
    %1088 = vmatprep.subr.mxu0 0.0
    %1089 = vmatpush1.msra.mxu0 0.0
    %1090 = vmatprep.subr.mxu0 0.0
    %1091 = vmatpush1.msra.mxu0 0.0
    %1092 = vmatprep.subr.mxu0 0.0
    %1093 = vmatpush1.msra.mxu0 0.0
    %1094 = vmatprep.subr.mxu0 0.0
    %1095 = vmatpush1.msra.mxu0 0.0
    %1096 = vmatprep.subr.mxu0 0.0
    %1097 = vmatpush1.msra.mxu0 0.0
    %1098 = vmatprep.subr.mxu0 0.0
    %1099 = vmatpush1.msra.mxu0 0.0
    %1100 = vmatprep.subr.mxu0 0.0
    %1101 = vmatpush1.msra.mxu0 0.0
    %1102 = vmatprep.subr.mxu0 0.0
    %1103 = vmatpush1.msra.mxu0 0.0
    %1104 = vmatprep.subr.mxu0 0.0
    %1105 = vmatpush1.msra.mxu0 0.0
    %1106 = vmatprep.subr.mxu0 0.0
    %1107 = vmatpush1.msra.mxu0 0.0
    %1108 = vmatprep.mubr.f32.mxu0 0.0
    %1109 = vmatmul.mubr.f32.gmra.mrb[0].mxu0 %v732
    %v1110 = vpop.f32.mrb[0].mxu0
    %v1111 = vadd.f32 0.0, %v1110
    %v1112 = vpop.f32.mrb[0].mxu0
    %v1113 = vadd.f32 0.0, %v1112
    %1114 = vdwg.mxu0
    %1115 = vmatprep.subr.mxu0 %v850
    %1116 = vmatpush1.msra.mxu0 %v849
    %1117 = vmatprep.subr.mxu0 %v858
    %1118 = vmatpush1.msra.mxu0 %v857
    %1119 = vmatprep.subr.mxu0 %v866
    %1120 = vmatpush1.msra.mxu0 %v865
    %1121 = vmatprep.subr.mxu0 %v874
    %1122 = vmatpush1.msra.mxu0 %v873
    %1123 = vmatprep.subr.mxu0 %v882
    %1124 = vmatpush1.msra.mxu0 %v881
    %1125 = vmatprep.subr.mxu0 %v890
    %1126 = vmatpush1.msra.mxu0 %v889
    %1127 = vmatprep.subr.mxu0 %v898
    %1128 = vmatpush1.msra.mxu0 %v897
    %1129 = vmatprep.subr.mxu0 %v906
    %1130 = vmatpush1.msra.mxu0 %v905
    %1131 = vmatprep.subr.mxu0 %v914
    %1132 = vmatpush1.msra.mxu0 %v913
    %1133 = vmatprep.subr.mxu0 %v922
    %1134 = vmatpush1.msra.mxu0 %v921
    %1135 = vmatprep.subr.mxu0 %v930
    %1136 = vmatpush1.msra.mxu0 %v929
    %1137 = vmatprep.subr.mxu0 %v938
    %1138 = vmatpush1.msra.mxu0 %v937
    %1139 = vmatprep.subr.mxu0 %v946
    %1140 = vmatpush1.msra.mxu0 %v945
    %1141 = vmatprep.subr.mxu0 %v954
    %1142 = vmatpush1.msra.mxu0 %v953
    %1143 = vmatprep.subr.mxu0 %v962
    %1144 = vmatpush1.msra.mxu0 %v961
    %1145 = vmatprep.subr.mxu0 %v970
    %1146 = vmatpush1.msra.mxu0 %v969
    %1147 = vmatprep.subr.mxu0 0.0
    %1148 = vmatpush1.msra.mxu0 0.0
    %1149 = vmatprep.subr.mxu0 0.0
    %1150 = vmatpush1.msra.mxu0 0.0
    %1151 = vmatprep.subr.mxu0 0.0
    %1152 = vmatpush1.msra.mxu0 0.0
    %1153 = vmatprep.subr.mxu0 0.0
    %1154 = vmatpush1.msra.mxu0 0.0
    %1155 = vmatprep.subr.mxu0 0.0
    %1156 = vmatpush1.msra.mxu0 0.0
    %1157 = vmatprep.subr.mxu0 0.0
    %1158 = vmatpush1.msra.mxu0 0.0
    %1159 = vmatprep.subr.mxu0 0.0
    %1160 = vmatpush1.msra.mxu0 0.0
    %1161 = vmatprep.subr.mxu0 0.0
    %1162 = vmatpush1.msra.mxu0 0.0
    %1163 = vmatprep.subr.mxu0 0.0
    %1164 = vmatpush1.msra.mxu0 0.0
    %1165 = vmatprep.subr.mxu0 0.0
    %1166 = vmatpush1.msra.mxu0 0.0
    %1167 = vmatprep.subr.mxu0 0.0
    %1168 = vmatpush1.msra.mxu0 0.0
    %1169 = vmatprep.subr.mxu0 0.0
    %1170 = vmatpush1.msra.mxu0 0.0
    %1171 = vmatprep.subr.mxu0 0.0
    %1172 = vmatpush1.msra.mxu0 0.0
    %1173 = vmatprep.subr.mxu0 0.0
    %1174 = vmatpush1.msra.mxu0 0.0
    %1175 = vmatprep.subr.mxu0 0.0
    %1176 = vmatpush1.msra.mxu0 0.0
    %1177 = vmatprep.subr.mxu0 0.0
    %1178 = vmatpush1.msra.mxu0 0.0
    %1179 = vmatprep.mubr.f32.mxu0 0.0
    %1180 = vmatmul.mubr.f32.gmra.mrb[0].mxu0 %v732
    %v1181 = vpop.f32.mrb[0].mxu0
    %v1182 = vadd.f32 0.0, %v1181
    %v1183 = vpop.f32.mrb[0].mxu0
    %v1184 = vadd.f32 0.0, %v1183
    %1185 = vdwg.mxu0
    %1186 = vmatprep.subr.mxu0 %v852
    %1187 = vmatpush1.msra.mxu0 %v851
    %1188 = vmatprep.subr.mxu0 %v860
    %1189 = vmatpush1.msra.mxu0 %v859
    %1190 = vmatprep.subr.mxu0 %v868
    %1191 = vmatpush1.msra.mxu0 %v867
    %1192 = vmatprep.subr.mxu0 %v876
    %1193 = vmatpush1.msra.mxu0 %v875
    %1194 = vmatprep.subr.mxu0 %v884
    %1195 = vmatpush1.msra.mxu0 %v883
    %1196 = vmatprep.subr.mxu0 %v892
    %1197 = vmatpush1.msra.mxu0 %v891
    %1198 = vmatprep.subr.mxu0 %v900
    %1199 = vmatpush1.msra.mxu0 %v899
    %1200 = vmatprep.subr.mxu0 %v908
    %1201 = vmatpush1.msra.mxu0 %v907
    %1202 = vmatprep.subr.mxu0 %v916
    %1203 = vmatpush1.msra.mxu0 %v915
    %1204 = vmatprep.subr.mxu0 %v924
    %1205 = vmatpush1.msra.mxu0 %v923
    %1206 = vmatprep.subr.mxu0 %v932
    %1207 = vmatpush1.msra.mxu0 %v931
    %1208 = vmatprep.subr.mxu0 %v940
    %1209 = vmatpush1.msra.mxu0 %v939
    %1210 = vmatprep.subr.mxu0 %v948
    %1211 = vmatpush1.msra.mxu0 %v947
    %1212 = vmatprep.subr.mxu0 %v956
    %1213 = vmatpush1.msra.mxu0 %v955
    %1214 = vmatprep.subr.mxu0 %v964
    %1215 = vmatpush1.msra.mxu0 %v963
    %1216 = vmatprep.subr.mxu0 %v972
    %1217 = vmatpush1.msra.mxu0 %v971
    %1218 = vmatprep.subr.mxu0 0.0
    %1219 = vmatpush1.msra.mxu0 0.0
    %1220 = vmatprep.subr.mxu0 0.0
    %1221 = vmatpush1.msra.mxu0 0.0
    %1222 = vmatprep.subr.mxu0 0.0
    %1223 = vmatpush1.msra.mxu0 0.0
    %1224 = vmatprep.subr.mxu0 0.0
    %1225 = vmatpush1.msra.mxu0 0.0
    %1226 = vmatprep.subr.mxu0 0.0
    %1227 = vmatpush1.msra.mxu0 0.0
    %1228 = vmatprep.subr.mxu0 0.0
    %1229 = vmatpush1.msra.mxu0 0.0
    %1230 = vmatprep.subr.mxu0 0.0
    %1231 = vmatpush1.msra.mxu0 0.0
    %1232 = vmatprep.subr.mxu0 0.0
    %1233 = vmatpush1.msra.mxu0 0.0
    %1234 = vmatprep.subr.mxu0 0.0
    %1235 = vmatpush1.msra.mxu0 0.0
    %1236 = vmatprep.subr.mxu0 0.0
    %1237 = vmatpush1.msra.mxu0 0.0
    %1238 = vmatprep.subr.mxu0 0.0
    %1239 = vmatpush1.msra.mxu0 0.0
    %1240 = vmatprep.subr.mxu0 0.0
    %1241 = vmatpush1.msra.mxu0 0.0
    %1242 = vmatprep.subr.mxu0 0.0
    %1243 = vmatpush1.msra.mxu0 0.0
    %1244 = vmatprep.subr.mxu0 0.0
    %1245 = vmatpush1.msra.mxu0 0.0
    %1246 = vmatprep.subr.mxu0 0.0
    %1247 = vmatpush1.msra.mxu0 0.0
    %1248 = vmatprep.subr.mxu0 0.0
    %1249 = vmatpush1.msra.mxu0 0.0
    %1250 = vmatprep.mubr.f32.mxu0 0.0
    %1251 = vmatmul.mubr.f32.gmra.mrb[0].mxu0 %v732
    %v1252 = vpop.f32.mrb[0].mxu0
    %v1253 = vadd.f32 0.0, %v1252
    %v1254 = vpop.f32.mrb[0].mxu0
    %v1255 = vadd.f32 0.0, %v1254
    %1256 = vdwg.mxu0
    %v1257 = vcombine.low %v1040, %v1111
    %v1258 = vcombine.high %v1040, %v1111
    %v1260 = vunpack.c.l.s4 1983009808
    %v1261 = vunpack.c.0.s8 %v1260
    %v1262 = vlaneseq
    %v1263 = vshrl.u32 %v1262, 7
    %v1264 = vsub.s32 %v1261, %v1263
    %v1265 = vrot.slane %v1257, %v1264
    %v1267 = vunpack.c.l.s4 1983009808
    %v1268 = vunpack.c.0.s8 %v1267
    %v1269 = vlaneseq
    %v1270 = vshrl.u32 %v1269, 7
    %v1271 = vsub.s32 %v1268, %v1270
    %v1272 = vrot.slane %v1258, %v1271
    %v1273 = vcombine.low %v1042, %v1113
    %v1274 = vcombine.high %v1042, %v1113
    %v1276 = vunpack.c.l.s4 1983009808
    %v1277 = vunpack.c.0.s8 %v1276
    %v1278 = vlaneseq
    %v1279 = vshrl.u32 %v1278, 7
    %v1280 = vsub.s32 %v1277, %v1279
    %v1281 = vrot.slane %v1273, %v1280
    %v1283 = vunpack.c.l.s4 1983009808
    %v1284 = vunpack.c.0.s8 %v1283
    %v1285 = vlaneseq
    %v1286 = vshrl.u32 %v1285, 7
    %v1287 = vsub.s32 %v1284, %v1286
    %v1288 = vrot.slane %v1274, %v1287
    %v1289 = vcombine.low %v1182, %v1253
    %v1290 = vcombine.high %v1182, %v1253
    %v1292 = vunpack.c.l.s4 1983009808
    %v1293 = vunpack.c.0.s8 %v1292
    %v1294 = vlaneseq
    %v1295 = vshrl.u32 %v1294, 7
    %v1296 = vsub.s32 %v1293, %v1295
    %v1297 = vrot.slane %v1289, %v1296
    %v1299 = vunpack.c.l.s4 1983009808
    %v1300 = vunpack.c.0.s8 %v1299
    %v1301 = vlaneseq
    %v1302 = vshrl.u32 %v1301, 7
    %v1303 = vsub.s32 %v1300, %v1302
    %v1304 = vrot.slane %v1290, %v1303
    %v1305 = vcombine.low %v1184, %v1255
    %v1306 = vcombine.high %v1184, %v1255
    %v1308 = vunpack.c.l.s4 1983009808
    %v1309 = vunpack.c.0.s8 %v1308
    %v1310 = vlaneseq
    %v1311 = vshrl.u32 %v1310, 7
    %v1312 = vsub.s32 %v1309, %v1311
    %v1313 = vrot.slane %v1305, %v1312
    %v1315 = vunpack.c.l.s4 1983009808
    %v1316 = vunpack.c.0.s8 %v1315
    %v1317 = vlaneseq
    %v1318 = vshrl.u32 %v1317, 7
    %v1319 = vsub.s32 %v1316, %v1318
    %v1320 = vrot.slane %v1306, %v1319
    %v1321 = vcombine.low %v1265, %v1281
    %v1322 = vcombine.high %v1265, %v1281
    %v1324 = vunpack.c.l.s4 1934713408
    %v1325 = vunpack.c.0.s8 %v1324
    %v1326 = vlaneseq
    %v1327 = vshrl.u32 %v1326, 7
    %v1328 = vsub.s32 %v1325, %v1327
    %v1329 = vrot.slane %v1321, %v1328
    %v1331 = vunpack.c.l.s4 1934713408
    %v1332 = vunpack.c.0.s8 %v1331
    %v1333 = vlaneseq
    %v1334 = vshrl.u32 %v1333, 7
    %v1335 = vsub.s32 %v1332, %v1334
    %v1336 = vrot.slane %v1322, %v1335
    %v1337 = vcombine.low %v1272, %v1288
    %v1338 = vcombine.high %v1272, %v1288
    %v1340 = vunpack.c.l.s4 1934713408
    %v1341 = vunpack.c.0.s8 %v1340
    %v1342 = vlaneseq
    %v1343 = vshrl.u32 %v1342, 7
    %v1344 = vsub.s32 %v1341, %v1343
    %v1345 = vrot.slane %v1337, %v1344
    %v1347 = vunpack.c.l.s4 1934713408
    %v1348 = vunpack.c.0.s8 %v1347
    %v1349 = vlaneseq
    %v1350 = vshrl.u32 %v1349, 7
    %v1351 = vsub.s32 %v1348, %v1350
    %v1352 = vrot.slane %v1338, %v1351
    %v1353 = vcombine.low %v1297, %v1313
    %v1354 = vcombine.high %v1297, %v1313
    %v1356 = vunpack.c.l.s4 1934713408
    %v1357 = vunpack.c.0.s8 %v1356
    %v1358 = vlaneseq
    %v1359 = vshrl.u32 %v1358, 7
    %v1360 = vsub.s32 %v1357, %v1359
    %v1361 = vrot.slane %v1353, %v1360
    %v1363 = vunpack.c.l.s4 1934713408
    %v1364 = vunpack.c.0.s8 %v1363
    %v1365 = vlaneseq
    %v1366 = vshrl.u32 %v1365, 7
    %v1367 = vsub.s32 %v1364, %v1366
    %v1368 = vrot.slane %v1354, %v1367
    %v1369 = vcombine.low %v1304, %v1320
    %v1370 = vcombine.high %v1304, %v1320
    %v1372 = vunpack.c.l.s4 1934713408
    %v1373 = vunpack.c.0.s8 %v1372
    %v1374 = vlaneseq
    %v1375 = vshrl.u32 %v1374, 7
    %v1376 = vsub.s32 %v1373, %v1375
    %v1377 = vrot.slane %v1369, %v1376
    %v1379 = vunpack.c.l.s4 1934713408
    %v1380 = vunpack.c.0.s8 %v1379
    %v1381 = vlaneseq
    %v1382 = vshrl.u32 %v1381, 7
    %v1383 = vsub.s32 %v1380, %v1382
    %v1384 = vrot.slane %v1370, %v1383
    %v1385 = vcombine.low %v1329, %v1361
    %v1386 = vcombine.high %v1329, %v1361
    %v1387 = vcombine.low %v1336, %v1368
    %v1388 = vcombine.high %v1336, %v1368
    %v1389 = vcombine.low %v1345, %v1377
    %v1390 = vcombine.high %v1345, %v1377
    %v1391 = vcombine.low %v1352, %v1384
    %v1392 = vcombine.high %v1352, %v1384
    %v1393 = vmul.f32 %v1385, %v739
    %v1394 = vmul.f32 %v1386, %v746
    %v1395 = vmul.f32 %v1387, %v753
    %v1396 = vmul.f32 %v1388, %v760
    %v1397 = vmul.f32 %v1389, %v767
    %v1398 = vmul.f32 %v1390, %v774
    %v1399 = vmul.f32 %v1391, %v781
    %v1400 = vmul.f32 %v1392, %v788
    %v1401 = vrot.slane %v1393, 4
    %v1402 = vadd.f32 %v1393, %v1401
    %v1403 = vrot.slane %v1402, 2
    %v1404 = vadd.f32 %v1402, %v1403
    %v1405 = vrot.slane %v1404, 1
    %v1406 = vadd.f32 %v1404, %v1405
    %v1407 = vrot.slane %v1394, 4
    %v1408 = vadd.f32 %v1394, %v1407
    %v1409 = vrot.slane %v1408, 2
    %v1410 = vadd.f32 %v1408, %v1409
    %v1411 = vrot.slane %v1410, 1
    %v1412 = vadd.f32 %v1410, %v1411
    %v1413 = vrot.slane %v1395, 4
    %v1414 = vadd.f32 %v1395, %v1413
    %v1415 = vrot.slane %v1414, 2
    %v1416 = vadd.f32 %v1414, %v1415
    %v1417 = vrot.slane %v1416, 1
    %v1418 = vadd.f32 %v1416, %v1417
    %v1419 = vrot.slane %v1396, 4
    %v1420 = vadd.f32 %v1396, %v1419
    %v1421 = vrot.slane %v1420, 2
    %v1422 = vadd.f32 %v1420, %v1421
    %v1423 = vrot.slane %v1422, 1
    %v1424 = vadd.f32 %v1422, %v1423
    %v1425 = vrot.slane %v1397, 4
    %v1426 = vadd.f32 %v1397, %v1425
    %v1427 = vrot.slane %v1426, 2
    %v1428 = vadd.f32 %v1426, %v1427
    %v1429 = vrot.slane %v1428, 1
    %v1430 = vadd.f32 %v1428, %v1429
    %v1431 = vrot.slane %v1398, 4
    %v1432 = vadd.f32 %v1398, %v1431
    %v1433 = vrot.slane %v1432, 2
    %v1434 = vadd.f32 %v1432, %v1433
    %v1435 = vrot.slane %v1434, 1
    %v1436 = vadd.f32 %v1434, %v1435
    %v1437 = vrot.slane %v1399, 4
    %v1438 = vadd.f32 %v1399, %v1437
    %v1439 = vrot.slane %v1438, 2
    %v1440 = vadd.f32 %v1438, %v1439
    %v1441 = vrot.slane %v1440, 1
    %v1442 = vadd.f32 %v1440, %v1441
    %v1443 = vrot.slane %v1400, 4
    %v1444 = vadd.f32 %v1400, %v1443
    %v1445 = vrot.slane %v1444, 2
    %v1446 = vadd.f32 %v1444, %v1445
    %v1447 = vrot.slane %v1446, 1
    %v1448 = vadd.f32 %v1446, %v1447
    %v1449 = vld [vmem:[#allocation19] sm:$0xff]
    %v1450 = vld [vmem:[#allocation19 + $0x8] sm:$0xff]
    %v1451 = vld [vmem:[#allocation19 + $0x10] sm:$0xff]
    %v1452 = vld [vmem:[#allocation19 + $0x18] sm:$0xff]
    %v1453 = vld [vmem:[#allocation19 + $0x20] sm:$0xff]
    %v1454 = vld [vmem:[#allocation19 + $0x28] sm:$0xff]
    %v1455 = vld [vmem:[#allocation19 + $0x30] sm:$0xff]
    %v1456 = vld [vmem:[#allocation19 + $0x38] sm:$0xff]
    %v1457 = vld [vmem:[#allocation19 + $0x40] sm:$0xff]
    %v1458 = vld [vmem:[#allocation19 + $0x48] sm:$0xff]
    %v1459 = vld [vmem:[#allocation19 + $0x50] sm:$0xff]
    %v1460 = vld [vmem:[#allocation19 + $0x58] sm:$0xff]
    %v1461 = vld [vmem:[#allocation19 + $0x60] sm:$0xff]
    %v1462 = vld [vmem:[#allocation19 + $0x68] sm:$0xff]
    %v1463 = vld [vmem:[#allocation19 + $0x70] sm:$0xff]
    %v1464 = vld [vmem:[#allocation19 + $0x78] sm:$0xff]
    %v1465 = vld [vmem:[#allocation19 + $0x80] sm:$0xff]
    %v1466 = vld [vmem:[#allocation19 + $0x88] sm:$0xff]
    %v1467 = vld [vmem:[#allocation19 + $0x90] sm:$0xff]
    %v1468 = vld [vmem:[#allocation19 + $0x98] sm:$0xff]
    %v1469 = vld [vmem:[#allocation19 + $0xa0] sm:$0xff]
    %v1470 = vld [vmem:[#allocation19 + $0xa8] sm:$0xff]
    %v1471 = vld [vmem:[#allocation19 + $0xb0] sm:$0xff]
    %v1472 = vld [vmem:[#allocation19 + $0xb8] sm:$0xff]
    %v1473 = vld [vmem:[#allocation19 + $0xc0] sm:$0xff]
    %v1474 = vld [vmem:[#allocation19 + $0xc8] sm:$0xff]
    %v1475 = vld [vmem:[#allocation19 + $0xd0] sm:$0xff]
    %v1476 = vld [vmem:[#allocation19 + $0xd8] sm:$0xff]
    %v1477 = vld [vmem:[#allocation19 + $0xe0] sm:$0xff]
    %v1478 = vld [vmem:[#allocation19 + $0xe8] sm:$0xff]
    %v1479 = vld [vmem:[#allocation19 + $0xf0] sm:$0xff]
    %v1480 = vld [vmem:[#allocation19 + $0xf8] sm:$0xff]
    %v1481 = vld [vmem:[#allocation19 + $0x100] sm:$0xff]
    %v1482 = vld [vmem:[#allocation19 + $0x108] sm:$0xff]
    %v1483 = vld [vmem:[#allocation19 + $0x110] sm:$0xff]
    %v1484 = vld [vmem:[#allocation19 + $0x118] sm:$0xff]
    %v1485 = vld [vmem:[#allocation19 + $0x120] sm:$0xff]
    %v1486 = vld [vmem:[#allocation19 + $0x128] sm:$0xff]
    %v1487 = vld [vmem:[#allocation19 + $0x130] sm:$0xff]
    %v1488 = vld [vmem:[#allocation19 + $0x138] sm:$0xff]
    %v1489 = vld [vmem:[#allocation19 + $0x140] sm:$0xff]
    %v1490 = vld [vmem:[#allocation19 + $0x148] sm:$0xff]
    %v1491 = vld [vmem:[#allocation19 + $0x150] sm:$0xff]
    %v1492 = vld [vmem:[#allocation19 + $0x158] sm:$0xff]
    %v1493 = vld [vmem:[#allocation19 + $0x160] sm:$0xff]
    %v1494 = vld [vmem:[#allocation19 + $0x168] sm:$0xff]
    %v1495 = vld [vmem:[#allocation19 + $0x170] sm:$0xff]
    %v1496 = vld [vmem:[#allocation19 + $0x178] sm:$0xff]
    %v1497 = vld [vmem:[#allocation19 + $0x180] sm:$0xff]
    %v1498 = vld [vmem:[#allocation19 + $0x188] sm:$0xff]
    %v1499 = vld [vmem:[#allocation19 + $0x190] sm:$0xff]
    %v1500 = vld [vmem:[#allocation19 + $0x198] sm:$0xff]
    %v1501 = vld [vmem:[#allocation19 + $0x1a0] sm:$0xff]
    %v1502 = vld [vmem:[#allocation19 + $0x1a8] sm:$0xff]
    %v1503 = vld [vmem:[#allocation19 + $0x1b0] sm:$0xff]
    %v1504 = vld [vmem:[#allocation19 + $0x1b8] sm:$0xff]
    %v1505 = vld [vmem:[#allocation19 + $0x1c0] sm:$0xff]
    %v1506 = vld [vmem:[#allocation19 + $0x1c8] sm:$0xff]
    %v1507 = vld [vmem:[#allocation19 + $0x1d0] sm:$0xff]
    %v1508 = vld [vmem:[#allocation19 + $0x1d8] sm:$0xff]
    %v1509 = vld [vmem:[#allocation19 + $0x1e0] sm:$0xff]
    %v1510 = vld [vmem:[#allocation19 + $0x1e8] sm:$0xff]
    %v1511 = vld [vmem:[#allocation19 + $0x1f0] sm:$0xff]
    %v1512 = vld [vmem:[#allocation19 + $0x1f8] sm:$0xff]
    %v1513 = vld [vmem:[#allocation19 + $0x200] sm:$0xff]
    %v1514 = vld [vmem:[#allocation19 + $0x208] sm:$0xff]
    %v1515 = vld [vmem:[#allocation19 + $0x210] sm:$0xff]
    %v1516 = vld [vmem:[#allocation19 + $0x218] sm:$0xff]
    %v1517 = vld [vmem:[#allocation19 + $0x220] sm:$0xff]
    %v1518 = vld [vmem:[#allocation19 + $0x228] sm:$0xff]
    %v1519 = vld [vmem:[#allocation19 + $0x230] sm:$0xff]
    %v1520 = vld [vmem:[#allocation19 + $0x238] sm:$0xff]
    %v1521 = vld [vmem:[#allocation19 + $0x240] sm:$0xff]
    %v1522 = vld [vmem:[#allocation19 + $0x248] sm:$0xff]
    %v1523 = vld [vmem:[#allocation19 + $0x250] sm:$0xff]
    %v1524 = vld [vmem:[#allocation19 + $0x258] sm:$0xff]
    %v1525 = vld [vmem:[#allocation19 + $0x260] sm:$0xff]
    %v1526 = vld [vmem:[#allocation19 + $0x268] sm:$0xff]
    %v1527 = vld [vmem:[#allocation19 + $0x270] sm:$0xff]
    %v1528 = vld [vmem:[#allocation19 + $0x278] sm:$0xff]
    %v1529 = vld [vmem:[#allocation19 + $0x280] sm:$0xff]
    %v1530 = vld [vmem:[#allocation19 + $0x288] sm:$0xff]
    %v1531 = vld [vmem:[#allocation19 + $0x290] sm:$0xff]
    %v1532 = vld [vmem:[#allocation19 + $0x298] sm:$0xff]
    %v1533 = vld [vmem:[#allocation19 + $0x2a0] sm:$0xff]
    %v1534 = vld [vmem:[#allocation19 + $0x2a8] sm:$0xff]
    %v1535 = vld [vmem:[#allocation19 + $0x2b0] sm:$0xff]
    %v1536 = vld [vmem:[#allocation19 + $0x2b8] sm:$0xff]
    %v1537 = vld [vmem:[#allocation19 + $0x2c0] sm:$0xff]
    %v1538 = vld [vmem:[#allocation19 + $0x2c8] sm:$0xff]
    %v1539 = vld [vmem:[#allocation19 + $0x2d0] sm:$0xff]
    %v1540 = vld [vmem:[#allocation19 + $0x2d8] sm:$0xff]
    %v1541 = vld [vmem:[#allocation19 + $0x2e0] sm:$0xff]
    %v1542 = vld [vmem:[#allocation19 + $0x2e8] sm:$0xff]
    %v1543 = vld [vmem:[#allocation19 + $0x2f0] sm:$0xff]
    %v1544 = vld [vmem:[#allocation19 + $0x2f8] sm:$0xff]
    %v1545 = vld [vmem:[#allocation19 + $0x300] sm:$0xff]
    %v1546 = vld [vmem:[#allocation19 + $0x308] sm:$0xff]
    %v1547 = vld [vmem:[#allocation19 + $0x310] sm:$0xff]
    %v1548 = vld [vmem:[#allocation19 + $0x318] sm:$0xff]
    %v1549 = vld [vmem:[#allocation19 + $0x320] sm:$0xff]
    %v1550 = vld [vmem:[#allocation19 + $0x328] sm:$0xff]
    %v1551 = vld [vmem:[#allocation19 + $0x330] sm:$0xff]
    %v1552 = vld [vmem:[#allocation19 + $0x338] sm:$0xff]
    %v1553 = vld [vmem:[#allocation19 + $0x340] sm:$0xff]
    %v1554 = vld [vmem:[#allocation19 + $0x348] sm:$0xff]
    %v1555 = vld [vmem:[#allocation19 + $0x350] sm:$0xff]
    %v1556 = vld [vmem:[#allocation19 + $0x358] sm:$0xff]
    %v1557 = vld [vmem:[#allocation19 + $0x360] sm:$0xff]
    %v1558 = vld [vmem:[#allocation19 + $0x368] sm:$0xff]
    %v1559 = vld [vmem:[#allocation19 + $0x370] sm:$0xff]
    %v1560 = vld [vmem:[#allocation19 + $0x378] sm:$0xff]
    %v1561 = vld [vmem:[#allocation19 + $0x380] sm:$0xff]
    %v1562 = vld [vmem:[#allocation19 + $0x388] sm:$0xff]
    %v1563 = vld [vmem:[#allocation19 + $0x390] sm:$0xff]
    %v1564 = vld [vmem:[#allocation19 + $0x398] sm:$0xff]
    %v1565 = vld [vmem:[#allocation19 + $0x3a0] sm:$0xff]
    %v1566 = vld [vmem:[#allocation19 + $0x3a8] sm:$0xff]
    %v1567 = vld [vmem:[#allocation19 + $0x3b0] sm:$0xff]
    %v1568 = vld [vmem:[#allocation19 + $0x3b8] sm:$0xff]
    %v1569 = vld [vmem:[#allocation19 + $0x3c0] sm:$0xff]
    %v1570 = vld [vmem:[#allocation19 + $0x3c8] sm:$0xff]
    %v1571 = vld [vmem:[#allocation19 + $0x3d0] sm:$0xff]
    %v1572 = vld [vmem:[#allocation19 + $0x3d8] sm:$0xff]
    %v1573 = vld [vmem:[#allocation19 + $0x3e0] sm:$0xff]
    %v1574 = vld [vmem:[#allocation19 + $0x3e8] sm:$0xff]
    %v1575 = vld [vmem:[#allocation19 + $0x3f0] sm:$0xff]
    %v1576 = vld [vmem:[#allocation19 + $0x3f8] sm:$0xff]
    %1577 = vmatprep.subr.mxu0 %v1450
    %1578 = vmatpush1.msra.mxu0 %v1449
    %1579 = vmatprep.subr.mxu0 %v1458
    %1580 = vmatpush1.msra.mxu0 %v1457
    %1581 = vmatprep.subr.mxu0 %v1466
    %1582 = vmatpush1.msra.mxu0 %v1465
    %1583 = vmatprep.subr.mxu0 %v1474
    %1584 = vmatpush1.msra.mxu0 %v1473
    %1585 = vmatprep.subr.mxu0 %v1482
    %1586 = vmatpush1.msra.mxu0 %v1481
    %1587 = vmatprep.subr.mxu0 %v1490
    %1588 = vmatpush1.msra.mxu0 %v1489
    %1589 = vmatprep.subr.mxu0 %v1498
    %1590 = vmatpush1.msra.mxu0 %v1497
    %1591 = vmatprep.subr.mxu0 %v1506
    %1592 = vmatpush1.msra.mxu0 %v1505
    %1593 = vmatprep.subr.mxu0 %v1514
    %1594 = vmatpush1.msra.mxu0 %v1513
    %1595 = vmatprep.subr.mxu0 %v1522
    %1596 = vmatpush1.msra.mxu0 %v1521
    %1597 = vmatprep.subr.mxu0 %v1530
    %1598 = vmatpush1.msra.mxu0 %v1529
    %1599 = vmatprep.subr.mxu0 %v1538
    %1600 = vmatpush1.msra.mxu0 %v1537
    %1601 = vmatprep.subr.mxu0 %v1546
    %1602 = vmatpush1.msra.mxu0 %v1545
    %1603 = vmatprep.subr.mxu0 %v1554
    %1604 = vmatpush1.msra.mxu0 %v1553
    %1605 = vmatprep.subr.mxu0 %v1562
    %1606 = vmatpush1.msra.mxu0 %v1561
    %1607 = vmatprep.subr.mxu0 %v1570
    %1608 = vmatpush1.msra.mxu0 %v1569
    %1609 = vmatprep.subr.mxu0 0.0
    %1610 = vmatpush1.msra.mxu0 0.0
    %1611 = vmatprep.subr.mxu0 0.0
    %1612 = vmatpush1.msra.mxu0 0.0
    %1613 = vmatprep.subr.mxu0 0.0
    %1614 = vmatpush1.msra.mxu0 0.0
    %1615 = vmatprep.subr.mxu0 0.0
    %1616 = vmatpush1.msra.mxu0 0.0
    %1617 = vmatprep.subr.mxu0 0.0
    %1618 = vmatpush1.msra.mxu0 0.0
    %1619 = vmatprep.subr.mxu0 0.0
    %1620 = vmatpush1.msra.mxu0 0.0
    %1621 = vmatprep.subr.mxu0 0.0
    %1622 = vmatpush1.msra.mxu0 0.0
    %1623 = vmatprep.subr.mxu0 0.0
    %1624 = vmatpush1.msra.mxu0 0.0
    %1625 = vmatprep.subr.mxu0 0.0
    %1626 = vmatpush1.msra.mxu0 0.0
    %1627 = vmatprep.subr.mxu0 0.0
    %1628 = vmatpush1.msra.mxu0 0.0
    %1629 = vmatprep.subr.mxu0 0.0
    %1630 = vmatpush1.msra.mxu0 0.0
    %1631 = vmatprep.subr.mxu0 0.0
    %1632 = vmatpush1.msra.mxu0 0.0
    %1633 = vmatprep.subr.mxu0 0.0
    %1634 = vmatpush1.msra.mxu0 0.0
    %1635 = vmatprep.subr.mxu0 0.0
    %1636 = vmatpush1.msra.mxu0 0.0
    %1637 = vmatprep.subr.mxu0 0.0
    %1638 = vmatpush1.msra.mxu0 0.0
    %1639 = vmatprep.subr.mxu0 0.0
    %1640 = vmatpush1.msra.mxu0 0.0
    %1641 = vmatprep.mubr.f32.mxu0 0.0
    %1642 = vmatmul.mubr.f32.gmra.mrb[0].mxu0 %v715
    %v1643 = vpop.f32.mrb[0].mxu0
    %v1644 = vadd.f32 0.0, %v1643
    %v1645 = vpop.f32.mrb[0].mxu0
    %v1646 = vadd.f32 0.0, %v1645
    %1647 = vdwg.mxu0
    %1648 = vmatprep.subr.mxu0 %v1452
    %1649 = vmatpush1.msra.mxu0 %v1451
    %1650 = vmatprep.subr.mxu0 %v1460
    %1651 = vmatpush1.msra.mxu0 %v1459
    %1652 = vmatprep.subr.mxu0 %v1468
    %1653 = vmatpush1.msra.mxu0 %v1467
    %1654 = vmatprep.subr.mxu0 %v1476
    %1655 = vmatpush1.msra.mxu0 %v1475
    %1656 = vmatprep.subr.mxu0 %v1484
    %1657 = vmatpush1.msra.mxu0 %v1483
    %1658 = vmatprep.subr.mxu0 %v1492
    %1659 = vmatpush1.msra.mxu0 %v1491
    %1660 = vmatprep.subr.mxu0 %v1500
    %1661 = vmatpush1.msra.mxu0 %v1499
    %1662 = vmatprep.subr.mxu0 %v1508
    %1663 = vmatpush1.msra.mxu0 %v1507
    %1664 = vmatprep.subr.mxu0 %v1516
    %1665 = vmatpush1.msra.mxu0 %v1515
    %1666 = vmatprep.subr.mxu0 %v1524
    %1667 = vmatpush1.msra.mxu0 %v1523
    %1668 = vmatprep.subr.mxu0 %v1532
    %1669 = vmatpush1.msra.mxu0 %v1531
    %1670 = vmatprep.subr.mxu0 %v1540
    %1671 = vmatpush1.msra.mxu0 %v1539
    %1672 = vmatprep.subr.mxu0 %v1548
    %1673 = vmatpush1.msra.mxu0 %v1547
    %1674 = vmatprep.subr.mxu0 %v1556
    %1675 = vmatpush1.msra.mxu0 %v1555
    %1676 = vmatprep.subr.mxu0 %v1564
    %1677 = vmatpush1.msra.mxu0 %v1563
    %1678 = vmatprep.subr.mxu0 %v1572
    %1679 = vmatpush1.msra.mxu0 %v1571
    %1680 = vmatprep.subr.mxu0 0.0
    %1681 = vmatpush1.msra.mxu0 0.0
    %1682 = vmatprep.subr.mxu0 0.0
    %1683 = vmatpush1.msra.mxu0 0.0
    %1684 = vmatprep.subr.mxu0 0.0
    %1685 = vmatpush1.msra.mxu0 0.0
    %1686 = vmatprep.subr.mxu0 0.0
    %1687 = vmatpush1.msra.mxu0 0.0
    %1688 = vmatprep.subr.mxu0 0.0
    %1689 = vmatpush1.msra.mxu0 0.0
    %1690 = vmatprep.subr.mxu0 0.0
    %1691 = vmatpush1.msra.mxu0 0.0
    %1692 = vmatprep.subr.mxu0 0.0
    %1693 = vmatpush1.msra.mxu0 0.0
    %1694 = vmatprep.subr.mxu0 0.0
    %1695 = vmatpush1.msra.mxu0 0.0
    %1696 = vmatprep.subr.mxu0 0.0
    %1697 = vmatpush1.msra.mxu0 0.0
    %1698 = vmatprep.subr.mxu0 0.0
    %1699 = vmatpush1.msra.mxu0 0.0
    %1700 = vmatprep.subr.mxu0 0.0
    %1701 = vmatpush1.msra.mxu0 0.0
    %1702 = vmatprep.subr.mxu0 0.0
    %1703 = vmatpush1.msra.mxu0 0.0
    %1704 = vmatprep.subr.mxu0 0.0
    %1705 = vmatpush1.msra.mxu0 0.0
    %1706 = vmatprep.subr.mxu0 0.0
    %1707 = vmatpush1.msra.mxu0 0.0
    %1708 = vmatprep.subr.mxu0 0.0
    %1709 = vmatpush1.msra.mxu0 0.0
    %1710 = vmatprep.subr.mxu0 0.0
    %1711 = vmatpush1.msra.mxu0 0.0
    %1712 = vmatprep.mubr.f32.mxu0 0.0
    %1713 = vmatmul.mubr.f32.gmra.mrb[0].mxu0 %v715
    %v1714 = vpop.f32.mrb[0].mxu0
    %v1715 = vadd.f32 0.0, %v1714
    %v1716 = vpop.f32.mrb[0].mxu0
    %v1717 = vadd.f32 0.0, %v1716
    %1718 = vdwg.mxu0
    %1719 = vmatprep.subr.mxu0 %v1454
    %1720 = vmatpush1.msra.mxu0 %v1453
    %1721 = vmatprep.subr.mxu0 %v1462
    %1722 = vmatpush1.msra.mxu0 %v1461
    %1723 = vmatprep.subr.mxu0 %v1470
    %1724 = vmatpush1.msra.mxu0 %v1469
    %1725 = vmatprep.subr.mxu0 %v1478
    %1726 = vmatpush1.msra.mxu0 %v1477
    %1727 = vmatprep.subr.mxu0 %v1486
    %1728 = vmatpush1.msra.mxu0 %v1485
    %1729 = vmatprep.subr.mxu0 %v1494
    %1730 = vmatpush1.msra.mxu0 %v1493
    %1731 = vmatprep.subr.mxu0 %v1502
    %1732 = vmatpush1.msra.mxu0 %v1501
    %1733 = vmatprep.subr.mxu0 %v1510
    %1734 = vmatpush1.msra.mxu0 %v1509
    %1735 = vmatprep.subr.mxu0 %v1518
    %1736 = vmatpush1.msra.mxu0 %v1517
    %1737 = vmatprep.subr.mxu0 %v1526
    %1738 = vmatpush1.msra.mxu0 %v1525
    %1739 = vmatprep.subr.mxu0 %v1534
    %1740 = vmatpush1.msra.mxu0 %v1533
    %1741 = vmatprep.subr.mxu0 %v1542
    %1742 = vmatpush1.msra.mxu0 %v1541
    %1743 = vmatprep.subr.mxu0 %v1550
    %1744 = vmatpush1.msra.mxu0 %v1549
    %1745 = vmatprep.subr.mxu0 %v1558
    %1746 = vmatpush1.msra.mxu0 %v1557
    %1747 = vmatprep.subr.mxu0 %v1566
    %1748 = vmatpush1.msra.mxu0 %v1565
    %1749 = vmatprep.subr.mxu0 %v1574
    %1750 = vmatpush1.msra.mxu0 %v1573
    %1751 = vmatprep.subr.mxu0 0.0
    %1752 = vmatpush1.msra.mxu0 0.0
    %1753 = vmatprep.subr.mxu0 0.0
    %1754 = vmatpush1.msra.mxu0 0.0
    %1755 = vmatprep.subr.mxu0 0.0
    %1756 = vmatpush1.msra.mxu0 0.0
    %1757 = vmatprep.subr.mxu0 0.0
    %1758 = vmatpush1.msra.mxu0 0.0
    %1759 = vmatprep.subr.mxu0 0.0
    %1760 = vmatpush1.msra.mxu0 0.0
    %1761 = vmatprep.subr.mxu0 0.0
    %1762 = vmatpush1.msra.mxu0 0.0
    %1763 = vmatprep.subr.mxu0 0.0
    %1764 = vmatpush1.msra.mxu0 0.0
    %1765 = vmatprep.subr.mxu0 0.0
    %1766 = vmatpush1.msra.mxu0 0.0
    %1767 = vmatprep.subr.mxu0 0.0
    %1768 = vmatpush1.msra.mxu0 0.0
    %1769 = vmatprep.subr.mxu0 0.0
    %1770 = vmatpush1.msra.mxu0 0.0
    %1771 = vmatprep.subr.mxu0 0.0
    %1772 = vmatpush1.msra.mxu0 0.0
    %1773 = vmatprep.subr.mxu0 0.0
    %1774 = vmatpush1.msra.mxu0 0.0
    %1775 = vmatprep.subr.mxu0 0.0
    %1776 = vmatpush1.msra.mxu0 0.0
    %1777 = vmatprep.subr.mxu0 0.0
    %1778 = vmatpush1.msra.mxu0 0.0
    %1779 = vmatprep.subr.mxu0 0.0
    %1780 = vmatpush1.msra.mxu0 0.0
    %1781 = vmatprep.subr.mxu0 0.0
    %1782 = vmatpush1.msra.mxu0 0.0
    %1783 = vmatprep.mubr.f32.mxu0 0.0
    %1784 = vmatmul.mubr.f32.gmra.mrb[0].mxu0 %v715
    %v1785 = vpop.f32.mrb[0].mxu0
    %v1786 = vadd.f32 0.0, %v1785
    %v1787 = vpop.f32.mrb[0].mxu0
    %v1788 = vadd.f32 0.0, %v1787
    %1789 = vdwg.mxu0
    %1790 = vmatprep.subr.mxu0 %v1456
    %1791 = vmatpush1.msra.mxu0 %v1455
    %1792 = vmatprep.subr.mxu0 %v1464
    %1793 = vmatpush1.msra.mxu0 %v1463
    %1794 = vmatprep.subr.mxu0 %v1472
    %1795 = vmatpush1.msra.mxu0 %v1471
    %1796 = vmatprep.subr.mxu0 %v1480
    %1797 = vmatpush1.msra.mxu0 %v1479
    %1798 = vmatprep.subr.mxu0 %v1488
    %1799 = vmatpush1.msra.mxu0 %v1487
    %1800 = vmatprep.subr.mxu0 %v1496
    %1801 = vmatpush1.msra.mxu0 %v1495
    %1802 = vmatprep.subr.mxu0 %v1504
    %1803 = vmatpush1.msra.mxu0 %v1503
    %1804 = vmatprep.subr.mxu0 %v1512
    %1805 = vmatpush1.msra.mxu0 %v1511
    %1806 = vmatprep.subr.mxu0 %v1520
    %1807 = vmatpush1.msra.mxu0 %v1519
    %1808 = vmatprep.subr.mxu0 %v1528
    %1809 = vmatpush1.msra.mxu0 %v1527
    %1810 = vmatprep.subr.mxu0 %v1536
    %1811 = vmatpush1.msra.mxu0 %v1535
    %1812 = vmatprep.subr.mxu0 %v1544
    %1813 = vmatpush1.msra.mxu0 %v1543
    %1814 = vmatprep.subr.mxu0 %v1552
    %1815 = vmatpush1.msra.mxu0 %v1551
    %1816 = vmatprep.subr.mxu0 %v1560
    %1817 = vmatpush1.msra.mxu0 %v1559
    %1818 = vmatprep.subr.mxu0 %v1568
    %1819 = vmatpush1.msra.mxu0 %v1567
    %1820 = vmatprep.subr.mxu0 %v1576
    %1821 = vmatpush1.msra.mxu0 %v1575
    %1822 = vmatprep.subr.mxu0 0.0
    %1823 = vmatpush1.msra.mxu0 0.0
    %1824 = vmatprep.subr.mxu0 0.0
    %1825 = vmatpush1.msra.mxu0 0.0
    %1826 = vmatprep.subr.mxu0 0.0
    %1827 = vmatpush1.msra.mxu0 0.0
    %1828 = vmatprep.subr.mxu0 0.0
    %1829 = vmatpush1.msra.mxu0 0.0
    %1830 = vmatprep.subr.mxu0 0.0
    %1831 = vmatpush1.msra.mxu0 0.0
    %1832 = vmatprep.subr.mxu0 0.0
    %1833 = vmatpush1.msra.mxu0 0.0
    %1834 = vmatprep.subr.mxu0 0.0
    %1835 = vmatpush1.msra.mxu0 0.0
    %1836 = vmatprep.subr.mxu0 0.0
    %1837 = vmatpush1.msra.mxu0 0.0
    %1838 = vmatprep.subr.mxu0 0.0
    %1839 = vmatpush1.msra.mxu0 0.0
    %1840 = vmatprep.subr.mxu0 0.0
    %1841 = vmatpush1.msra.mxu0 0.0
    %1842 = vmatprep.subr.mxu0 0.0
    %1843 = vmatpush1.msra.mxu0 0.0
    %1844 = vmatprep.subr.mxu0 0.0
    %1845 = vmatpush1.msra.mxu0 0.0
    %1846 = vmatprep.subr.mxu0 0.0
    %1847 = vmatpush1.msra.mxu0 0.0
    %1848 = vmatprep.subr.mxu0 0.0
    %1849 = vmatpush1.msra.mxu0 0.0
    %1850 = vmatprep.subr.mxu0 0.0
    %1851 = vmatpush1.msra.mxu0 0.0
    %1852 = vmatprep.subr.mxu0 0.0
    %1853 = vmatpush1.msra.mxu0 0.0
    %1854 = vmatprep.mubr.f32.mxu0 0.0
    %1855 = vmatmul.mubr.f32.gmra.mrb[0].mxu0 %v715
    %v1856 = vpop.f32.mrb[0].mxu0
    %v1857 = vadd.f32 0.0, %v1856
    %v1858 = vpop.f32.mrb[0].mxu0
    %v1859 = vadd.f32 0.0, %v1858
    %1860 = vdwg.mxu0
    %v1861 = vcombine.low %v1644, %v1715
    %v1862 = vcombine.high %v1644, %v1715
    %v1864 = vunpack.c.l.s4 1983009808
    %v1865 = vunpack.c.0.s8 %v1864
    %v1866 = vlaneseq
    %v1867 = vshrl.u32 %v1866, 7
    %v1868 = vsub.s32 %v1865, %v1867
    %v1869 = vrot.slane %v1861, %v1868
    %v1871 = vunpack.c.l.s4 1983009808
    %v1872 = vunpack.c.0.s8 %v1871
    %v1873 = vlaneseq
    %v1874 = vshrl.u32 %v1873, 7
    %v1875 = vsub.s32 %v1872, %v1874
    %v1876 = vrot.slane %v1862, %v1875
    %v1877 = vcombine.low %v1646, %v1717
    %v1878 = vcombine.high %v1646, %v1717
    %v1880 = vunpack.c.l.s4 1983009808
    %v1881 = vunpack.c.0.s8 %v1880
    %v1882 = vlaneseq
    %v1883 = vshrl.u32 %v1882, 7
    %v1884 = vsub.s32 %v1881, %v1883
    %v1885 = vrot.slane %v1877, %v1884
    %v1887 = vunpack.c.l.s4 1983009808
    %v1888 = vunpack.c.0.s8 %v1887
    %v1889 = vlaneseq
    %v1890 = vshrl.u32 %v1889, 7
    %v1891 = vsub.s32 %v1888, %v1890
    %v1892 = vrot.slane %v1878, %v1891
    %v1893 = vcombine.low %v1786, %v1857
    %v1894 = vcombine.high %v1786, %v1857
    %v1896 = vunpack.c.l.s4 1983009808
    %v1897 = vunpack.c.0.s8 %v1896
    %v1898 = vlaneseq
    %v1899 = vshrl.u32 %v1898, 7
    %v1900 = vsub.s32 %v1897, %v1899
    %v1901 = vrot.slane %v1893, %v1900
    %v1903 = vunpack.c.l.s4 1983009808
    %v1904 = vunpack.c.0.s8 %v1903
    %v1905 = vlaneseq
    %v1906 = vshrl.u32 %v1905, 7
    %v1907 = vsub.s32 %v1904, %v1906
    %v1908 = vrot.slane %v1894, %v1907
    %v1909 = vcombine.low %v1788, %v1859
    %v1910 = vcombine.high %v1788, %v1859
    %v1912 = vunpack.c.l.s4 1983009808
    %v1913 = vunpack.c.0.s8 %v1912
    %v1914 = vlaneseq
    %v1915 = vshrl.u32 %v1914, 7
    %v1916 = vsub.s32 %v1913, %v1915
    %v1917 = vrot.slane %v1909, %v1916
    %v1919 = vunpack.c.l.s4 1983009808
    %v1920 = vunpack.c.0.s8 %v1919
    %v1921 = vlaneseq
    %v1922 = vshrl.u32 %v1921, 7
    %v1923 = vsub.s32 %v1920, %v1922
    %v1924 = vrot.slane %v1910, %v1923
    %v1925 = vcombine.low %v1869, %v1885
    %v1926 = vcombine.high %v1869, %v1885
    %v1928 = vunpack.c.l.s4 1934713408
    %v1929 = vunpack.c.0.s8 %v1928
    %v1930 = vlaneseq
    %v1931 = vshrl.u32 %v1930, 7
    %v1932 = vsub.s32 %v1929, %v1931
    %v1933 = vrot.slane %v1925, %v1932
    %v1935 = vunpack.c.l.s4 1934713408
    %v1936 = vunpack.c.0.s8 %v1935
    %v1937 = vlaneseq
    %v1938 = vshrl.u32 %v1937, 7
    %v1939 = vsub.s32 %v1936, %v1938
    %v1940 = vrot.slane %v1926, %v1939
    %v1941 = vcombine.low %v1876, %v1892
    %v1942 = vcombine.high %v1876, %v1892
    %v1944 = vunpack.c.l.s4 1934713408
    %v1945 = vunpack.c.0.s8 %v1944
    %v1946 = vlaneseq
    %v1947 = vshrl.u32 %v1946, 7
    %v1948 = vsub.s32 %v1945, %v1947
    %v1949 = vrot.slane %v1941, %v1948
    %v1951 = vunpack.c.l.s4 1934713408
    %v1952 = vunpack.c.0.s8 %v1951
    %v1953 = vlaneseq
    %v1954 = vshrl.u32 %v1953, 7
    %v1955 = vsub.s32 %v1952, %v1954
    %v1956 = vrot.slane %v1942, %v1955
    %v1957 = vcombine.low %v1901, %v1917
    %v1958 = vcombine.high %v1901, %v1917
    %v1960 = vunpack.c.l.s4 1934713408
    %v1961 = vunpack.c.0.s8 %v1960
    %v1962 = vlaneseq
    %v1963 = vshrl.u32 %v1962, 7
    %v1964 = vsub.s32 %v1961, %v1963
    %v1965 = vrot.slane %v1957, %v1964
    %v1967 = vunpack.c.l.s4 1934713408
    %v1968 = vunpack.c.0.s8 %v1967
    %v1969 = vlaneseq
    %v1970 = vshrl.u32 %v1969, 7
    %v1971 = vsub.s32 %v1968, %v1970
    %v1972 = vrot.slane %v1958, %v1971
    %v1973 = vcombine.low %v1908, %v1924
    %v1974 = vcombine.high %v1908, %v1924
    %v1976 = vunpack.c.l.s4 1934713408
    %v1977 = vunpack.c.0.s8 %v1976
    %v1978 = vlaneseq
    %v1979 = vshrl.u32 %v1978, 7
    %v1980 = vsub.s32 %v1977, %v1979
    %v1981 = vrot.slane %v1973, %v1980
    %v1983 = vunpack.c.l.s4 1934713408
    %v1984 = vunpack.c.0.s8 %v1983
    %v1985 = vlaneseq
    %v1986 = vshrl.u32 %v1985, 7
    %v1987 = vsub.s32 %v1984, %v1986
    %v1988 = vrot.slane %v1974, %v1987
    %v1989 = vcombine.low %v1933, %v1965
    %v1990 = vcombine.high %v1933, %v1965
    %v1991 = vcombine.low %v1940, %v1972
    %v1992 = vcombine.high %v1940, %v1972
    %v1993 = vcombine.low %v1949, %v1981
    %v1994 = vcombine.high %v1949, %v1981
    %v1995 = vcombine.low %v1956, %v1988
    %v1996 = vcombine.high %v1956, %v1988
    %v1997 = vmul.f32 %v1989, %v795
    %v1998 = vmul.f32 %v1990, %v802
    %v1999 = vmul.f32 %v1991, %v809
    %v2000 = vmul.f32 %v1992, %v816
    %v2001 = vmul.f32 %v1993, %v823
    %v2002 = vmul.f32 %v1994, %v830
    %v2003 = vmul.f32 %v1995, %v837
    %v2004 = vmul.f32 %v1996, %v844
    %v2005 = vrot.slane %v1997, 4
    %v2006 = vadd.f32 %v1997, %v2005
    %v2007 = vrot.slane %v2006, 2
    %v2008 = vadd.f32 %v2006, %v2007
    %v2009 = vrot.slane %v2008, 1
    %v2010 = vadd.f32 %v2008, %v2009
    %v2011 = vrot.slane %v1998, 4
    %v2012 = vadd.f32 %v1998, %v2011
    %v2013 = vrot.slane %v2012, 2
    %v2014 = vadd.f32 %v2012, %v2013
    %v2015 = vrot.slane %v2014, 1
    %v2016 = vadd.f32 %v2014, %v2015
    %v2017 = vrot.slane %v1999, 4
    %v2018 = vadd.f32 %v1999, %v2017
    %v2019 = vrot.slane %v2018, 2
    %v2020 = vadd.f32 %v2018, %v2019
    %v2021 = vrot.slane %v2020, 1
    %v2022 = vadd.f32 %v2020, %v2021
    %v2023 = vrot.slane %v2000, 4
    %v2024 = vadd.f32 %v2000, %v2023
    %v2025 = vrot.slane %v2024, 2
    %v2026 = vadd.f32 %v2024, %v2025
    %v2027 = vrot.slane %v2026, 1
    %v2028 = vadd.f32 %v2026, %v2027
    %v2029 = vrot.slane %v2001, 4
    %v2030 = vadd.f32 %v2001, %v2029
    %v2031 = vrot.slane %v2030, 2
    %v2032 = vadd.f32 %v2030, %v2031
    %v2033 = vrot.slane %v2032, 1
    %v2034 = vadd.f32 %v2032, %v2033
    %v2035 = vrot.slane %v2002, 4
    %v2036 = vadd.f32 %v2002, %v2035
    %v2037 = vrot.slane %v2036, 2
    %v2038 = vadd.f32 %v2036, %v2037
    %v2039 = vrot.slane %v2038, 1
    %v2040 = vadd.f32 %v2038, %v2039
    %v2041 = vrot.slane %v2003, 4
    %v2042 = vadd.f32 %v2003, %v2041
    %v2043 = vrot.slane %v2042, 2
    %v2044 = vadd.f32 %v2042, %v2043
    %v2045 = vrot.slane %v2044, 1
    %v2046 = vadd.f32 %v2044, %v2045
    %v2047 = vrot.slane %v2004, 4
    %v2048 = vadd.f32 %v2004, %v2047
    %v2049 = vrot.slane %v2048, 2
    %v2050 = vadd.f32 %v2048, %v2049
    %v2051 = vrot.slane %v2050, 1
    %v2052 = vadd.f32 %v2050, %v2051
    %v2053 = vld [vmem:[#allocation20] sm:$0xff]
    %v2054 = vld [vmem:[#allocation20 + $0x8] sm:$0xff]
    %v2055 = vld [vmem:[#allocation20 + $0x10] sm:$0xff]
    %v2056 = vld [vmem:[#allocation20 + $0x18] sm:$0xff]
    %v2057 = vld [vmem:[#allocation20 + $0x20] sm:$0xff]
    %v2058 = vld [vmem:[#allocation20 + $0x28] sm:$0xff]
    %v2059 = vld [vmem:[#allocation20 + $0x30] sm:$0xff]
    %v2060 = vld [vmem:[#allocation20 + $0x38] sm:$0xff]
    %v2061 = vld [vmem:[#allocation20 + $0x40] sm:$0xff]
    %v2062 = vld [vmem:[#allocation20 + $0x48] sm:$0xff]
    %v2063 = vld [vmem:[#allocation20 + $0x50] sm:$0xff]
    %v2064 = vld [vmem:[#allocation20 + $0x58] sm:$0xff]
    %v2065 = vld [vmem:[#allocation20 + $0x60] sm:$0xff]
    %v2066 = vld [vmem:[#allocation20 + $0x68] sm:$0xff]
    %v2067 = vld [vmem:[#allocation20 + $0x70] sm:$0xff]
    %v2068 = vld [vmem:[#allocation20 + $0x78] sm:$0xff]
    %v2069 = vld [vmem:[#allocation20 + $0x80] sm:$0xff]
    %v2070 = vld [vmem:[#allocation20 + $0x88] sm:$0xff]
    %v2071 = vld [vmem:[#allocation20 + $0x90] sm:$0xff]
    %v2072 = vld [vmem:[#allocation20 + $0x98] sm:$0xff]
    %v2073 = vld [vmem:[#allocation20 + $0xa0] sm:$0xff]
    %v2074 = vld [vmem:[#allocation20 + $0xa8] sm:$0xff]
    %v2075 = vld [vmem:[#allocation20 + $0xb0] sm:$0xff]
    %v2076 = vld [vmem:[#allocation20 + $0xb8] sm:$0xff]
    %v2077 = vld [vmem:[#allocation20 + $0xc0] sm:$0xff]
    %v2078 = vld [vmem:[#allocation20 + $0xc8] sm:$0xff]
    %v2079 = vld [vmem:[#allocation20 + $0xd0] sm:$0xff]
    %v2080 = vld [vmem:[#allocation20 + $0xd8] sm:$0xff]
    %v2081 = vld [vmem:[#allocation20 + $0xe0] sm:$0xff]
    %v2082 = vld [vmem:[#allocation20 + $0xe8] sm:$0xff]
    %v2083 = vld [vmem:[#allocation20 + $0xf0] sm:$0xff]
    %v2084 = vld [vmem:[#allocation20 + $0xf8] sm:$0xff]
    %v2085 = vld [vmem:[#allocation20 + $0x100] sm:$0xff]
    %v2086 = vld [vmem:[#allocation20 + $0x108] sm:$0xff]
    %v2087 = vld [vmem:[#allocation20 + $0x110] sm:$0xff]
    %v2088 = vld [vmem:[#allocation20 + $0x118] sm:$0xff]
    %v2089 = vld [vmem:[#allocation20 + $0x120] sm:$0xff]
    %v2090 = vld [vmem:[#allocation20 + $0x128] sm:$0xff]
    %v2091 = vld [vmem:[#allocation20 + $0x130] sm:$0xff]
    %v2092 = vld [vmem:[#allocation20 + $0x138] sm:$0xff]
    %v2093 = vld [vmem:[#allocation20 + $0x140] sm:$0xff]
    %v2094 = vld [vmem:[#allocation20 + $0x148] sm:$0xff]
    %v2095 = vld [vmem:[#allocation20 + $0x150] sm:$0xff]
    %v2096 = vld [vmem:[#allocation20 + $0x158] sm:$0xff]
    %v2097 = vld [vmem:[#allocation20 + $0x160] sm:$0xff]
    %v2098 = vld [vmem:[#allocation20 + $0x168] sm:$0xff]
    %v2099 = vld [vmem:[#allocation20 + $0x170] sm:$0xff]
    %v2100 = vld [vmem:[#allocation20 + $0x178] sm:$0xff]
    %v2101 = vld [vmem:[#allocation20 + $0x180] sm:$0xff]
    %v2102 = vld [vmem:[#allocation20 + $0x188] sm:$0xff]
    %v2103 = vld [vmem:[#allocation20 + $0x190] sm:$0xff]
    %v2104 = vld [vmem:[#allocation20 + $0x198] sm:$0xff]
    %v2105 = vld [vmem:[#allocation20 + $0x1a0] sm:$0xff]
    %v2106 = vld [vmem:[#allocation20 + $0x1a8] sm:$0xff]
    %v2107 = vld [vmem:[#allocation20 + $0x1b0] sm:$0xff]
    %v2108 = vld [vmem:[#allocation20 + $0x1b8] sm:$0xff]
    %v2109 = vld [vmem:[#allocation20 + $0x1c0] sm:$0xff]
    %v2110 = vld [vmem:[#allocation20 + $0x1c8] sm:$0xff]
    %v2111 = vld [vmem:[#allocation20 + $0x1d0] sm:$0xff]
    %v2112 = vld [vmem:[#allocation20 + $0x1d8] sm:$0xff]
    %v2113 = vld [vmem:[#allocation20 + $0x1e0] sm:$0xff]
    %v2114 = vld [vmem:[#allocation20 + $0x1e8] sm:$0xff]
    %v2115 = vld [vmem:[#allocation20 + $0x1f0] sm:$0xff]
    %v2116 = vld [vmem:[#allocation20 + $0x1f8] sm:$0xff]
    %v2117 = vld [vmem:[#allocation20 + $0x200] sm:$0xff]
    %v2118 = vld [vmem:[#allocation20 + $0x208] sm:$0xff]
    %v2119 = vld [vmem:[#allocation20 + $0x210] sm:$0xff]
    %v2120 = vld [vmem:[#allocation20 + $0x218] sm:$0xff]
    %v2121 = vld [vmem:[#allocation20 + $0x220] sm:$0xff]
    %v2122 = vld [vmem:[#allocation20 + $0x228] sm:$0xff]
    %v2123 = vld [vmem:[#allocation20 + $0x230] sm:$0xff]
    %v2124 = vld [vmem:[#allocation20 + $0x238] sm:$0xff]
    %v2125 = vld [vmem:[#allocation20 + $0x240] sm:$0xff]
    %v2126 = vld [vmem:[#allocation20 + $0x248] sm:$0xff]
    %v2127 = vld [vmem:[#allocation20 + $0x250] sm:$0xff]
    %v2128 = vld [vmem:[#allocation20 + $0x258] sm:$0xff]
    %v2129 = vld [vmem:[#allocation20 + $0x260] sm:$0xff]
    %v2130 = vld [vmem:[#allocation20 + $0x268] sm:$0xff]
    %v2131 = vld [vmem:[#allocation20 + $0x270] sm:$0xff]
    %v2132 = vld [vmem:[#allocation20 + $0x278] sm:$0xff]
    %v2133 = vld [vmem:[#allocation20 + $0x280] sm:$0xff]
    %v2134 = vld [vmem:[#allocation20 + $0x288] sm:$0xff]
    %v2135 = vld [vmem:[#allocation20 + $0x290] sm:$0xff]
    %v2136 = vld [vmem:[#allocation20 + $0x298] sm:$0xff]
    %v2137 = vld [vmem:[#allocation20 + $0x2a0] sm:$0xff]
    %v2138 = vld [vmem:[#allocation20 + $0x2a8] sm:$0xff]
    %v2139 = vld [vmem:[#allocation20 + $0x2b0] sm:$0xff]
    %v2140 = vld [vmem:[#allocation20 + $0x2b8] sm:$0xff]
    %v2141 = vld [vmem:[#allocation20 + $0x2c0] sm:$0xff]
    %v2142 = vld [vmem:[#allocation20 + $0x2c8] sm:$0xff]
    %v2143 = vld [vmem:[#allocation20 + $0x2d0] sm:$0xff]
    %v2144 = vld [vmem:[#allocation20 + $0x2d8] sm:$0xff]
    %v2145 = vld [vmem:[#allocation20 + $0x2e0] sm:$0xff]
    %v2146 = vld [vmem:[#allocation20 + $0x2e8] sm:$0xff]
    %v2147 = vld [vmem:[#allocation20 + $0x2f0] sm:$0xff]
    %v2148 = vld [vmem:[#allocation20 + $0x2f8] sm:$0xff]
    %v2149 = vld [vmem:[#allocation20 + $0x300] sm:$0xff]
    %v2150 = vld [vmem:[#allocation20 + $0x308] sm:$0xff]
    %v2151 = vld [vmem:[#allocation20 + $0x310] sm:$0xff]
    %v2152 = vld [vmem:[#allocation20 + $0x318] sm:$0xff]
    %v2153 = vld [vmem:[#allocation20 + $0x320] sm:$0xff]
    %v2154 = vld [vmem:[#allocation20 + $0x328] sm:$0xff]
    %v2155 = vld [vmem:[#allocation20 + $0x330] sm:$0xff]
    %v2156 = vld [vmem:[#allocation20 + $0x338] sm:$0xff]
    %v2157 = vld [vmem:[#allocation20 + $0x340] sm:$0xff]
    %v2158 = vld [vmem:[#allocation20 + $0x348] sm:$0xff]
    %v2159 = vld [vmem:[#allocation20 + $0x350] sm:$0xff]
    %v2160 = vld [vmem:[#allocation20 + $0x358] sm:$0xff]
    %v2161 = vld [vmem:[#allocation20 + $0x360] sm:$0xff]
    %v2162 = vld [vmem:[#allocation20 + $0x368] sm:$0xff]
    %v2163 = vld [vmem:[#allocation20 + $0x370] sm:$0xff]
    %v2164 = vld [vmem:[#allocation20 + $0x378] sm:$0xff]
    %v2165 = vld [vmem:[#allocation20 + $0x380] sm:$0xff]
    %v2166 = vld [vmem:[#allocation20 + $0x388] sm:$0xff]
    %v2167 = vld [vmem:[#allocation20 + $0x390] sm:$0xff]
    %v2168 = vld [vmem:[#allocation20 + $0x398] sm:$0xff]
    %v2169 = vld [vmem:[#allocation20 + $0x3a0] sm:$0xff]
    %v2170 = vld [vmem:[#allocation20 + $0x3a8] sm:$0xff]
    %v2171 = vld [vmem:[#allocation20 + $0x3b0] sm:$0xff]
    %v2172 = vld [vmem:[#allocation20 + $0x3b8] sm:$0xff]
    %v2173 = vld [vmem:[#allocation20 + $0x3c0] sm:$0xff]
    %v2174 = vld [vmem:[#allocation20 + $0x3c8] sm:$0xff]
    %v2175 = vld [vmem:[#allocation20 + $0x3d0] sm:$0xff]
    %v2176 = vld [vmem:[#allocation20 + $0x3d8] sm:$0xff]
    %v2177 = vld [vmem:[#allocation20 + $0x3e0] sm:$0xff]
    %v2178 = vld [vmem:[#allocation20 + $0x3e8] sm:$0xff]
    %v2179 = vld [vmem:[#allocation20 + $0x3f0] sm:$0xff]
    %v2180 = vld [vmem:[#allocation20 + $0x3f8] sm:$0xff]
    %2181 = vmatprep.subr.mxu0 %v2054
    %2182 = vmatpush1.msra.mxu0 %v2053
    %2183 = vmatprep.subr.mxu0 %v2062
    %2184 = vmatpush1.msra.mxu0 %v2061
    %2185 = vmatprep.subr.mxu0 %v2070
    %2186 = vmatpush1.msra.mxu0 %v2069
    %2187 = vmatprep.subr.mxu0 %v2078
    %2188 = vmatpush1.msra.mxu0 %v2077
    %2189 = vmatprep.subr.mxu0 %v2086
    %2190 = vmatpush1.msra.mxu0 %v2085
    %2191 = vmatprep.subr.mxu0 %v2094
    %2192 = vmatpush1.msra.mxu0 %v2093
    %2193 = vmatprep.subr.mxu0 %v2102
    %2194 = vmatpush1.msra.mxu0 %v2101
    %2195 = vmatprep.subr.mxu0 %v2110
    %2196 = vmatpush1.msra.mxu0 %v2109
    %2197 = vmatprep.subr.mxu0 %v2118
    %2198 = vmatpush1.msra.mxu0 %v2117
    %2199 = vmatprep.subr.mxu0 %v2126
    %2200 = vmatpush1.msra.mxu0 %v2125
    %2201 = vmatprep.subr.mxu0 %v2134
    %2202 = vmatpush1.msra.mxu0 %v2133
    %2203 = vmatprep.subr.mxu0 %v2142
    %2204 = vmatpush1.msra.mxu0 %v2141
    %2205 = vmatprep.subr.mxu0 %v2150
    %2206 = vmatpush1.msra.mxu0 %v2149
    %2207 = vmatprep.subr.mxu0 %v2158
    %2208 = vmatpush1.msra.mxu0 %v2157
    %2209 = vmatprep.subr.mxu0 %v2166
    %2210 = vmatpush1.msra.mxu0 %v2165
    %2211 = vmatprep.subr.mxu0 %v2174
    %2212 = vmatpush1.msra.mxu0 %v2173
    %2213 = vmatprep.subr.mxu0 0.0
    %2214 = vmatpush1.msra.mxu0 0.0
    %2215 = vmatprep.subr.mxu0 0.0
    %2216 = vmatpush1.msra.mxu0 0.0
    %2217 = vmatprep.subr.mxu0 0.0
    %2218 = vmatpush1.msra.mxu0 0.0
    %2219 = vmatprep.subr.mxu0 0.0
    %2220 = vmatpush1.msra.mxu0 0.0
    %2221 = vmatprep.subr.mxu0 0.0
    %2222 = vmatpush1.msra.mxu0 0.0
    %2223 = vmatprep.subr.mxu0 0.0
    %2224 = vmatpush1.msra.mxu0 0.0
    %2225 = vmatprep.subr.mxu0 0.0
    %2226 = vmatpush1.msra.mxu0 0.0
    %2227 = vmatprep.subr.mxu0 0.0
    %2228 = vmatpush1.msra.mxu0 0.0
    %2229 = vmatprep.subr.mxu0 0.0
    %2230 = vmatpush1.msra.mxu0 0.0
    %2231 = vmatprep.subr.mxu0 0.0
    %2232 = vmatpush1.msra.mxu0 0.0
    %2233 = vmatprep.subr.mxu0 0.0
    %2234 = vmatpush1.msra.mxu0 0.0
    %2235 = vmatprep.subr.mxu0 0.0
    %2236 = vmatpush1.msra.mxu0 0.0
    %2237 = vmatprep.subr.mxu0 0.0
    %2238 = vmatpush1.msra.mxu0 0.0
    %2239 = vmatprep.subr.mxu0 0.0
    %2240 = vmatpush1.msra.mxu0 0.0
    %2241 = vmatprep.subr.mxu0 0.0
    %2242 = vmatpush1.msra.mxu0 0.0
    %2243 = vmatprep.subr.mxu0 0.0
    %2244 = vmatpush1.msra.mxu0 0.0
    %2245 = vmatprep.mubr.f32.mxu0 0.0
    %2246 = vmatmul.mubr.f32.gmra.mrb[0].mxu0 %v715
    %v2247 = vpop.f32.mrb[0].mxu0
    %v2248 = vadd.f32 0.0, %v2247
    %v2249 = vpop.f32.mrb[0].mxu0
    %v2250 = vadd.f32 0.0, %v2249
    %2251 = vdwg.mxu0
    %2252 = vmatprep.subr.mxu0 %v2056
    %2253 = vmatpush1.msra.mxu0 %v2055
    %2254 = vmatprep.subr.mxu0 %v2064
    %2255 = vmatpush1.msra.mxu0 %v2063
    %2256 = vmatprep.subr.mxu0 %v2072
    %2257 = vmatpush1.msra.mxu0 %v2071
    %2258 = vmatprep.subr.mxu0 %v2080
    %2259 = vmatpush1.msra.mxu0 %v2079
    %2260 = vmatprep.subr.mxu0 %v2088
    %2261 = vmatpush1.msra.mxu0 %v2087
    %2262 = vmatprep.subr.mxu0 %v2096
    %2263 = vmatpush1.msra.mxu0 %v2095
    %2264 = vmatprep.subr.mxu0 %v2104
    %2265 = vmatpush1.msra.mxu0 %v2103
    %2266 = vmatprep.subr.mxu0 %v2112
    %2267 = vmatpush1.msra.mxu0 %v2111
    %2268 = vmatprep.subr.mxu0 %v2120
    %2269 = vmatpush1.msra.mxu0 %v2119
    %2270 = vmatprep.subr.mxu0 %v2128
    %2271 = vmatpush1.msra.mxu0 %v2127
    %2272 = vmatprep.subr.mxu0 %v2136
    %2273 = vmatpush1.msra.mxu0 %v2135
    %2274 = vmatprep.subr.mxu0 %v2144
    %2275 = vmatpush1.msra.mxu0 %v2143
    %2276 = vmatprep.subr.mxu0 %v2152
    %2277 = vmatpush1.msra.mxu0 %v2151
    %2278 = vmatprep.subr.mxu0 %v2160
    %2279 = vmatpush1.msra.mxu0 %v2159
    %2280 = vmatprep.subr.mxu0 %v2168
    %2281 = vmatpush1.msra.mxu0 %v2167
    %2282 = vmatprep.subr.mxu0 %v2176
    %2283 = vmatpush1.msra.mxu0 %v2175
    %2284 = vmatprep.subr.mxu0 0.0
    %2285 = vmatpush1.msra.mxu0 0.0
    %2286 = vmatprep.subr.mxu0 0.0
    %2287 = vmatpush1.msra.mxu0 0.0
    %2288 = vmatprep.subr.mxu0 0.0
    %2289 = vmatpush1.msra.mxu0 0.0
    %2290 = vmatprep.subr.mxu0 0.0
    %2291 = vmatpush1.msra.mxu0 0.0
    %2292 = vmatprep.subr.mxu0 0.0
    %2293 = vmatpush1.msra.mxu0 0.0
    %2294 = vmatprep.subr.mxu0 0.0
    %2295 = vmatpush1.msra.mxu0 0.0
    %2296 = vmatprep.subr.mxu0 0.0
    %2297 = vmatpush1.msra.mxu0 0.0
    %2298 = vmatprep.subr.mxu0 0.0
    %2299 = vmatpush1.msra.mxu0 0.0
    %2300 = vmatprep.subr.mxu0 0.0
    %2301 = vmatpush1.msra.mxu0 0.0
    %2302 = vmatprep.subr.mxu0 0.0
    %2303 = vmatpush1.msra.mxu0 0.0
    %2304 = vmatprep.subr.mxu0 0.0
    %2305 = vmatpush1.msra.mxu0 0.0
    %2306 = vmatprep.subr.mxu0 0.0
    %2307 = vmatpush1.msra.mxu0 0.0
    %2308 = vmatprep.subr.mxu0 0.0
    %2309 = vmatpush1.msra.mxu0 0.0
    %2310 = vmatprep.subr.mxu0 0.0
    %2311 = vmatpush1.msra.mxu0 0.0
    %2312 = vmatprep.subr.mxu0 0.0
    %2313 = vmatpush1.msra.mxu0 0.0
    %2314 = vmatprep.subr.mxu0 0.0
    %2315 = vmatpush1.msra.mxu0 0.0
    %2316 = vmatprep.mubr.f32.mxu0 0.0
    %2317 = vmatmul.mubr.f32.gmra.mrb[0].mxu0 %v715
    %v2318 = vpop.f32.mrb[0].mxu0
    %v2319 = vadd.f32 0.0, %v2318
    %v2320 = vpop.f32.mrb[0].mxu0
    %v2321 = vadd.f32 0.0, %v2320
    %2322 = vdwg.mxu0
    %2323 = vmatprep.subr.mxu0 %v2058
    %2324 = vmatpush1.msra.mxu0 %v2057
    %2325 = vmatprep.subr.mxu0 %v2066
    %2326 = vmatpush1.msra.mxu0 %v2065
    %2327 = vmatprep.subr.mxu0 %v2074
    %2328 = vmatpush1.msra.mxu0 %v2073
    %2329 = vmatprep.subr.mxu0 %v2082
    %2330 = vmatpush1.msra.mxu0 %v2081
    %2331 = vmatprep.subr.mxu0 %v2090
    %2332 = vmatpush1.msra.mxu0 %v2089
    %2333 = vmatprep.subr.mxu0 %v2098
    %2334 = vmatpush1.msra.mxu0 %v2097
    %2335 = vmatprep.subr.mxu0 %v2106
    %2336 = vmatpush1.msra.mxu0 %v2105
    %2337 = vmatprep.subr.mxu0 %v2114
    %2338 = vmatpush1.msra.mxu0 %v2113
    %2339 = vmatprep.subr.mxu0 %v2122
    %2340 = vmatpush1.msra.mxu0 %v2121
    %2341 = vmatprep.subr.mxu0 %v2130
    %2342 = vmatpush1.msra.mxu0 %v2129
    %2343 = vmatprep.subr.mxu0 %v2138
    %2344 = vmatpush1.msra.mxu0 %v2137
    %2345 = vmatprep.subr.mxu0 %v2146
    %2346 = vmatpush1.msra.mxu0 %v2145
    %2347 = vmatprep.subr.mxu0 %v2154
    %2348 = vmatpush1.msra.mxu0 %v2153
    %2349 = vmatprep.subr.mxu0 %v2162
    %2350 = vmatpush1.msra.mxu0 %v2161
    %2351 = vmatprep.subr.mxu0 %v2170
    %2352 = vmatpush1.msra.mxu0 %v2169
    %2353 = vmatprep.subr.mxu0 %v2178
    %2354 = vmatpush1.msra.mxu0 %v2177
    %2355 = vmatprep.subr.mxu0 0.0
    %2356 = vmatpush1.msra.mxu0 0.0
    %2357 = vmatprep.subr.mxu0 0.0
    %2358 = vmatpush1.msra.mxu0 0.0
    %2359 = vmatprep.subr.mxu0 0.0
    %2360 = vmatpush1.msra.mxu0 0.0
    %2361 = vmatprep.subr.mxu0 0.0
    %2362 = vmatpush1.msra.mxu0 0.0
    %2363 = vmatprep.subr.mxu0 0.0
    %2364 = vmatpush1.msra.mxu0 0.0
    %2365 = vmatprep.subr.mxu0 0.0
    %2366 = vmatpush1.msra.mxu0 0.0
    %2367 = vmatprep.subr.mxu0 0.0
    %2368 = vmatpush1.msra.mxu0 0.0
    %2369 = vmatprep.subr.mxu0 0.0
    %2370 = vmatpush1.msra.mxu0 0.0
    %2371 = vmatprep.subr.mxu0 0.0
    %2372 = vmatpush1.msra.mxu0 0.0
    %2373 = vmatprep.subr.mxu0 0.0
    %2374 = vmatpush1.msra.mxu0 0.0
    %2375 = vmatprep.subr.mxu0 0.0
    %2376 = vmatpush1.msra.mxu0 0.0
    %2377 = vmatprep.subr.mxu0 0.0
    %2378 = vmatpush1.msra.mxu0 0.0
    %2379 = vmatprep.subr.mxu0 0.0
    %2380 = vmatpush1.msra.mxu0 0.0
    %2381 = vmatprep.subr.mxu0 0.0
    %2382 = vmatpush1.msra.mxu0 0.0
    %2383 = vmatprep.subr.mxu0 0.0
    %2384 = vmatpush1.msra.mxu0 0.0
    %2385 = vmatprep.subr.mxu0 0.0
    %2386 = vmatpush1.msra.mxu0 0.0
    %2387 = vmatprep.mubr.f32.mxu0 0.0
    %2388 = vmatmul.mubr.f32.gmra.mrb[0].mxu0 %v715
    %v2389 = vpop.f32.mrb[0].mxu0
    %v2390 = vadd.f32 0.0, %v2389
    %v2391 = vpop.f32.mrb[0].mxu0
    %v2392 = vadd.f32 0.0, %v2391
    %2393 = vdwg.mxu0
    %2394 = vmatprep.subr.mxu0 %v2060
    %2395 = vmatpush1.msra.mxu0 %v2059
    %2396 = vmatprep.subr.mxu0 %v2068
    %2397 = vmatpush1.msra.mxu0 %v2067
    %2398 = vmatprep.subr.mxu0 %v2076
    %2399 = vmatpush1.msra.mxu0 %v2075
    %2400 = vmatprep.subr.mxu0 %v2084
    %2401 = vmatpush1.msra.mxu0 %v2083
    %2402 = vmatprep.subr.mxu0 %v2092
    %2403 = vmatpush1.msra.mxu0 %v2091
    %2404 = vmatprep.subr.mxu0 %v2100
    %2405 = vmatpush1.msra.mxu0 %v2099
    %2406 = vmatprep.subr.mxu0 %v2108
    %2407 = vmatpush1.msra.mxu0 %v2107
    %2408 = vmatprep.subr.mxu0 %v2116
    %2409 = vmatpush1.msra.mxu0 %v2115
    %2410 = vmatprep.subr.mxu0 %v2124
    %2411 = vmatpush1.msra.mxu0 %v2123
    %2412 = vmatprep.subr.mxu0 %v2132
    %2413 = vmatpush1.msra.mxu0 %v2131
    %2414 = vmatprep.subr.mxu0 %v2140
    %2415 = vmatpush1.msra.mxu0 %v2139
    %2416 = vmatprep.subr.mxu0 %v2148
    %2417 = vmatpush1.msra.mxu0 %v2147
    %2418 = vmatprep.subr.mxu0 %v2156
    %2419 = vmatpush1.msra.mxu0 %v2155
    %2420 = vmatprep.subr.mxu0 %v2164
    %2421 = vmatpush1.msra.mxu0 %v2163
    %2422 = vmatprep.subr.mxu0 %v2172
    %2423 = vmatpush1.msra.mxu0 %v2171
    %2424 = vmatprep.subr.mxu0 %v2180
    %2425 = vmatpush1.msra.mxu0 %v2179
    %2426 = vmatprep.subr.mxu0 0.0
    %2427 = vmatpush1.msra.mxu0 0.0
    %2428 = vmatprep.subr.mxu0 0.0
    %2429 = vmatpush1.msra.mxu0 0.0
    %2430 = vmatprep.subr.mxu0 0.0
    %2431 = vmatpush1.msra.mxu0 0.0
    %2432 = vmatprep.subr.mxu0 0.0
    %2433 = vmatpush1.msra.mxu0 0.0
    %2434 = vmatprep.subr.mxu0 0.0
    %2435 = vmatpush1.msra.mxu0 0.0
    %2436 = vmatprep.subr.mxu0 0.0
    %2437 = vmatpush1.msra.mxu0 0.0
    %2438 = vmatprep.subr.mxu0 0.0
    %2439 = vmatpush1.msra.mxu0 0.0
    %2440 = vmatprep.subr.mxu0 0.0
    %2441 = vmatpush1.msra.mxu0 0.0
    %2442 = vmatprep.subr.mxu0 0.0
    %2443 = vmatpush1.msra.mxu0 0.0
    %2444 = vmatprep.subr.mxu0 0.0
    %2445 = vmatpush1.msra.mxu0 0.0
    %2446 = vmatprep.subr.mxu0 0.0
    %2447 = vmatpush1.msra.mxu0 0.0
    %2448 = vmatprep.subr.mxu0 0.0
    %2449 = vmatpush1.msra.mxu0 0.0
    %2450 = vmatprep.subr.mxu0 0.0
    %2451 = vmatpush1.msra.mxu0 0.0
    %2452 = vmatprep.subr.mxu0 0.0
    %2453 = vmatpush1.msra.mxu0 0.0
    %2454 = vmatprep.subr.mxu0 0.0
    %2455 = vmatpush1.msra.mxu0 0.0
    %2456 = vmatprep.subr.mxu0 0.0
    %2457 = vmatpush1.msra.mxu0 0.0
    %2458 = vmatprep.mubr.f32.mxu0 0.0
    %2459 = vmatmul.mubr.f32.gmra.mrb[0].mxu0 %v715
    %v2460 = vpop.f32.mrb[0].mxu0
    %v2461 = vadd.f32 0.0, %v2460
    %v2462 = vpop.f32.mrb[0].mxu0
    %v2463 = vadd.f32 0.0, %v2462
    %2464 = vdwg.mxu0
    %v2465 = vcombine.low %v2248, %v2319
    %v2466 = vcombine.high %v2248, %v2319
    %v2468 = vunpack.c.l.s4 1983009808
    %v2469 = vunpack.c.0.s8 %v2468
    %v2470 = vlaneseq
    %v2471 = vshrl.u32 %v2470, 7
    %v2472 = vsub.s32 %v2469, %v2471
    %v2473 = vrot.slane %v2465, %v2472
    %v2475 = vunpack.c.l.s4 1983009808
    %v2476 = vunpack.c.0.s8 %v2475
    %v2477 = vlaneseq
    %v2478 = vshrl.u32 %v2477, 7
    %v2479 = vsub.s32 %v2476, %v2478
    %v2480 = vrot.slane %v2466, %v2479
    %v2481 = vcombine.low %v2250, %v2321
    %v2482 = vcombine.high %v2250, %v2321
    %v2484 = vunpack.c.l.s4 1983009808
    %v2485 = vunpack.c.0.s8 %v2484
    %v2486 = vlaneseq
    %v2487 = vshrl.u32 %v2486, 7
    %v2488 = vsub.s32 %v2485, %v2487
    %v2489 = vrot.slane %v2481, %v2488
    %v2491 = vunpack.c.l.s4 1983009808
    %v2492 = vunpack.c.0.s8 %v2491
    %v2493 = vlaneseq
    %v2494 = vshrl.u32 %v2493, 7
    %v2495 = vsub.s32 %v2492, %v2494
    %v2496 = vrot.slane %v2482, %v2495
    %v2497 = vcombine.low %v2390, %v2461
    %v2498 = vcombine.high %v2390, %v2461
    %v2500 = vunpack.c.l.s4 1983009808
    %v2501 = vunpack.c.0.s8 %v2500
    %v2502 = vlaneseq
    %v2503 = vshrl.u32 %v2502, 7
    %v2504 = vsub.s32 %v2501, %v2503
    %v2505 = vrot.slane %v2497, %v2504
    %v2507 = vunpack.c.l.s4 1983009808
    %v2508 = vunpack.c.0.s8 %v2507
    %v2509 = vlaneseq
    %v2510 = vshrl.u32 %v2509, 7
    %v2511 = vsub.s32 %v2508, %v2510
    %v2512 = vrot.slane %v2498, %v2511
    %v2513 = vcombine.low %v2392, %v2463
    %v2514 = vcombine.high %v2392, %v2463
    %v2516 = vunpack.c.l.s4 1983009808
    %v2517 = vunpack.c.0.s8 %v2516
    %v2518 = vlaneseq
    %v2519 = vshrl.u32 %v2518, 7
    %v2520 = vsub.s32 %v2517, %v2519
    %v2521 = vrot.slane %v2513, %v2520
    %v2523 = vunpack.c.l.s4 1983009808
    %v2524 = vunpack.c.0.s8 %v2523
    %v2525 = vlaneseq
    %v2526 = vshrl.u32 %v2525, 7
    %v2527 = vsub.s32 %v2524, %v2526
    %v2528 = vrot.slane %v2514, %v2527
    %v2529 = vcombine.low %v2473, %v2489
    %v2530 = vcombine.high %v2473, %v2489
    %v2532 = vunpack.c.l.s4 1934713408
    %v2533 = vunpack.c.0.s8 %v2532
    %v2534 = vlaneseq
    %v2535 = vshrl.u32 %v2534, 7
    %v2536 = vsub.s32 %v2533, %v2535
    %v2537 = vrot.slane %v2529, %v2536
    %v2539 = vunpack.c.l.s4 1934713408
    %v2540 = vunpack.c.0.s8 %v2539
    %v2541 = vlaneseq
    %v2542 = vshrl.u32 %v2541, 7
    %v2543 = vsub.s32 %v2540, %v2542
    %v2544 = vrot.slane %v2530, %v2543
    %v2545 = vcombine.low %v2480, %v2496
    %v2546 = vcombine.high %v2480, %v2496
    %v2548 = vunpack.c.l.s4 1934713408
    %v2549 = vunpack.c.0.s8 %v2548
    %v2550 = vlaneseq
    %v2551 = vshrl.u32 %v2550, 7
    %v2552 = vsub.s32 %v2549, %v2551
    %v2553 = vrot.slane %v2545, %v2552
    %v2555 = vunpack.c.l.s4 1934713408
    %v2556 = vunpack.c.0.s8 %v2555
    %v2557 = vlaneseq
    %v2558 = vshrl.u32 %v2557, 7
    %v2559 = vsub.s32 %v2556, %v2558
    %v2560 = vrot.slane %v2546, %v2559
    %v2561 = vcombine.low %v2505, %v2521
    %v2562 = vcombine.high %v2505, %v2521
    %v2564 = vunpack.c.l.s4 1934713408
    %v2565 = vunpack.c.0.s8 %v2564
    %v2566 = vlaneseq
    %v2567 = vshrl.u32 %v2566, 7
    %v2568 = vsub.s32 %v2565, %v2567
    %v2569 = vrot.slane %v2561, %v2568
    %v2571 = vunpack.c.l.s4 1934713408
    %v2572 = vunpack.c.0.s8 %v2571
    %v2573 = vlaneseq
    %v2574 = vshrl.u32 %v2573, 7
    %v2575 = vsub.s32 %v2572, %v2574
    %v2576 = vrot.slane %v2562, %v2575
    %v2577 = vcombine.low %v2512, %v2528
    %v2578 = vcombine.high %v2512, %v2528
    %v2580 = vunpack.c.l.s4 1934713408
    %v2581 = vunpack.c.0.s8 %v2580
    %v2582 = vlaneseq
    %v2583 = vshrl.u32 %v2582, 7
    %v2584 = vsub.s32 %v2581, %v2583
    %v2585 = vrot.slane %v2577, %v2584
    %v2587 = vunpack.c.l.s4 1934713408
    %v2588 = vunpack.c.0.s8 %v2587
    %v2589 = vlaneseq
    %v2590 = vshrl.u32 %v2589, 7
    %v2591 = vsub.s32 %v2588, %v2590
    %v2592 = vrot.slane %v2578, %v2591
    %v2593 = vcombine.low %v2537, %v2569
    %v2594 = vcombine.high %v2537, %v2569
    %v2595 = vcombine.low %v2544, %v2576
    %v2596 = vcombine.high %v2544, %v2576
    %v2597 = vcombine.low %v2553, %v2585
    %v2598 = vcombine.high %v2553, %v2585
    %v2599 = vcombine.low %v2560, %v2592
    %v2600 = vcombine.high %v2560, %v2592
    %v2601 = vmul.f32 %v2593, %v739
    %v2602 = vmul.f32 %v2594, %v746
    %v2603 = vmul.f32 %v2595, %v753
    %v2604 = vmul.f32 %v2596, %v760
    %v2605 = vmul.f32 %v2597, %v767
    %v2606 = vmul.f32 %v2598, %v774
    %v2607 = vmul.f32 %v2599, %v781
    %v2608 = vmul.f32 %v2600, %v788
    %v2609 = vrot.slane %v2601, 4
    %v2610 = vadd.f32 %v2601, %v2609
    %v2611 = vrot.slane %v2610, 2
    %v2612 = vadd.f32 %v2610, %v2611
    %v2613 = vrot.slane %v2612, 1
    %v2614 = vadd.f32 %v2612, %v2613
    %v2615 = vrot.slane %v2602, 4
    %v2616 = vadd.f32 %v2602, %v2615
    %v2617 = vrot.slane %v2616, 2
    %v2618 = vadd.f32 %v2616, %v2617
    %v2619 = vrot.slane %v2618, 1
    %v2620 = vadd.f32 %v2618, %v2619
    %v2621 = vrot.slane %v2603, 4
    %v2622 = vadd.f32 %v2603, %v2621
    %v2623 = vrot.slane %v2622, 2
    %v2624 = vadd.f32 %v2622, %v2623
    %v2625 = vrot.slane %v2624, 1
    %v2626 = vadd.f32 %v2624, %v2625
    %v2627 = vrot.slane %v2604, 4
    %v2628 = vadd.f32 %v2604, %v2627
    %v2629 = vrot.slane %v2628, 2
    %v2630 = vadd.f32 %v2628, %v2629
    %v2631 = vrot.slane %v2630, 1
    %v2632 = vadd.f32 %v2630, %v2631
    %v2633 = vrot.slane %v2605, 4
    %v2634 = vadd.f32 %v2605, %v2633
    %v2635 = vrot.slane %v2634, 2
    %v2636 = vadd.f32 %v2634, %v2635
    %v2637 = vrot.slane %v2636, 1
    %v2638 = vadd.f32 %v2636, %v2637
    %v2639 = vrot.slane %v2606, 4
    %v2640 = vadd.f32 %v2606, %v2639
    %v2641 = vrot.slane %v2640, 2
    %v2642 = vadd.f32 %v2640, %v2641
    %v2643 = vrot.slane %v2642, 1
    %v2644 = vadd.f32 %v2642, %v2643
    %v2645 = vrot.slane %v2607, 4
    %v2646 = vadd.f32 %v2607, %v2645
    %v2647 = vrot.slane %v2646, 2
    %v2648 = vadd.f32 %v2646, %v2647
    %v2649 = vrot.slane %v2648, 1
    %v2650 = vadd.f32 %v2648, %v2649
    %v2651 = vrot.slane %v2608, 4
    %v2652 = vadd.f32 %v2608, %v2651
    %v2653 = vrot.slane %v2652, 2
    %v2654 = vadd.f32 %v2652, %v2653
    %v2655 = vrot.slane %v2654, 1
    %v2656 = vadd.f32 %v2654, %v2655
    %vm2665 = vcmask 1041409
    %v2666 = vsel %vm2665, %v1412, %v1406
    %vm2667 = vcmask 1042434
    %v2668 = vsel %vm2667, %v1418, %v2666
    %vm2669 = vcmask 1043459
    %v2670 = vsel %vm2669, %v1424, %v2668
    %vm2671 = vcmask 1044484
    %v2672 = vsel %vm2671, %v1430, %v2670
    %vm2673 = vcmask 1045509
    %v2674 = vsel %vm2673, %v1436, %v2672
    %vm2675 = vcmask 1046534
    %v2676 = vsel %vm2675, %v1442, %v2674
    %vm2677 = vcmask 1047559
    %v2678 = vsel %vm2677, %v1448, %v2676
    %v2680 = vadd.f32 %v375, %v2678
    %2681 = vst [vmem:[#allocation22] sm:$0xff] %v2680
    %v2690 = vsel %vm2665, %v2016, %v2010
    %v2691 = vsel %vm2667, %v2022, %v2690
    %v2692 = vsel %vm2669, %v2028, %v2691
    %v2693 = vsel %vm2671, %v2034, %v2692
    %v2694 = vsel %vm2673, %v2040, %v2693
    %v2695 = vsel %vm2675, %v2046, %v2694
    %v2696 = vsel %vm2677, %v2052, %v2695
    %v2698 = vadd.f32 %v380, %v2696
    %2699 = vst [vmem:[#allocation22 + $0x8] sm:$0xff] %v2698
    %v2708 = vsel %vm2665, %v2620, %v2614
    %v2709 = vsel %vm2667, %v2626, %v2708
    %v2710 = vsel %vm2669, %v2632, %v2709
    %v2711 = vsel %vm2671, %v2638, %v2710
    %v2712 = vsel %vm2673, %v2644, %v2711
    %v2713 = vsel %vm2675, %v2650, %v2712
    %v2714 = vsel %vm2677, %v2656, %v2713
    %v2716 = vadd.f32 %v699, %v2714
    %2717 = vst [vmem:[#allocation22 + $0x10] sm:$0xff] %v2716
    // Predicated region
    $region106: #{tpu_custom_call.1} parent=1 // pred_check
      _
    $region107: #{tpu_custom_call.1} parent=1 // pred_check_branch
      %2719 = sbr.rel (0) target = $region109
    $region108: #{tpu_custom_call.1} parent=1 // pred_region
      %s2721 = ssub.s32 384, 384
      %2722 = vsyncadd [#allocation4], %s2721
      %s2724 = sshll.u32 [#allocation22], 4
      %s2725 = int_to_ptr.vmem [resolvable:$true] %s2724
      %2727 = dma.vmem_to_hbm [thread:$0]  %s2725, 384, %s14, [#allocation4]
    $region109: #{tpu_custom_call.1} parent=1 // pred_fallthru
      _
    // Predicated region
    $region110: #{tpu_custom_call.1} parent=1 // pred_check
      _
    $region111: #{tpu_custom_call.1} parent=1 // pred_check_branch
      %2729 = sbr.rel (0) target = $region113
    $region112: #{tpu_custom_call.1} parent=1 // pred_region
      %2730 = dma.done [#allocation4], 384
    $region113: #{tpu_custom_call.1} parent=1 // pred_fallthru
      _
    %2731 = vsyncpa [#allocation3], 1
    %2732 = vsyncpa [#allocation6], 1
    %2733 = vsyncpa [#allocation9], 1
    %2734 = vsyncpa [#allocation12], 1
    %2735 = vsyncpa [#allocation15], 1
    %2736 = vsyncpa [#allocation18], 1
    %2737 = vsyncpa [#allocation21], 1
    %2738 = vsyncpa [#allocation4], 1

</llo_original>
